<compile_context>
chip_gen: v7x
topology: tpu7x:2x2x1
jax: 0.10.0
libtpu: 0.0.40
codegen_flags: <defaults>
</compile_context>

<pallas_src>
import functools
import math

import jax
import jax.numpy as jnp
from jax import lax
from jax.experimental import pallas as pl
from jax.experimental.pallas import tpu as pltpu


def _round_up(x, m):
    return (x + m - 1) // m * m


# ----------------------------------------------------------------------------
# Fused Pallas kernel: LayerNorm -> single-query multi-head attention ->
# residual -> LayerNorm -> LSTM-cell gating.  One grid step == one batch TILE
# of TB rows, so the matmuls are (L*TB,H)@(H,2H), (TB,H)@(H,H), (TB,H)@(H,4H).
# ----------------------------------------------------------------------------
def layer_kernel(lh_ref, hs_ref, cell_ref,
                 hmap_ref, hmap_t_ref,
                 ln1_g_ref, ln1_b_ref,
                 kv_w_ref, kv_b_ref,
                 q_w_ref, q_b_ref,
                 cproj_w_ref, cproj_b_ref,
                 ln2_g_ref, ln2_b_ref,
                 lstm_w_ref, lstm_b_ref,
                 hy_ref, cy_ref,
                 *, eps, scale):
    L, TB, H = hs_ref.shape

    lh = lh_ref[...]            # (TB, H)    query hidden state (batch tile)
    hs = hs_ref[...]            # (L, TB, H) stacked layer hidden states
    cell = cell_ref[...]        # (TB, H)    previous LSTM cell state

    # ---- LayerNorm 1 over hidden_states (f32, lane-axis reduction) --------
    mu = jnp.mean(hs, axis=-1, keepdims=True)
    var = jnp.mean((hs - mu) ** 2, axis=-1, keepdims=True)
    hs_n = (hs - mu) * lax.rsqrt(var + eps) * ln1_g_ref[...] + ln1_b_ref[...]

    # ---- projections (Conv1D == x @ W + b), bf16 operands / f32 accum -----
    hs_flat = hs_n.reshape(L * TB, H)            # layout no-op: TB % 8 == 0
    kv = jnp.dot(hs_flat.astype(jnp.bfloat16), kv_w_ref[...],
                 preferred_element_type=jnp.float32) + kv_b_ref[...]  # (L*TB,2H)
    k = kv[:, :H].reshape(L, TB, H)
    v = kv[:, H:].reshape(L, TB, H)
    q = jnp.dot(lh.astype(jnp.bfloat16), q_w_ref[...],
                preferred_element_type=jnp.float32) + q_b_ref[...]    # (TB, H)
    q = q * scale

    # ---- single-query multi-head attention --------------------------------
    # Head reduction / expansion routed through the MXU via static 0/1
    # head-indicator matrices -> no lane-axis reshape/broadcast (XLU) work.
    qk = q[None, :, :] * k                                   # (L, TB, H)
    scores = jnp.dot(qk.reshape(L * TB, H), hmap_ref[...],
                     preferred_element_type=jnp.float32)     # (L*TB, nh)
    scores = scores.reshape(L, TB, -1)                       # (L, TB, nh)

    # softmax over the key axis (leading L dim -> pure VPU/EUP, no XLU)
    m = jnp.max(scores, axis=0, keepdims=True)
    e = jnp.exp(scores - m)
    denom = jnp.sum(e, axis=0, keepdims=True)
    probs = e * pl.reciprocal(denom, approx=True)            # (L, TB, nh)

    nh = probs.shape[-1]
    probs_full = jnp.dot(probs.reshape(L * TB, nh), hmap_t_ref[...],
                         preferred_element_type=jnp.float32)
    probs_full = probs_full.reshape(L, TB, H)
    ctx = jnp.sum(probs_full * v, axis=0)                    # (TB, H) merged heads

    ctx = jnp.dot(ctx.astype(jnp.bfloat16), cproj_w_ref[...],
                  preferred_element_type=jnp.float32) + cproj_b_ref[...]

    # ---- residual + LayerNorm 2 --------------------------------------------
    attn_out = ctx + lh
    mu2 = jnp.mean(attn_out, axis=-1, keepdims=True)
    var2 = jnp.mean((attn_out - mu2) ** 2, axis=-1, keepdims=True)
    h2 = (attn_out - mu2) * lax.rsqrt(var2 + eps) * ln2_g_ref[...] + ln2_b_ref[...]

    # ---- LSTM cell gating (all activations sigmoid per config) -------------
    gates = jnp.dot(h2.astype(jnp.bfloat16), lstm_w_ref[...],
                    preferred_element_type=jnp.float32) + lstm_b_ref[...]  # (TB,4H)
    i_g = jax.nn.sigmoid(gates[:, 0 * H:1 * H])
    f_g = jax.nn.sigmoid(gates[:, 1 * H:2 * H])
    c_t = jax.nn.sigmoid(gates[:, 2 * H:3 * H])
    o_g = jax.nn.sigmoid(gates[:, 3 * H:4 * H])

    cy = f_g * cell + i_g * c_t
    hy = o_g * jnp.tanh(cy)

    hy_ref[...] = hy
    cy_ref[...] = cy


# ----------------------------------------------------------------------------
# Wrapper
# ----------------------------------------------------------------------------
def layer_forward(layer_hidden_state, hidden_states, cell_state, params,
                  *, num_heads, eps=1e-5, batch_tile=128):
    B, H = layer_hidden_state.shape
    L = hidden_states.shape[1]
    head_dim = H // num_heads
    scale = 1.0 / math.sqrt(head_dim)

    # Batch tile: multiple of 8 (sublanes) so in-kernel (L,TB,H)<->(L*TB,H)
    # reshapes are layout no-ops; up to `batch_tile` rows per grid step.
    TB = min(batch_tile, _round_up(B, 8))
    Bp = _round_up(B, TB)
    grid = Bp // TB

    # Host-side layout plumbing: hidden_states as (L, B, H); zero-pad batch.
    lh = layer_hidden_state.astype(jnp.float32)
    cell = cell_state.astype(jnp.float32)
    hs_t = jnp.transpose(hidden_states.astype(jnp.float32), (1, 0, 2))
    if Bp != B:
        pad = Bp - B
        lh = jnp.pad(lh, ((0, pad), (0, 0)))
        cell = jnp.pad(cell, ((0, pad), (0, 0)))
        hs_t = jnp.pad(hs_t, ((0, 0), (0, pad), (0, 0)))

    # Static 0/1 head-indicator matrices (MXU-side head reduce / expand).
    head_ids = jnp.arange(H, dtype=jnp.int32) // head_dim
    head_map = (head_ids[:, None]
                == jnp.arange(num_heads, dtype=jnp.int32)[None, :]
                ).astype(jnp.float32)                        # (H, nh)
    head_map_t = head_map.T                                  # (nh, H)

    bf16 = lambda x: x.astype(jnp.bfloat16)   # matmul operands (halved DMA)
    f32 = lambda x: x.astype(jnp.float32)     # biases / LN params stay f32
    weight_args = (
        head_map, head_map_t,
        f32(params["ln1_g"]), f32(params["ln1_b"]),
        bf16(params["kv_w"]), f32(params["kv_b"]),
        bf16(params["q_w"]), f32(params["q_b"]),
        bf16(params["cproj_w"]), f32(params["cproj_b"]),
        f32(params["ln2_g"]), f32(params["ln2_b"]),
        bf16(params["lstm_wT"]), f32(params["lstm_b"]),
    )

    kernel = functools.partial(layer_kernel, eps=eps, scale=scale)

    act_specs = [
        pl.BlockSpec((TB, H), lambda b: (b, 0)),         # layer_hidden_state
        pl.BlockSpec((L, TB, H), lambda b: (0, b, 0)),   # hidden_states (L,B,H)
        pl.BlockSpec((TB, H), lambda b: (b, 0)),         # cell_state
    ]
    out_specs = (
        pl.BlockSpec((TB, H), lambda b: (b, 0)),
        pl.BlockSpec((TB, H), lambda b: (b, 0)),
    )
    out_shape = (
        jax.ShapeDtypeStruct((Bp, H), jnp.float32),
        jax.ShapeDtypeStruct((Bp, H), jnp.float32),
    )

    def call(aggressive):
        if aggressive:
            # Weights never change block index across the grid -> single-buffer
            # them (halves resident weight VMEM; matters at H=768 on v7x) and
            # raise the scoped VMEM budget so larger batch tiles fit.
            w_spec = lambda w: pl.BlockSpec(w.shape, lambda b: (0, 0),
                                            pipeline_mode=pl.Buffered(1))
            cparams = pltpu.CompilerParams(
                dimension_semantics=("parallel",),
                vmem_limit_bytes=64 * 1024 * 1024)
        else:
            w_spec = lambda w: pl.BlockSpec(w.shape, lambda b: (0, 0))
            cparams = pltpu.CompilerParams(dimension_semantics=("parallel",))
        return pl.pallas_call(
            kernel,
            out_shape=out_shape,
            grid=(grid,),
            in_specs=act_specs + [w_spec(w) for w in weight_args],
            out_specs=out_specs,
            compiler_params=cparams,
        )(lh, hs_t, cell, *weight_args)

    try:
        hy_p, cy_p = call(aggressive=True)
    except Exception:
        # Conservative fallback (default buffering / default VMEM budget).
        hy_p, cy_p = call(aggressive=False)

    # The PyTorch module returns (B, 1, H) tensors.
    return hy_p[:B].reshape(B, 1, H), cy_p[:B].reshape(B, 1, H)


# ----------------------------------------------------------------------------
# Pure-JAX reference (mirrors the PyTorch forward, eval mode, f32)
# ----------------------------------------------------------------------------
def layer_ref(lh, hs, cell, p, num_heads, eps=1e-5):
    B, H = lh.shape
    L = hs.shape[1]
    hd = H // num_heads

    def ln(x, g, b):
        mu = x.mean(-1, keepdims=True)
        var = ((x - mu) ** 2).mean(-1, keepdims=True)
        return (x - mu) / jnp.sqrt(var + eps) * g + b

    hs_n = ln(hs, p["ln1_g"], p["ln1_b"])
    kv = hs_n @ p["kv_w"] + p["kv_b"]
    k, v = kv[..., :H], kv[..., H:]
    q = lh @ p["q_w"] + p["q_b"]
    qh = q.reshape(B, num_heads, hd)
    kh = k.reshape(B, L, num_heads, hd)
    vh = v.reshape(B, L, num_heads, hd)
    scores = jnp.einsum("bhd,blhd->bhl", qh, kh) / math.sqrt(hd)
    probs = jax.nn.softmax(scores, axis=-1)
    ctx = jnp.einsum("bhl,blhd->bhd", probs, vh).reshape(B, H)
    ctx = ctx @ p["cproj_w"] + p["cproj_b"]
    attn_out = ctx + lh
    h2 = ln(attn_out, p["ln2_g"], p["ln2_b"])
    gates = h2 @ p["lstm_wT"] + p["lstm_b"]
    i_g, f_g, c_t, o_g = jnp.split(gates, 4, axis=-1)
    i_g, f_g, c_t, o_g = map(jax.nn.sigmoid, (i_g, f_g, c_t, o_g))
    cy = f_g * cell + i_g * c_t
    hy = o_g * jnp.tanh(cy)
    return hy, cy


# ----------------------------------------------------------------------------
# Main
# ----------------------------------------------------------------------------
if __name__ == "__main__":
    # Scaled-down analog of the module's config (hidden_size=768, heads=12).
    B = 2            # batch
    L = 4            # number of stacked hidden states (#layers + 1)
    H = 256          # hidden_size
    NUM_HEADS = 4    # head_dim = 64, same head_dim as the production config
    EPS = 1e-5

    key = jax.random.PRNGKey(0)
    keys = jax.random.split(key, 8)

    # Deterministic parameter init mirroring the module's __init__ (in f32).
    params = {
        "ln1_g": jnp.ones((1, H), jnp.float32),
        "ln1_b": jnp.zeros((1, H), jnp.float32),
        "ln2_g": jnp.ones((1, H), jnp.float32),
        "ln2_b": jnp.zeros((1, H), jnp.float32),
        # Conv1D weights: normal(std=0.02), bias zero; stored as [nx, nf].
        "kv_w": 0.02 * jax.random.normal(keys[0], (H, 2 * H), jnp.float32),
        "kv_b": jnp.zeros((1, 2 * H), jnp.float32),
        "q_w": 0.02 * jax.random.normal(keys[1], (H, H), jnp.float32),
        "q_b": jnp.zeros((1, H), jnp.float32),
        "cproj_w": 0.02 * jax.random.normal(keys[2], (H, H), jnp.float32),
        "cproj_b": jnp.zeros((1, H), jnp.float32),
    }
    # LSTMCell: uniform(-1/sqrt(H), 1/sqrt(H)); torch weight_hh_l is (4H, H),
    # we store its transpose (H, 4H) so the kernel does x @ W.
    stdv = 1.0 / math.sqrt(H)
    lstm_w = jax.random.uniform(keys[3], (4 * H, H), jnp.float32, -stdv, stdv)
    lstm_b = jax.random.uniform(keys[4], (4 * H,), jnp.float32, -stdv, stdv)
    params["lstm_wT"] = lstm_w.T
    params["lstm_b"] = lstm_b.reshape(1, 4 * H)

    # Deterministic example inputs.
    layer_hidden_state = jax.random.normal(keys[5], (B, H), jnp.float32)
    hidden_states = jax.random.normal(keys[6], (B, L, H), jnp.float32)
    cell_state = jax.random.normal(keys[7], (B, H), jnp.float32)

    hy, cy = layer_forward(layer_hidden_state, hidden_states, cell_state,
                           params, num_heads=NUM_HEADS, eps=EPS)
    hy = jax.block_until_ready(hy)
    cy = jax.block_until_ready(cy)

    # Silent correctness check against the pure-JAX f32 reference (tolerance
    # loosened for the bf16 matmul operands).
    hy_ref, cy_ref = layer_ref(layer_hidden_state, hidden_states, cell_state,
                               params, NUM_HEADS, EPS)
    assert jnp.allclose(hy[:, 0, :], hy_ref, atol=2e-2, rtol=2e-2)
    assert jnp.allclose(cy[:, 0, :], cy_ref, atol=2e-2, rtol=2e-2)

    print("KERNEL_OK")
</pallas_src>

<mosaic_0001>
module attributes {stable_mosaic.version = 11 : i64} {
  func.func @layer_kernel(%arg0: i32, %arg1: memref<8x256xf32, #tpu.memory_space<vmem>>, %arg2: memref<4x8x256xf32, #tpu.memory_space<vmem>>, %arg3: memref<8x256xf32, #tpu.memory_space<vmem>>, %arg4: memref<256x4xf32, #tpu.memory_space<vmem>>, %arg5: memref<4x256xf32, #tpu.memory_space<vmem>>, %arg6: memref<1x256xf32, #tpu.memory_space<vmem>>, %arg7: memref<1x256xf32, #tpu.memory_space<vmem>>, %arg8: memref<256x512xbf16, #tpu.memory_space<vmem>>, %arg9: memref<1x512xf32, #tpu.memory_space<vmem>>, %arg10: memref<256x256xbf16, #tpu.memory_space<vmem>>, %arg11: memref<1x256xf32, #tpu.memory_space<vmem>>, %arg12: memref<256x256xbf16, #tpu.memory_space<vmem>>, %arg13: memref<1x256xf32, #tpu.memory_space<vmem>>, %arg14: memref<1x256xf32, #tpu.memory_space<vmem>>, %arg15: memref<1x256xf32, #tpu.memory_space<vmem>>, %arg16: memref<256x1024xbf16, #tpu.memory_space<vmem>>, %arg17: memref<1x1024xf32, #tpu.memory_space<vmem>>, %arg18: memref<8x256xf32, #tpu.memory_space<vmem>>, %arg19: memref<8x256xf32, #tpu.memory_space<vmem>>) attributes {dimension_semantics = [#tpu.dimension_semantics<parallel>], iteration_bounds = array<i64: 1>, scalar_prefetch = 0 : i64, scratch_operands = 0 : i64, tpu.core_type = #tpu.core_type<tc>, window_params = [{transform_indices = @transform_0, window_bounds = array<i64: 8, 256>}, {transform_indices = @transform_1, window_bounds = array<i64: 4, 8, 256>}, {transform_indices = @transform_2, window_bounds = array<i64: 8, 256>}, {pipeline_mode = #tpu.pipeline_mode<synchronous>, transform_indices = @transform_3, window_bounds = array<i64: 256, 4>}, {pipeline_mode = #tpu.pipeline_mode<synchronous>, transform_indices = @transform_4, window_bounds = array<i64: 4, 256>}, {pipeline_mode = #tpu.pipeline_mode<synchronous>, transform_indices = @transform_5, window_bounds = array<i64: 1, 256>}, {pipeline_mode = #tpu.pipeline_mode<synchronous>, transform_indices = @transform_6, window_bounds = array<i64: 1, 256>}, {pipeline_mode = #tpu.pipeline_mode<synchronous>, transform_indices = @transform_7, window_bounds = array<i64: 256, 512>}, {pipeline_mode = #tpu.pipeline_mode<synchronous>, transform_indices = @transform_8, window_bounds = array<i64: 1, 512>}, {pipeline_mode = #tpu.pipeline_mode<synchronous>, transform_indices = @transform_9, window_bounds = array<i64: 256, 256>}, {pipeline_mode = #tpu.pipeline_mode<synchronous>, transform_indices = @transform_10, window_bounds = array<i64: 1, 256>}, {pipeline_mode = #tpu.pipeline_mode<synchronous>, transform_indices = @transform_11, window_bounds = array<i64: 256, 256>}, {pipeline_mode = #tpu.pipeline_mode<synchronous>, transform_indices = @transform_12, window_bounds = array<i64: 1, 256>}, {pipeline_mode = #tpu.pipeline_mode<synchronous>, transform_indices = @transform_13, window_bounds = array<i64: 1, 256>}, {pipeline_mode = #tpu.pipeline_mode<synchronous>, transform_indices = @transform_14, window_bounds = array<i64: 1, 256>}, {pipeline_mode = #tpu.pipeline_mode<synchronous>, transform_indices = @transform_15, window_bounds = array<i64: 256, 1024>}, {pipeline_mode = #tpu.pipeline_mode<synchronous>, transform_indices = @transform_16, window_bounds = array<i64: 1, 1024>}, {transform_indices = @transform_17, window_bounds = array<i64: 8, 256>}, {transform_indices = @transform_18, window_bounds = array<i64: 8, 256>}]} {
    %c0 = arith.constant 0 : index
    %c0_0 = arith.constant 0 : index
    %0 = vector.load %arg1[%c0, %c0_0] : memref<8x256xf32, #tpu.memory_space<vmem>>, vector<8x256xf32>
    %c0_1 = arith.constant 0 : index
    %c0_2 = arith.constant 0 : index
    %c0_3 = arith.constant 0 : index
    %1 = vector.load %arg2[%c0_1, %c0_2, %c0_3] : memref<4x8x256xf32, #tpu.memory_space<vmem>>, vector<4x8x256xf32>
    %c0_4 = arith.constant 0 : index
    %c0_5 = arith.constant 0 : index
    %2 = vector.load %arg3[%c0_4, %c0_5] : memref<8x256xf32, #tpu.memory_space<vmem>>, vector<8x256xf32>
    %cst = arith.constant dense<0.000000e+00> : vector<4x8xf32>
    %3 = vector.multi_reduction <add>, %1, %cst [2] : vector<4x8x256xf32> to vector<4x8xf32>
    %4 = vector.shape_cast %3 : vector<4x8xf32> to vector<4x8x1xf32>
    %cst_6 = arith.constant 2.560000e+02 : f32
    %5 = vector.broadcast %cst_6 : f32 to vector<4x8x1xf32>
    %6 = arith.divf %4, %5 : vector<4x8x1xf32>
    %7 = vector.broadcast %6 : vector<4x8x1xf32> to vector<4x8x256xf32>
    %8 = arith.subf %1, %7 : vector<4x8x256xf32>
    %9 = arith.mulf %8, %8 : vector<4x8x256xf32>
    %cst_7 = arith.constant dense<0.000000e+00> : vector<4x8xf32>
    %10 = vector.multi_reduction <add>, %9, %cst_7 [2] : vector<4x8x256xf32> to vector<4x8xf32>
    %11 = vector.shape_cast %10 : vector<4x8xf32> to vector<4x8x1xf32>
    %cst_8 = arith.constant 2.560000e+02 : f32
    %12 = vector.broadcast %cst_8 : f32 to vector<4x8x1xf32>
    %13 = arith.divf %11, %12 : vector<4x8x1xf32>
    %14 = vector.broadcast %6 : vector<4x8x1xf32> to vector<4x8x256xf32>
    %15 = arith.subf %1, %14 : vector<4x8x256xf32>
    %cst_9 = arith.constant 9.99999974E-6 : f32
    %16 = vector.broadcast %cst_9 : f32 to vector<4x8x1xf32>
    %17 = arith.addf %13, %16 : vector<4x8x1xf32>
    %18 = math.rsqrt %17 : vector<4x8x1xf32>
    %19 = vector.broadcast %18 : vector<4x8x1xf32> to vector<4x8x256xf32>
    %20 = arith.mulf %15, %19 : vector<4x8x256xf32>
    %c0_10 = arith.constant 0 : index
    %c0_11 = arith.constant 0 : index
    %21 = vector.load %arg6[%c0_10, %c0_11] : memref<1x256xf32, #tpu.memory_space<vmem>>, vector<1x256xf32>
    %22 = vector.shape_cast %21 : vector<1x256xf32> to vector<1x1x256xf32>
    %23 = vector.broadcast %22 : vector<1x1x256xf32> to vector<4x8x256xf32>
    %24 = arith.mulf %20, %23 : vector<4x8x256xf32>
    %c0_12 = arith.constant 0 : index
    %c0_13 = arith.constant 0 : index
    %25 = vector.load %arg7[%c0_12, %c0_13] : memref<1x256xf32, #tpu.memory_space<vmem>>, vector<1x256xf32>
    %26 = vector.shape_cast %25 : vector<1x256xf32> to vector<1x1x256xf32>
    %27 = vector.broadcast %26 : vector<1x1x256xf32> to vector<4x8x256xf32>
    %28 = arith.addf %24, %27 : vector<4x8x256xf32>
    %29 = vector.shape_cast %28 : vector<4x8x256xf32> to vector<32x256xf32>
    %30 = arith.truncf %29 : vector<32x256xf32> to vector<32x256xbf16>
    %c0_14 = arith.constant 0 : index
    %c0_15 = arith.constant 0 : index
    %31 = vector.load %arg8[%c0_14, %c0_15] : memref<256x512xbf16, #tpu.memory_space<vmem>>, vector<256x512xbf16>
    %cst_16 = arith.constant dense<0.000000e+00> : vector<32x512xf32>
    %32 = tpu.matmul %30, %31, %cst_16 {dimension_numbers = #tpu.dot_dimension_numbers<[1], [0], [0], [1], [0, 0, 1, 1], [], []>} : vector<32x256xbf16>, vector<256x512xbf16>, vector<32x512xf32> -> vector<32x512xf32>
    %c0_17 = arith.constant 0 : index
    %c0_18 = arith.constant 0 : index
    %33 = vector.load %arg9[%c0_17, %c0_18] : memref<1x512xf32, #tpu.memory_space<vmem>>, vector<1x512xf32>
    %34 = vector.broadcast %33 : vector<1x512xf32> to vector<32x512xf32>
    %35 = arith.addf %32, %34 : vector<32x512xf32>
    %36 = vector.extract_strided_slice %35 {offsets = [0, 0], sizes = [32, 256], strides = [1, 1]} : vector<32x512xf32> to vector<32x256xf32>
    %37 = vector.shape_cast %36 : vector<32x256xf32> to vector<4x8x256xf32>
    %38 = vector.extract_strided_slice %35 {offsets = [0, 256], sizes = [32, 256], strides = [1, 1]} : vector<32x512xf32> to vector<32x256xf32>
    %39 = vector.shape_cast %38 : vector<32x256xf32> to vector<4x8x256xf32>
    %40 = arith.truncf %0 : vector<8x256xf32> to vector<8x256xbf16>
    %c0_19 = arith.constant 0 : index
    %c0_20 = arith.constant 0 : index
    %41 = vector.load %arg10[%c0_19, %c0_20] : memref<256x256xbf16, #tpu.memory_space<vmem>>, vector<256x256xbf16>
    %cst_21 = arith.constant dense<0.000000e+00> : vector<8x256xf32>
    %42 = tpu.matmul %40, %41, %cst_21 {dimension_numbers = #tpu.dot_dimension_numbers<[1], [0], [0], [1], [0, 0, 1, 1], [], []>} : vector<8x256xbf16>, vector<256x256xbf16>, vector<8x256xf32> -> vector<8x256xf32>
    %c0_22 = arith.constant 0 : index
    %c0_23 = arith.constant 0 : index
    %43 = vector.load %arg11[%c0_22, %c0_23] : memref<1x256xf32, #tpu.memory_space<vmem>>, vector<1x256xf32>
    %44 = vector.broadcast %43 : vector<1x256xf32> to vector<8x256xf32>
    %45 = arith.addf %42, %44 : vector<8x256xf32>
    %cst_24 = arith.constant 1.250000e-01 : f32
    %46 = vector.broadcast %cst_24 : f32 to vector<8x256xf32>
    %47 = arith.mulf %45, %46 : vector<8x256xf32>
    %48 = vector.shape_cast %47 : vector<8x256xf32> to vector<1x8x256xf32>
    %49 = vector.broadcast %48 : vector<1x8x256xf32> to vector<4x8x256xf32>
    %50 = arith.mulf %49, %37 : vector<4x8x256xf32>
    %51 = vector.shape_cast %50 : vector<4x8x256xf32> to vector<32x256xf32>
    %c0_25 = arith.constant 0 : index
    %c0_26 = arith.constant 0 : index
    %52 = vector.load %arg4[%c0_25, %c0_26] : memref<256x4xf32, #tpu.memory_space<vmem>>, vector<256x4xf32>
    %cst_27 = arith.constant dense<0.000000e+00> : vector<32x4xf32>
    %53 = tpu.matmul %51, %52, %cst_27 {dimension_numbers = #tpu.dot_dimension_numbers<[1], [0], [0], [1], [0, 0, 1, 1], [], []>} : vector<32x256xf32>, vector<256x4xf32>, vector<32x4xf32> -> vector<32x4xf32>
    %54 = vector.shape_cast %53 : vector<32x4xf32> to vector<4x8x4xf32>
    %cst_28 = arith.constant dense<0xFF800000> : vector<8x4xf32>
    %55 = vector.multi_reduction <maximumf>, %54, %cst_28 [0] : vector<4x8x4xf32> to vector<8x4xf32>
    %56 = vector.shape_cast %55 : vector<8x4xf32> to vector<1x8x4xf32>
    %57 = vector.broadcast %56 : vector<1x8x4xf32> to vector<4x8x4xf32>
    %58 = arith.subf %54, %57 : vector<4x8x4xf32>
    %59 = math.exp %58 : vector<4x8x4xf32>
    %cst_29 = arith.constant dense<0.000000e+00> : vector<8x4xf32>
    %60 = vector.multi_reduction <add>, %59, %cst_29 [0] : vector<4x8x4xf32> to vector<8x4xf32>
    %61 = vector.shape_cast %60 : vector<8x4xf32> to vector<1x8x4xf32>
    %62 = tpu.reciprocal %61 {approx = true} : vector<1x8x4xf32> -> vector<1x8x4xf32>
    %63 = vector.broadcast %62 : vector<1x8x4xf32> to vector<4x8x4xf32>
    %64 = arith.mulf %59, %63 : vector<4x8x4xf32>
    %65 = vector.shape_cast %64 : vector<4x8x4xf32> to vector<32x4xf32>
    %c0_30 = arith.constant 0 : index
    %c0_31 = arith.constant 0 : index
    %66 = vector.load %arg5[%c0_30, %c0_31] : memref<4x256xf32, #tpu.memory_space<vmem>>, vector<4x256xf32>
    %cst_32 = arith.constant dense<0.000000e+00> : vector<32x256xf32>
    %67 = tpu.matmul %65, %66, %cst_32 {dimension_numbers = #tpu.dot_dimension_numbers<[1], [0], [0], [1], [0, 0, 1, 1], [], []>} : vector<32x4xf32>, vector<4x256xf32>, vector<32x256xf32> -> vector<32x256xf32>
    %68 = vector.shape_cast %67 : vector<32x256xf32> to vector<4x8x256xf32>
    %69 = arith.mulf %68, %39 : vector<4x8x256xf32>
    %cst_33 = arith.constant dense<0.000000e+00> : vector<8x256xf32>
    %70 = vector.multi_reduction <add>, %69, %cst_33 [0] : vector<4x8x256xf32> to vector<8x256xf32>
    %71 = arith.truncf %70 : vector<8x256xf32> to vector<8x256xbf16>
    %c0_34 = arith.constant 0 : index
    %c0_35 = arith.constant 0 : index
    %72 = vector.load %arg12[%c0_34, %c0_35] : memref<256x256xbf16, #tpu.memory_space<vmem>>, vector<256x256xbf16>
    %cst_36 = arith.constant dense<0.000000e+00> : vector<8x256xf32>
    %73 = tpu.matmul %71, %72, %cst_36 {dimension_numbers = #tpu.dot_dimension_numbers<[1], [0], [0], [1], [0, 0, 1, 1], [], []>} : vector<8x256xbf16>, vector<256x256xbf16>, vector<8x256xf32> -> vector<8x256xf32>
    %c0_37 = arith.constant 0 : index
    %c0_38 = arith.constant 0 : index
    %74 = vector.load %arg13[%c0_37, %c0_38] : memref<1x256xf32, #tpu.memory_space<vmem>>, vector<1x256xf32>
    %75 = vector.broadcast %74 : vector<1x256xf32> to vector<8x256xf32>
    %76 = arith.addf %73, %75 : vector<8x256xf32>
    %77 = arith.addf %76, %0 : vector<8x256xf32>
    %cst_39 = arith.constant dense<0.000000e+00> : vector<8xf32>
    %78 = vector.multi_reduction <add>, %77, %cst_39 [1] : vector<8x256xf32> to vector<8xf32>
    %79 = vector.shape_cast %78 : vector<8xf32> to vector<8x1xf32>
    %cst_40 = arith.constant 2.560000e+02 : f32
    %80 = vector.broadcast %cst_40 : f32 to vector<8x1xf32>
    %81 = arith.divf %79, %80 : vector<8x1xf32>
    %82 = vector.broadcast %81 : vector<8x1xf32> to vector<8x256xf32>
    %83 = arith.subf %77, %82 : vector<8x256xf32>
    %84 = arith.mulf %83, %83 : vector<8x256xf32>
    %cst_41 = arith.constant dense<0.000000e+00> : vector<8xf32>
    %85 = vector.multi_reduction <add>, %84, %cst_41 [1] : vector<8x256xf32> to vector<8xf32>
    %86 = vector.shape_cast %85 : vector<8xf32> to vector<8x1xf32>
    %cst_42 = arith.constant 2.560000e+02 : f32
    %87 = vector.broadcast %cst_42 : f32 to vector<8x1xf32>
    %88 = arith.divf %86, %87 : vector<8x1xf32>
    %89 = vector.broadcast %81 : vector<8x1xf32> to vector<8x256xf32>
    %90 = arith.subf %77, %89 : vector<8x256xf32>
    %cst_43 = arith.constant 9.99999974E-6 : f32
    %91 = vector.broadcast %cst_43 : f32 to vector<8x1xf32>
    %92 = arith.addf %88, %91 : vector<8x1xf32>
    %93 = math.rsqrt %92 : vector<8x1xf32>
    %94 = vector.broadcast %93 : vector<8x1xf32> to vector<8x256xf32>
    %95 = arith.mulf %90, %94 : vector<8x256xf32>
    %c0_44 = arith.constant 0 : index
    %c0_45 = arith.constant 0 : index
    %96 = vector.load %arg14[%c0_44, %c0_45] : memref<1x256xf32, #tpu.memory_space<vmem>>, vector<1x256xf32>
    %97 = vector.broadcast %96 : vector<1x256xf32> to vector<8x256xf32>
    %98 = arith.mulf %95, %97 : vector<8x256xf32>
    %c0_46 = arith.constant 0 : index
    %c0_47 = arith.constant 0 : index
    %99 = vector.load %arg15[%c0_46, %c0_47] : memref<1x256xf32, #tpu.memory_space<vmem>>, vector<1x256xf32>
    %100 = vector.broadcast %99 : vector<1x256xf32> to vector<8x256xf32>
    %101 = arith.addf %98, %100 : vector<8x256xf32>
    %102 = arith.truncf %101 : vector<8x256xf32> to vector<8x256xbf16>
    %c0_48 = arith.constant 0 : index
    %c0_49 = arith.constant 0 : index
    %103 = vector.load %arg16[%c0_48, %c0_49] : memref<256x1024xbf16, #tpu.memory_space<vmem>>, vector<256x1024xbf16>
    %cst_50 = arith.constant dense<0.000000e+00> : vector<8x1024xf32>
    %104 = tpu.matmul %102, %103, %cst_50 {dimension_numbers = #tpu.dot_dimension_numbers<[1], [0], [0], [1], [0, 0, 1, 1], [], []>} : vector<8x256xbf16>, vector<256x1024xbf16>, vector<8x1024xf32> -> vector<8x1024xf32>
    %c0_51 = arith.constant 0 : index
    %c0_52 = arith.constant 0 : index
    %105 = vector.load %arg17[%c0_51, %c0_52] : memref<1x1024xf32, #tpu.memory_space<vmem>>, vector<1x1024xf32>
    %106 = vector.broadcast %105 : vector<1x1024xf32> to vector<8x1024xf32>
    %107 = arith.addf %104, %106 : vector<8x1024xf32>
    %108 = vector.extract_strided_slice %107 {offsets = [0, 0], sizes = [8, 256], strides = [1, 1]} : vector<8x1024xf32> to vector<8x256xf32>
    %109 = arith.negf %108 : vector<8x256xf32>
    %110 = math.exp %109 : vector<8x256xf32>
    %cst_53 = arith.constant 1.000000e+00 : f32
    %111 = vector.broadcast %cst_53 : f32 to vector<8x256xf32>
    %112 = arith.addf %111, %110 : vector<8x256xf32>
    %113 = arith.divf %111, %112 : vector<8x256xf32>
    %114 = vector.extract_strided_slice %107 {offsets = [0, 256], sizes = [8, 256], strides = [1, 1]} : vector<8x1024xf32> to vector<8x256xf32>
    %115 = arith.negf %114 : vector<8x256xf32>
    %116 = math.exp %115 : vector<8x256xf32>
    %cst_54 = arith.constant 1.000000e+00 : f32
    %117 = vector.broadcast %cst_54 : f32 to vector<8x256xf32>
    %118 = arith.addf %117, %116 : vector<8x256xf32>
    %119 = arith.divf %117, %118 : vector<8x256xf32>
    %120 = vector.extract_strided_slice %107 {offsets = [0, 512], sizes = [8, 256], strides = [1, 1]} : vector<8x1024xf32> to vector<8x256xf32>
    %121 = arith.negf %120 : vector<8x256xf32>
    %122 = math.exp %121 : vector<8x256xf32>
    %cst_55 = arith.constant 1.000000e+00 : f32
    %123 = vector.broadcast %cst_55 : f32 to vector<8x256xf32>
    %124 = arith.addf %123, %122 : vector<8x256xf32>
    %125 = arith.divf %123, %124 : vector<8x256xf32>
    %126 = vector.extract_strided_slice %107 {offsets = [0, 768], sizes = [8, 256], strides = [1, 1]} : vector<8x1024xf32> to vector<8x256xf32>
    %127 = arith.negf %126 : vector<8x256xf32>
    %128 = math.exp %127 : vector<8x256xf32>
    %cst_56 = arith.constant 1.000000e+00 : f32
    %129 = vector.broadcast %cst_56 : f32 to vector<8x256xf32>
    %130 = arith.addf %129, %128 : vector<8x256xf32>
    %131 = arith.divf %129, %130 : vector<8x256xf32>
    %132 = arith.mulf %119, %2 : vector<8x256xf32>
    %133 = arith.mulf %113, %125 : vector<8x256xf32>
    %134 = arith.addf %132, %133 : vector<8x256xf32>
    %135 = math.tanh %134 : vector<8x256xf32>
    %136 = arith.mulf %131, %135 : vector<8x256xf32>
    %c0_57 = arith.constant 0 : index
    %c0_58 = arith.constant 0 : index
    %137 = vector.load %arg18[%c0_57, %c0_58] : memref<8x256xf32, #tpu.memory_space<vmem>>, vector<8x256xf32>
    tpu.vector_store %arg18[%c0_57, %c0_58], %136 {strides = array<i32>} : memref<8x256xf32, #tpu.memory_space<vmem>>, vector<8x256xf32>,
    %c0_59 = arith.constant 0 : index
    %c0_60 = arith.constant 0 : index
    %138 = vector.load %arg19[%c0_59, %c0_60] : memref<8x256xf32, #tpu.memory_space<vmem>>, vector<8x256xf32>
    tpu.vector_store %arg19[%c0_59, %c0_60], %134 {strides = array<i32>} : memref<8x256xf32, #tpu.memory_space<vmem>>, vector<8x256xf32>,
    return
  }
  func.func @transform_0(%arg0: i32) -> (i32, i32) {
    %c0_i32 = arith.constant 0 : i32
    %c0_i32_0 = arith.constant 0 : i32
    return %arg0, %c0_i32 : i32, i32
  }
  func.func @transform_1(%arg0: i32) -> (i32, i32, i32) {
    %c0_i32 = arith.constant 0 : i32
    %c0_i32_0 = arith.constant 0 : i32
    %c0_i32_1 = arith.constant 0 : i32
    return %c0_i32, %arg0, %c0_i32_0 : i32, i32, i32
  }
  func.func @transform_2(%arg0: i32) -> (i32, i32) {
    %c0_i32 = arith.constant 0 : i32
    %c0_i32_0 = arith.constant 0 : i32
    return %arg0, %c0_i32 : i32, i32
  }
  func.func @transform_3(%arg0: i32) -> (i32, i32) {
    %c0_i32 = arith.constant 0 : i32
    %c0_i32_0 = arith.constant 0 : i32
    %c0_i32_1 = arith.constant 0 : i32
    return %c0_i32, %c0_i32_0 : i32, i32
  }
  func.func @transform_4(%arg0: i32) -> (i32, i32) {
    %c0_i32 = arith.constant 0 : i32
    %c0_i32_0 = arith.constant 0 : i32
    %c0_i32_1 = arith.constant 0 : i32
    return %c0_i32, %c0_i32_0 : i32, i32
  }
  func.func @transform_5(%arg0: i32) -> (i32, i32) {
    %c0_i32 = arith.constant 0 : i32
    %c0_i32_0 = arith.constant 0 : i32
    %c0_i32_1 = arith.constant 0 : i32
    return %c0_i32, %c0_i32_0 : i32, i32
  }
  func.func @transform_6(%arg0: i32) -> (i32, i32) {
    %c0_i32 = arith.constant 0 : i32
    %c0_i32_0 = arith.constant 0 : i32
    %c0_i32_1 = arith.constant 0 : i32
    return %c0_i32, %c0_i32_0 : i32, i32
  }
  func.func @transform_7(%arg0: i32) -> (i32, i32) {
    %c0_i32 = arith.constant 0 : i32
    %c0_i32_0 = arith.constant 0 : i32
    %c0_i32_1 = arith.constant 0 : i32
    return %c0_i32, %c0_i32_0 : i32, i32
  }
  func.func @transform_8(%arg0: i32) -> (i32, i32) {
    %c0_i32 = arith.constant 0 : i32
    %c0_i32_0 = arith.constant 0 : i32
    %c0_i32_1 = arith.constant 0 : i32
    return %c0_i32, %c0_i32_0 : i32, i32
  }
  func.func @transform_9(%arg0: i32) -> (i32, i32) {
    %c0_i32 = arith.constant 0 : i32
    %c0_i32_0 = arith.constant 0 : i32
    %c0_i32_1 = arith.constant 0 : i32
    return %c0_i32, %c0_i32_0 : i32, i32
  }
  func.func @transform_10(%arg0: i32) -> (i32, i32) {
    %c0_i32 = arith.constant 0 : i32
    %c0_i32_0 = arith.constant 0 : i32
    %c0_i32_1 = arith.constant 0 : i32
    return %c0_i32, %c0_i32_0 : i32, i32
  }
  func.func @transform_11(%arg0: i32) -> (i32, i32) {
    %c0_i32 = arith.constant 0 : i32
    %c0_i32_0 = arith.constant 0 : i32
    %c0_i32_1 = arith.constant 0 : i32
    return %c0_i32, %c0_i32_0 : i32, i32
  }
  func.func @transform_12(%arg0: i32) -> (i32, i32) {
    %c0_i32 = arith.constant 0 : i32
    %c0_i32_0 = arith.constant 0 : i32
    %c0_i32_1 = arith.constant 0 : i32
    return %c0_i32, %c0_i32_0 : i32, i32
  }
  func.func @transform_13(%arg0: i32) -> (i32, i32) {
    %c0_i32 = arith.constant 0 : i32
    %c0_i32_0 = arith.constant 0 : i32
    %c0_i32_1 = arith.constant 0 : i32
    return %c0_i32, %c0_i32_0 : i32, i32
  }
  func.func @transform_14(%arg0: i32) -> (i32, i32) {
    %c0_i32 = arith.constant 0 : i32
    %c0_i32_0 = arith.constant 0 : i32
    %c0_i32_1 = arith.constant 0 : i32
    return %c0_i32, %c0_i32_0 : i32, i32
  }
  func.func @transform_15(%arg0: i32) -> (i32, i32) {
    %c0_i32 = arith.constant 0 : i32
    %c0_i32_0 = arith.constant 0 : i32
    %c0_i32_1 = arith.constant 0 : i32
    return %c0_i32, %c0_i32_0 : i32, i32
  }
  func.func @transform_16(%arg0: i32) -> (i32, i32) {
    %c0_i32 = arith.constant 0 : i32
    %c0_i32_0 = arith.constant 0 : i32
    %c0_i32_1 = arith.constant 0 : i32
    return %c0_i32, %c0_i32_0 : i32, i32
  }
  func.func @transform_17(%arg0: i32) -> (i32, i32) {
    %c0_i32 = arith.constant 0 : i32
    %c0_i32_0 = arith.constant 0 : i32
    return %arg0, %c0_i32 : i32, i32
  }
  func.func @transform_18(%arg0: i32) -> (i32, i32) {
    %c0_i32 = arith.constant 0 : i32
    %c0_i32_0 = arith.constant 0 : i32
    return %arg0, %c0_i32 : i32, i32
  }
}

module attributes {stable_mosaic.version = 11 : i64} {
  func.func @layer_kernel(%arg0: i32, %arg1: memref<8x256xf32, #tpu.memory_space<vmem>>, %arg2: memref<4x8x256xf32, #tpu.memory_space<vmem>>, %arg3: memref<8x256xf32, #tpu.memory_space<vmem>>, %arg4: memref<256x4xf32, #tpu.memory_space<vmem>>, %arg5: memref<4x256xf32, #tpu.memory_space<vmem>>, %arg6: memref<1x256xf32, #tpu.memory_space<vmem>>, %arg7: memref<1x256xf32, #tpu.memory_space<vmem>>, %arg8: memref<256x512xbf16, #tpu.memory_space<vmem>>, %arg9: memref<1x512xf32, #tpu.memory_space<vmem>>, %arg10: memref<256x256xbf16, #tpu.memory_space<vmem>>, %arg11: memref<1x256xf32, #tpu.memory_space<vmem>>, %arg12: memref<256x256xbf16, #tpu.memory_space<vmem>>, %arg13: memref<1x256xf32, #tpu.memory_space<vmem>>, %arg14: memref<1x256xf32, #tpu.memory_space<vmem>>, %arg15: memref<1x256xf32, #tpu.memory_space<vmem>>, %arg16: memref<256x1024xbf16, #tpu.memory_space<vmem>>, %arg17: memref<1x1024xf32, #tpu.memory_space<vmem>>, %arg18: memref<8x256xf32, #tpu.memory_space<vmem>>, %arg19: memref<8x256xf32, #tpu.memory_space<vmem>>) attributes {dimension_semantics = [#tpu.dimension_semantics<parallel>], iteration_bounds = array<i64: 1>, scalar_prefetch = 0 : i64, scratch_operands = 0 : i64, tpu.core_type = #tpu.core_type<tc>, window_params = [{transform_indices = @transform_0, window_bounds = array<i64: 8, 256>}, {transform_indices = @transform_1, window_bounds = array<i64: 4, 8, 256>}, {transform_indices = @transform_2, window_bounds = array<i64: 8, 256>}, {pipeline_mode = #tpu.pipeline_mode<synchronous>, transform_indices = @transform_3, window_bounds = array<i64: 256, 4>}, {pipeline_mode = #tpu.pipeline_mode<synchronous>, transform_indices = @transform_4, window_bounds = array<i64: 4, 256>}, {pipeline_mode = #tpu.pipeline_mode<synchronous>, transform_indices = @transform_5, window_bounds = array<i64: 1, 256>}, {pipeline_mode = #tpu.pipeline_mode<synchronous>, transform_indices = @transform_6, window_bounds = array<i64: 1, 256>}, {pipeline_mode = #tpu.pipeline_mode<synchronous>, transform_indices = @transform_7, window_bounds = array<i64: 256, 512>}, {pipeline_mode = #tpu.pipeline_mode<synchronous>, transform_indices = @transform_8, window_bounds = array<i64: 1, 512>}, {pipeline_mode = #tpu.pipeline_mode<synchronous>, transform_indices = @transform_9, window_bounds = array<i64: 256, 256>}, {pipeline_mode = #tpu.pipeline_mode<synchronous>, transform_indices = @transform_10, window_bounds = array<i64: 1, 256>}, {pipeline_mode = #tpu.pipeline_mode<synchronous>, transform_indices = @transform_11, window_bounds = array<i64: 256, 256>}, {pipeline_mode = #tpu.pipeline_mode<synchronous>, transform_indices = @transform_12, window_bounds = array<i64: 1, 256>}, {pipeline_mode = #tpu.pipeline_mode<synchronous>, transform_indices = @transform_13, window_bounds = array<i64: 1, 256>}, {pipeline_mode = #tpu.pipeline_mode<synchronous>, transform_indices = @transform_14, window_bounds = array<i64: 1, 256>}, {pipeline_mode = #tpu.pipeline_mode<synchronous>, transform_indices = @transform_15, window_bounds = array<i64: 256, 1024>}, {pipeline_mode = #tpu.pipeline_mode<synchronous>, transform_indices = @transform_16, window_bounds = array<i64: 1, 1024>}, {transform_indices = @transform_17, window_bounds = array<i64: 8, 256>}, {transform_indices = @transform_18, window_bounds = array<i64: 8, 256>}]} {
    %c0 = arith.constant 0 : index
    %c0_0 = arith.constant 0 : index
    %0 = vector.load %arg1[%c0, %c0_0] : memref<8x256xf32, #tpu.memory_space<vmem>>, vector<8x256xf32>
    %c0_1 = arith.constant 0 : index
    %c0_2 = arith.constant 0 : index
    %c0_3 = arith.constant 0 : index
    %1 = vector.load %arg2[%c0_1, %c0_2, %c0_3] : memref<4x8x256xf32, #tpu.memory_space<vmem>>, vector<4x8x256xf32>
    %c0_4 = arith.constant 0 : index
    %c0_5 = arith.constant 0 : index
    %2 = vector.load %arg3[%c0_4, %c0_5] : memref<8x256xf32, #tpu.memory_space<vmem>>, vector<8x256xf32>
    %cst = arith.constant dense<0.000000e+00> : vector<4x8xf32>
    %3 = vector.multi_reduction <add>, %1, %cst [2] : vector<4x8x256xf32> to vector<4x8xf32>
    %4 = vector.shape_cast %3 : vector<4x8xf32> to vector<4x8x1xf32>
    %cst_6 = arith.constant 2.560000e+02 : f32
    %5 = vector.broadcast %cst_6 : f32 to vector<4x8x1xf32>
    %6 = arith.divf %4, %5 : vector<4x8x1xf32>
    %7 = vector.broadcast %6 : vector<4x8x1xf32> to vector<4x8x256xf32>
    %8 = arith.subf %1, %7 : vector<4x8x256xf32>
    %9 = arith.mulf %8, %8 : vector<4x8x256xf32>
    %cst_7 = arith.constant dense<0.000000e+00> : vector<4x8xf32>
    %10 = vector.multi_reduction <add>, %9, %cst_7 [2] : vector<4x8x256xf32> to vector<4x8xf32>
    %11 = vector.shape_cast %10 : vector<4x8xf32> to vector<4x8x1xf32>
    %cst_8 = arith.constant 2.560000e+02 : f32
    %12 = vector.broadcast %cst_8 : f32 to vector<4x8x1xf32>
    %13 = arith.divf %11, %12 : vector<4x8x1xf32>
    %14 = vector.broadcast %6 : vector<4x8x1xf32> to vector<4x8x256xf32>
    %15 = arith.subf %1, %14 : vector<4x8x256xf32>
    %cst_9 = arith.constant 9.99999974E-6 : f32
    %16 = vector.broadcast %cst_9 : f32 to vector<4x8x1xf32>
    %17 = arith.addf %13, %16 : vector<4x8x1xf32>
    %18 = math.rsqrt %17 : vector<4x8x1xf32>
    %19 = vector.broadcast %18 : vector<4x8x1xf32> to vector<4x8x256xf32>
    %20 = arith.mulf %15, %19 : vector<4x8x256xf32>
    %c0_10 = arith.constant 0 : index
    %c0_11 = arith.constant 0 : index
    %21 = vector.load %arg6[%c0_10, %c0_11] : memref<1x256xf32, #tpu.memory_space<vmem>>, vector<1x256xf32>
    %22 = vector.shape_cast %21 : vector<1x256xf32> to vector<1x1x256xf32>
    %23 = vector.broadcast %22 : vector<1x1x256xf32> to vector<4x8x256xf32>
    %24 = arith.mulf %20, %23 : vector<4x8x256xf32>
    %c0_12 = arith.constant 0 : index
    %c0_13 = arith.constant 0 : index
    %25 = vector.load %arg7[%c0_12, %c0_13] : memref<1x256xf32, #tpu.memory_space<vmem>>, vector<1x256xf32>
    %26 = vector.shape_cast %25 : vector<1x256xf32> to vector<1x1x256xf32>
    %27 = vector.broadcast %26 : vector<1x1x256xf32> to vector<4x8x256xf32>
    %28 = arith.addf %24, %27 : vector<4x8x256xf32>
    %29 = vector.shape_cast %28 : vector<4x8x256xf32> to vector<32x256xf32>
    %30 = arith.truncf %29 : vector<32x256xf32> to vector<32x256xbf16>
    %c0_14 = arith.constant 0 : index
    %c0_15 = arith.constant 0 : index
    %31 = vector.load %arg8[%c0_14, %c0_15] : memref<256x512xbf16, #tpu.memory_space<vmem>>, vector<256x512xbf16>
    %cst_16 = arith.constant dense<0.000000e+00> : vector<32x512xf32>
    %32 = tpu.matmul %30, %31, %cst_16 {dimension_numbers = #tpu.dot_dimension_numbers<[1], [0], [0], [1], [0, 0, 1, 1], [], []>} : vector<32x256xbf16>, vector<256x512xbf16>, vector<32x512xf32> -> vector<32x512xf32>
    %c0_17 = arith.constant 0 : index
    %c0_18 = arith.constant 0 : index
    %33 = vector.load %arg9[%c0_17, %c0_18] : memref<1x512xf32, #tpu.memory_space<vmem>>, vector<1x512xf32>
    %34 = vector.broadcast %33 : vector<1x512xf32> to vector<32x512xf32>
    %35 = arith.addf %32, %34 : vector<32x512xf32>
    %36 = vector.extract_strided_slice %35 {offsets = [0, 0], sizes = [32, 256], strides = [1, 1]} : vector<32x512xf32> to vector<32x256xf32>
    %37 = vector.shape_cast %36 : vector<32x256xf32> to vector<4x8x256xf32>
    %38 = vector.extract_strided_slice %35 {offsets = [0, 256], sizes = [32, 256], strides = [1, 1]} : vector<32x512xf32> to vector<32x256xf32>
    %39 = vector.shape_cast %38 : vector<32x256xf32> to vector<4x8x256xf32>
    %40 = arith.truncf %0 : vector<8x256xf32> to vector<8x256xbf16>
    %c0_19 = arith.constant 0 : index
    %c0_20 = arith.constant 0 : index
    %41 = vector.load %arg10[%c0_19, %c0_20] : memref<256x256xbf16, #tpu.memory_space<vmem>>, vector<256x256xbf16>
    %cst_21 = arith.constant dense<0.000000e+00> : vector<8x256xf32>
    %42 = tpu.matmul %40, %41, %cst_21 {dimension_numbers = #tpu.dot_dimension_numbers<[1], [0], [0], [1], [0, 0, 1, 1], [], []>} : vector<8x256xbf16>, vector<256x256xbf16>, vector<8x256xf32> -> vector<8x256xf32>
    %c0_22 = arith.constant 0 : index
    %c0_23 = arith.constant 0 : index
    %43 = vector.load %arg11[%c0_22, %c0_23] : memref<1x256xf32, #tpu.memory_space<vmem>>, vector<1x256xf32>
    %44 = vector.broadcast %43 : vector<1x256xf32> to vector<8x256xf32>
    %45 = arith.addf %42, %44 : vector<8x256xf32>
    %cst_24 = arith.constant 1.250000e-01 : f32
    %46 = vector.broadcast %cst_24 : f32 to vector<8x256xf32>
    %47 = arith.mulf %45, %46 : vector<8x256xf32>
    %48 = vector.shape_cast %47 : vector<8x256xf32> to vector<1x8x256xf32>
    %49 = vector.broadcast %48 : vector<1x8x256xf32> to vector<4x8x256xf32>
    %50 = arith.mulf %49, %37 : vector<4x8x256xf32>
    %51 = vector.shape_cast %50 : vector<4x8x256xf32> to vector<32x256xf32>
    %c0_25 = arith.constant 0 : index
    %c0_26 = arith.constant 0 : index
    %52 = vector.load %arg4[%c0_25, %c0_26] : memref<256x4xf32, #tpu.memory_space<vmem>>, vector<256x4xf32>
    %cst_27 = arith.constant dense<0.000000e+00> : vector<32x4xf32>
    %53 = tpu.matmul %51, %52, %cst_27 {dimension_numbers = #tpu.dot_dimension_numbers<[1], [0], [0], [1], [0, 0, 1, 1], [], []>} : vector<32x256xf32>, vector<256x4xf32>, vector<32x4xf32> -> vector<32x4xf32>
    %54 = vector.shape_cast %53 : vector<32x4xf32> to vector<4x8x4xf32>
    %cst_28 = arith.constant dense<0xFF800000> : vector<8x4xf32>
    %55 = vector.multi_reduction <maximumf>, %54, %cst_28 [0] : vector<4x8x4xf32> to vector<8x4xf32>
    %56 = vector.shape_cast %55 : vector<8x4xf32> to vector<1x8x4xf32>
    %57 = vector.broadcast %56 : vector<1x8x4xf32> to vector<4x8x4xf32>
    %58 = arith.subf %54, %57 : vector<4x8x4xf32>
    %59 = math.exp %58 : vector<4x8x4xf32>
    %cst_29 = arith.constant dense<0.000000e+00> : vector<8x4xf32>
    %60 = vector.multi_reduction <add>, %59, %cst_29 [0] : vector<4x8x4xf32> to vector<8x4xf32>
    %61 = vector.shape_cast %60 : vector<8x4xf32> to vector<1x8x4xf32>
    %62 = tpu.reciprocal %61 {approx = true} : vector<1x8x4xf32> -> vector<1x8x4xf32>
    %63 = vector.broadcast %62 : vector<1x8x4xf32> to vector<4x8x4xf32>
    %64 = arith.mulf %59, %63 : vector<4x8x4xf32>
    %65 = vector.shape_cast %64 : vector<4x8x4xf32> to vector<32x4xf32>
    %c0_30 = arith.constant 0 : index
    %c0_31 = arith.constant 0 : index
    %66 = vector.load %arg5[%c0_30, %c0_31] : memref<4x256xf32, #tpu.memory_space<vmem>>, vector<4x256xf32>
    %cst_32 = arith.constant dense<0.000000e+00> : vector<32x256xf32>
    %67 = tpu.matmul %65, %66, %cst_32 {dimension_numbers = #tpu.dot_dimension_numbers<[1], [0], [0], [1], [0, 0, 1, 1], [], []>} : vector<32x4xf32>, vector<4x256xf32>, vector<32x256xf32> -> vector<32x256xf32>
    %68 = vector.shape_cast %67 : vector<32x256xf32> to vector<4x8x256xf32>
    %69 = arith.mulf %68, %39 : vector<4x8x256xf32>
    %cst_33 = arith.constant dense<0.000000e+00> : vector<8x256xf32>
    %70 = vector.multi_reduction <add>, %69, %cst_33 [0] : vector<4x8x256xf32> to vector<8x256xf32>
    %71 = arith.truncf %70 : vector<8x256xf32> to vector<8x256xbf16>
    %c0_34 = arith.constant 0 : index
    %c0_35 = arith.constant 0 : index
    %72 = vector.load %arg12[%c0_34, %c0_35] : memref<256x256xbf16, #tpu.memory_space<vmem>>, vector<256x256xbf16>
    %cst_36 = arith.constant dense<0.000000e+00> : vector<8x256xf32>
    %73 = tpu.matmul %71, %72, %cst_36 {dimension_numbers = #tpu.dot_dimension_numbers<[1], [0], [0], [1], [0, 0, 1, 1], [], []>} : vector<8x256xbf16>, vector<256x256xbf16>, vector<8x256xf32> -> vector<8x256xf32>
    %c0_37 = arith.constant 0 : index
    %c0_38 = arith.constant 0 : index
    %74 = vector.load %arg13[%c0_37, %c0_38] : memref<1x256xf32, #tpu.memory_space<vmem>>, vector<1x256xf32>
    %75 = vector.broadcast %74 : vector<1x256xf32> to vector<8x256xf32>
    %76 = arith.addf %73, %75 : vector<8x256xf32>
    %77 = arith.addf %76, %0 : vector<8x256xf32>
    %cst_39 = arith.constant dense<0.000000e+00> : vector<8xf32>
    %78 = vector.multi_reduction <add>, %77, %cst_39 [1] : vector<8x256xf32> to vector<8xf32>
    %79 = vector.shape_cast %78 : vector<8xf32> to vector<8x1xf32>
    %cst_40 = arith.constant 2.560000e+02 : f32
    %80 = vector.broadcast %cst_40 : f32 to vector<8x1xf32>
    %81 = arith.divf %79, %80 : vector<8x1xf32>
    %82 = vector.broadcast %81 : vector<8x1xf32> to vector<8x256xf32>
    %83 = arith.subf %77, %82 : vector<8x256xf32>
    %84 = arith.mulf %83, %83 : vector<8x256xf32>
    %cst_41 = arith.constant dense<0.000000e+00> : vector<8xf32>
    %85 = vector.multi_reduction <add>, %84, %cst_41 [1] : vector<8x256xf32> to vector<8xf32>
    %86 = vector.shape_cast %85 : vector<8xf32> to vector<8x1xf32>
    %cst_42 = arith.constant 2.560000e+02 : f32
    %87 = vector.broadcast %cst_42 : f32 to vector<8x1xf32>
    %88 = arith.divf %86, %87 : vector<8x1xf32>
    %89 = vector.broadcast %81 : vector<8x1xf32> to vector<8x256xf32>
    %90 = arith.subf %77, %89 : vector<8x256xf32>
    %cst_43 = arith.constant 9.99999974E-6 : f32
    %91 = vector.broadcast %cst_43 : f32 to vector<8x1xf32>
    %92 = arith.addf %88, %91 : vector<8x1xf32>
    %93 = math.rsqrt %92 : vector<8x1xf32>
    %94 = vector.broadcast %93 : vector<8x1xf32> to vector<8x256xf32>
    %95 = arith.mulf %90, %94 : vector<8x256xf32>
    %c0_44 = arith.constant 0 : index
    %c0_45 = arith.constant 0 : index
    %96 = vector.load %arg14[%c0_44, %c0_45] : memref<1x256xf32, #tpu.memory_space<vmem>>, vector<1x256xf32>
    %97 = vector.broadcast %96 : vector<1x256xf32> to vector<8x256xf32>
    %98 = arith.mulf %95, %97 : vector<8x256xf32>
    %c0_46 = arith.constant 0 : index
    %c0_47 = arith.constant 0 : index
    %99 = vector.load %arg15[%c0_46, %c0_47] : memref<1x256xf32, #tpu.memory_space<vmem>>, vector<1x256xf32>
    %100 = vector.broadcast %99 : vector<1x256xf32> to vector<8x256xf32>
    %101 = arith.addf %98, %100 : vector<8x256xf32>
    %102 = arith.truncf %101 : vector<8x256xf32> to vector<8x256xbf16>
    %c0_48 = arith.constant 0 : index
    %c0_49 = arith.constant 0 : index
    %103 = vector.load %arg16[%c0_48, %c0_49] : memref<256x1024xbf16, #tpu.memory_space<vmem>>, vector<256x1024xbf16>
    %cst_50 = arith.constant dense<0.000000e+00> : vector<8x1024xf32>
    %104 = tpu.matmul %102, %103, %cst_50 {dimension_numbers = #tpu.dot_dimension_numbers<[1], [0], [0], [1], [0, 0, 1, 1], [], []>} : vector<8x256xbf16>, vector<256x1024xbf16>, vector<8x1024xf32> -> vector<8x1024xf32>
    %c0_51 = arith.constant 0 : index
    %c0_52 = arith.constant 0 : index
    %105 = vector.load %arg17[%c0_51, %c0_52] : memref<1x1024xf32, #tpu.memory_space<vmem>>, vector<1x1024xf32>
    %106 = vector.broadcast %105 : vector<1x1024xf32> to vector<8x1024xf32>
    %107 = arith.addf %104, %106 : vector<8x1024xf32>
    %108 = vector.extract_strided_slice %107 {offsets = [0, 0], sizes = [8, 256], strides = [1, 1]} : vector<8x1024xf32> to vector<8x256xf32>
    %109 = arith.negf %108 : vector<8x256xf32>
    %110 = math.exp %109 : vector<8x256xf32>
    %cst_53 = arith.constant 1.000000e+00 : f32
    %111 = vector.broadcast %cst_53 : f32 to vector<8x256xf32>
    %112 = arith.addf %111, %110 : vector<8x256xf32>
    %113 = arith.divf %111, %112 : vector<8x256xf32>
    %114 = vector.extract_strided_slice %107 {offsets = [0, 256], sizes = [8, 256], strides = [1, 1]} : vector<8x1024xf32> to vector<8x256xf32>
    %115 = arith.negf %114 : vector<8x256xf32>
    %116 = math.exp %115 : vector<8x256xf32>
    %cst_54 = arith.constant 1.000000e+00 : f32
    %117 = vector.broadcast %cst_54 : f32 to vector<8x256xf32>
    %118 = arith.addf %117, %116 : vector<8x256xf32>
    %119 = arith.divf %117, %118 : vector<8x256xf32>
    %120 = vector.extract_strided_slice %107 {offsets = [0, 512], sizes = [8, 256], strides = [1, 1]} : vector<8x1024xf32> to vector<8x256xf32>
    %121 = arith.negf %120 : vector<8x256xf32>
    %122 = math.exp %121 : vector<8x256xf32>
    %cst_55 = arith.constant 1.000000e+00 : f32
    %123 = vector.broadcast %cst_55 : f32 to vector<8x256xf32>
    %124 = arith.addf %123, %122 : vector<8x256xf32>
    %125 = arith.divf %123, %124 : vector<8x256xf32>
    %126 = vector.extract_strided_slice %107 {offsets = [0, 768], sizes = [8, 256], strides = [1, 1]} : vector<8x1024xf32> to vector<8x256xf32>
    %127 = arith.negf %126 : vector<8x256xf32>
    %128 = math.exp %127 : vector<8x256xf32>
    %cst_56 = arith.constant 1.000000e+00 : f32
    %129 = vector.broadcast %cst_56 : f32 to vector<8x256xf32>
    %130 = arith.addf %129, %128 : vector<8x256xf32>
    %131 = arith.divf %129, %130 : vector<8x256xf32>
    %132 = arith.mulf %119, %2 : vector<8x256xf32>
    %133 = arith.mulf %113, %125 : vector<8x256xf32>
    %134 = arith.addf %132, %133 : vector<8x256xf32>
    %135 = math.tanh %134 : vector<8x256xf32>
    %136 = arith.mulf %131, %135 : vector<8x256xf32>
    %c0_57 = arith.constant 0 : index
    %c0_58 = arith.constant 0 : index
    %137 = vector.load %arg18[%c0_57, %c0_58] : memref<8x256xf32, #tpu.memory_space<vmem>>, vector<8x256xf32>
    tpu.vector_store %arg18[%c0_57, %c0_58], %136 {strides = array<i32>} : memref<8x256xf32, #tpu.memory_space<vmem>>, vector<8x256xf32>,
    %c0_59 = arith.constant 0 : index
    %c0_60 = arith.constant 0 : index
    %138 = vector.load %arg19[%c0_59, %c0_60] : memref<8x256xf32, #tpu.memory_space<vmem>>, vector<8x256xf32>
    tpu.vector_store %arg19[%c0_59, %c0_60], %134 {strides = array<i32>} : memref<8x256xf32, #tpu.memory_space<vmem>>, vector<8x256xf32>,
    return
  }
  func.func @transform_0(%arg0: i32) -> (i32, i32) {
    %c0_i32 = arith.constant 0 : i32
    %c0_i32_0 = arith.constant 0 : i32
    return %arg0, %c0_i32 : i32, i32
  }
  func.func @transform_1(%arg0: i32) -> (i32, i32, i32) {
    %c0_i32 = arith.constant 0 : i32
    %c0_i32_0 = arith.constant 0 : i32
    %c0_i32_1 = arith.constant 0 : i32
    return %c0_i32, %arg0, %c0_i32_0 : i32, i32, i32
  }
  func.func @transform_2(%arg0: i32) -> (i32, i32) {
    %c0_i32 = arith.constant 0 : i32
    %c0_i32_0 = arith.constant 0 : i32
    return %arg0, %c0_i32 : i32, i32
  }
  func.func @transform_3(%arg0: i32) -> (i32, i32) {
    %c0_i32 = arith.constant 0 : i32
    %c0_i32_0 = arith.constant 0 : i32
    %c0_i32_1 = arith.constant 0 : i32
    return %c0_i32, %c0_i32_0 : i32, i32
  }
  func.func @transform_4(%arg0: i32) -> (i32, i32) {
    %c0_i32 = arith.constant 0 : i32
    %c0_i32_0 = arith.constant 0 : i32
    %c0_i32_1 = arith.constant 0 : i32
    return %c0_i32, %c0_i32_0 : i32, i32
  }
  func.func @transform_5(%arg0: i32) -> (i32, i32) {
    %c0_i32 = arith.constant 0 : i32
    %c0_i32_0 = arith.constant 0 : i32
    %c0_i32_1 = arith.constant 0 : i32
    return %c0_i32, %c0_i32_0 : i32, i32
  }
  func.func @transform_6(%arg0: i32) -> (i32, i32) {
    %c0_i32 = arith.constant 0 : i32
    %c0_i32_0 = arith.constant 0 : i32
    %c0_i32_1 = arith.constant 0 : i32
    return %c0_i32, %c0_i32_0 : i32, i32
  }
  func.func @transform_7(%arg0: i32) -> (i32, i32) {
    %c0_i32 = arith.constant 0 : i32
    %c0_i32_0 = arith.constant 0 : i32
    %c0_i32_1 = arith.constant 0 : i32
    return %c0_i32, %c0_i32_0 : i32, i32
  }
  func.func @transform_8(%arg0: i32) -> (i32, i32) {
    %c0_i32 = arith.constant 0 : i32
    %c0_i32_0 = arith.constant 0 : i32
    %c0_i32_1 = arith.constant 0 : i32
    return %c0_i32, %c0_i32_0 : i32, i32
  }
  func.func @transform_9(%arg0: i32) -> (i32, i32) {
    %c0_i32 = arith.constant 0 : i32
    %c0_i32_0 = arith.constant 0 : i32
    %c0_i32_1 = arith.constant 0 : i32
    return %c0_i32, %c0_i32_0 : i32, i32
  }
  func.func @transform_10(%arg0: i32) -> (i32, i32) {
    %c0_i32 = arith.constant 0 : i32
    %c0_i32_0 = arith.constant 0 : i32
    %c0_i32_1 = arith.constant 0 : i32
    return %c0_i32, %c0_i32_0 : i32, i32
  }
  func.func @transform_11(%arg0: i32) -> (i32, i32) {
    %c0_i32 = arith.constant 0 : i32
    %c0_i32_0 = arith.constant 0 : i32
    %c0_i32_1 = arith.constant 0 : i32
    return %c0_i32, %c0_i32_0 : i32, i32
  }
  func.func @transform_12(%arg0: i32) -> (i32, i32) {
    %c0_i32 = arith.constant 0 : i32
    %c0_i32_0 = arith.constant 0 : i32
    %c0_i32_1 = arith.constant 0 : i32
    return %c0_i32, %c0_i32_0 : i32, i32
  }
  func.func @transform_13(%arg0: i32) -> (i32, i32) {
    %c0_i32 = arith.constant 0 : i32
    %c0_i32_0 = arith.constant 0 : i32
    %c0_i32_1 = arith.constant 0 : i32
    return %c0_i32, %c0_i32_0 : i32, i32
  }
  func.func @transform_14(%arg0: i32) -> (i32, i32) {
    %c0_i32 = arith.constant 0 : i32
    %c0_i32_0 = arith.constant 0 : i32
    %c0_i32_1 = arith.constant 0 : i32
    return %c0_i32, %c0_i32_0 : i32, i32
  }
  func.func @transform_15(%arg0: i32) -> (i32, i32) {
    %c0_i32 = arith.constant 0 : i32
    %c0_i32_0 = arith.constant 0 : i32
    %c0_i32_1 = arith.constant 0 : i32
    return %c0_i32, %c0_i32_0 : i32, i32
  }
  func.func @transform_16(%arg0: i32) -> (i32, i32) {
    %c0_i32 = arith.constant 0 : i32
    %c0_i32_0 = arith.constant 0 : i32
    %c0_i32_1 = arith.constant 0 : i32
    return %c0_i32, %c0_i32_0 : i32, i32
  }
  func.func @transform_17(%arg0: i32) -> (i32, i32) {
    %c0_i32 = arith.constant 0 : i32
    %c0_i32_0 = arith.constant 0 : i32
    return %arg0, %c0_i32 : i32, i32
  }
  func.func @transform_18(%arg0: i32) -> (i32, i32) {
    %c0_i32 = arith.constant 0 : i32
    %c0_i32_0 = arith.constant 0 : i32
    return %arg0, %c0_i32 : i32, i32
  }
}

</mosaic_0001>

<llo_original>
// kernel: tpu_custom_call.1
$region0: #{tpu_custom_call.1}
  #allocation0 [shape = 'u32[]', space=smem, size = 0x4, offset = 0x4, fixed_abs, tag = 'smem constant byte address 0x4 - core index']
  #allocation1 [shape = 'u32[144,128]{1,0:T(1,128)}', space=vmem, size = 0x12000, scoped, tag = 'internal scratch']
  %s0 = inlined_call_operand.hbm [shape: f32[8,256], index: 0, kind: input, shape index: {}]
  %s1 = inlined_call_operand.hbm [shape: f32[4,8,256], index: 1, kind: input, shape index: {}]
  %s2 = inlined_call_operand.hbm [shape: f32[8,256], index: 2, kind: input, shape index: {}]
  %s3 = inlined_call_operand.hbm [shape: f32[256,4], index: 3, kind: input, shape index: {}]
  %s4 = inlined_call_operand.hbm [shape: f32[4,256], index: 4, kind: input, shape index: {}]
  %s5 = inlined_call_operand.hbm [shape: f32[1,256], index: 5, kind: input, shape index: {}]
  %s6 = inlined_call_operand.hbm [shape: f32[1,256], index: 6, kind: input, shape index: {}]
  %s7 = inlined_call_operand.hbm [shape: bf16[256,512], index: 7, kind: input, shape index: {}]
  %s8 = inlined_call_operand.hbm [shape: f32[1,512], index: 8, kind: input, shape index: {}]
  %s9 = inlined_call_operand.hbm [shape: bf16[256,256], index: 9, kind: input, shape index: {}]
  %s10 = inlined_call_operand.hbm [shape: f32[1,256], index: 10, kind: input, shape index: {}]
  %s11 = inlined_call_operand.hbm [shape: bf16[256,256], index: 11, kind: input, shape index: {}]
  %s12 = inlined_call_operand.hbm [shape: f32[1,256], index: 12, kind: input, shape index: {}]
  %s13 = inlined_call_operand.hbm [shape: f32[1,256], index: 13, kind: input, shape index: {}]
  %s14 = inlined_call_operand.hbm [shape: f32[1,256], index: 14, kind: input, shape index: {}]
  %s15 = inlined_call_operand.hbm [shape: bf16[256,1024], index: 15, kind: input, shape index: {}]
  %s16 = inlined_call_operand.hbm [shape: f32[1,1024], index: 16, kind: input, shape index: {}]
  %s17 = inlined_call_operand.hbm [shape: f32[8,256], index: 17, kind: output, shape index: {0}]
  %s18 = inlined_call_operand.hbm [shape: f32[8,256], index: 18, kind: output, shape index: {1}]
  %19 = xla_tuple %s17, %s18
  %s20 = sld [smem:[#allocation0]]
  $region154: #{tpu_custom_call.1} parent=0
    _
  %s22 = ssub.s32 1, %s20
  %s23 = scalar_select 0, %s22, %s20
  $region1: #{tpu_custom_call.1} parent=0
    #allocation2 [shape = 'u8[8192]{0}', space=vmem, size = 0x2000, scoped, tag = 'input window, operand 0, single buffered']
    #allocation3 [shape = 's32[1]{0}', space=sflag, size = 0x4, scoped, tag = 'scoped memory for tpu_custom_call.1']
    #allocation4 [shape = 's32[1]{0}', space=sflag, size = 0x4, scoped, tag = 'scoped memory for tpu_custom_call.1']
    #allocation5 [shape = 'u8[32768]{0}', space=vmem, size = 0x8000, scoped, tag = 'input window, operand 1, single buffered']
    #allocation6 [shape = 's32[1]{0}', space=sflag, size = 0x4, scoped, tag = 'scoped memory for tpu_custom_call.1']
    #allocation7 [shape = 'u8[8192]{0}', space=vmem, size = 0x2000, scoped, tag = 'input window, operand 2, single buffered']
    #allocation8 [shape = 'u8[131072]{0}', space=vmem, size = 0x20000, scoped, tag = 'input window, operand 3, single buffered']
    #allocation9 [shape = 's32[1]{0}', space=sflag, size = 0x4, scoped, tag = 'scoped memory for tpu_custom_call.1']
    #allocation10 [shape = 'u8[4096]{0}', space=vmem, size = 0x1000, scoped, tag = 'input window, operand 4, single buffered']
    #allocation11 [shape = 'u8[1024]{0}', space=vmem, size = 0x400, scoped, tag = 'input window, operand 5, single buffered']
    #allocation12 [shape = 's32[1]{0}', space=sflag, size = 0x4, scoped, tag = 'scoped memory for tpu_custom_call.1']
    #allocation13 [shape = 'u8[1024]{0}', space=vmem, size = 0x400, scoped, tag = 'input window, operand 6, single buffered']
    #allocation14 [shape = 'u8[262144]{0}', space=vmem, size = 0x40000, scoped, tag = 'input window, operand 7, single buffered']
    #allocation15 [shape = 's32[1]{0}', space=sflag, size = 0x4, scoped, tag = 'scoped memory for tpu_custom_call.1']
    #allocation16 [shape = 'u8[2048]{0}', space=vmem, size = 0x800, scoped, tag = 'input window, operand 8, single buffered']
    #allocation17 [shape = 'u8[131072]{0}', space=vmem, size = 0x20000, scoped, tag = 'input window, operand 9, single buffered']
    #allocation18 [shape = 's32[1]{0}', space=sflag, size = 0x4, scoped, tag = 'scoped memory for tpu_custom_call.1']
    #allocation19 [shape = 'u8[1024]{0}', space=vmem, size = 0x400, scoped, tag = 'input window, operand 10, single buffered']
    #allocation20 [shape = 'u8[131072]{0}', space=vmem, size = 0x20000, scoped, tag = 'input window, operand 11, single buffered']
    #allocation21 [shape = 's32[1]{0}', space=sflag, size = 0x4, scoped, tag = 'scoped memory for tpu_custom_call.1']
    #allocation22 [shape = 'u8[1024]{0}', space=vmem, size = 0x400, scoped, tag = 'input window, operand 12, single buffered']
    #allocation23 [shape = 'u8[1024]{0}', space=vmem, size = 0x400, scoped, tag = 'input window, operand 13, single buffered']
    #allocation24 [shape = 's32[1]{0}', space=sflag, size = 0x4, scoped, tag = 'scoped memory for tpu_custom_call.1']
    #allocation25 [shape = 'u8[1024]{0}', space=vmem, size = 0x400, scoped, tag = 'input window, operand 14, single buffered']
    #allocation26 [shape = 'u8[524288]{0}', space=vmem, size = 0x80000, scoped, tag = 'input window, operand 15, single buffered']
    #allocation27 [shape = 's32[1]{0}', space=sflag, size = 0x4, scoped, tag = 'scoped memory for tpu_custom_call.1']
    #allocation28 [shape = 'u8[4096]{0}', space=vmem, size = 0x1000, scoped, tag = 'input window, operand 16, single buffered']
    #allocation29 [shape = 'u8[8192]{0}', space=vmem, size = 0x2000, scoped, tag = 'output window, operand 0, single buffered']
    #allocation30 [shape = 'u8[8192]{0}', space=vmem, size = 0x2000, scoped, tag = 'output window, operand 1, single buffered']
    #allocation31 [shape = 's32[1]{0}', space=sflag, size = 0x4, scoped, tag = 'scoped memory for tpu_custom_call.1']
    %24 = vsyncpa [#allocation3], 0
    %25 = vsyncpa [#allocation6], 0
    %26 = vsyncpa [#allocation9], 0
    %27 = vsyncpa [#allocation12], 0
    %28 = vsyncpa [#allocation15], 0
    %29 = vsyncpa [#allocation18], 0
    %30 = vsyncpa [#allocation21], 0
    %31 = vsyncpa [#allocation24], 0
    %32 = vsyncpa [#allocation27], 0
    %33 = vsyncpa [#allocation4], 0
    %34 = vsyncpa [#allocation31], 0
    // Predicated region
    $region2: #{tpu_custom_call.1} parent=1 // pred_check
      _
    $region3: #{tpu_custom_call.1} parent=1 // pred_check_branch
      %36 = sbr.rel (0) target = $region5
    $region4: #{tpu_custom_call.1} parent=1 // pred_region
      %s38 = ssub.s32 256, 256
      %39 = vsyncadd [#allocation3], %s38
      %s41 = sshll.u32 [#allocation2], 4
      %s42 = int_to_ptr.vmem [resolvable:$true] %s41
      %44 = dma.hbm_to_vmem [thread:$0]  %s0, 256, %s42, [#allocation3]
    $region5: #{tpu_custom_call.1} parent=1 // pred_fallthru
      _
    // Predicated region
    $region6: #{tpu_custom_call.1} parent=1 // pred_check
      _
    $region7: #{tpu_custom_call.1} parent=1 // pred_check_branch
      %46 = sbr.rel (0) target = $region9
    $region8: #{tpu_custom_call.1} parent=1 // pred_region
      %s48 = ssub.s32 1024, 1024
      %49 = vsyncadd [#allocation6], %s48
      %s50 = sshll.u32 [#allocation5], 4
      %s51 = int_to_ptr.vmem [resolvable:$true] %s50
      %56 = dma.hbm_to_vmem [thread:$0]  %s1, 1024, %s51, [#allocation6], 256, 256, 16
    $region9: #{tpu_custom_call.1} parent=1 // pred_fallthru
      _
    // Predicated region
    $region10: #{tpu_custom_call.1} parent=1 // pred_check
      _
    $region11: #{tpu_custom_call.1} parent=1 // pred_check_branch
      %58 = sbr.rel (0) target = $region13
    $region12: #{tpu_custom_call.1} parent=1 // pred_region
      %s60 = ssub.s32 256, 256
      %61 = vsyncadd [#allocation6], %s60
      %s63 = sshll.u32 [#allocation7], 4
      %s64 = int_to_ptr.vmem [resolvable:$true] %s63
      %66 = dma.hbm_to_vmem [thread:$0]  %s2, 256, %s64, [#allocation6]
    $region13: #{tpu_custom_call.1} parent=1 // pred_fallthru
      _
    // Predicated region
    $region14: #{tpu_custom_call.1} parent=1 // pred_check
      _
    $region15: #{tpu_custom_call.1} parent=1 // pred_check_branch
      %68 = sbr.rel (0) target = $region17
    $region16: #{tpu_custom_call.1} parent=1 // pred_region
      %s70 = ssub.s32 4096, 4096
      %71 = vsyncadd [#allocation9], %s70
      %s72 = sshll.u32 [#allocation8], 4
      %s73 = int_to_ptr.vmem [resolvable:$true] %s72
      %78 = dma.hbm_to_vmem [thread:$0]  %s3, 4096, %s73, [#allocation9], 128, 128, 8
    $region17: #{tpu_custom_call.1} parent=1 // pred_fallthru
      _
    // Predicated region
    $region18: #{tpu_custom_call.1} parent=1 // pred_check
      _
    $region19: #{tpu_custom_call.1} parent=1 // pred_check_branch
      %80 = sbr.rel (0) target = $region21
    $region20: #{tpu_custom_call.1} parent=1 // pred_region
      %s82 = ssub.s32 128, 128
      %83 = vsyncadd [#allocation9], %s82
      %s85 = sshll.u32 [#allocation10], 4
      %s86 = int_to_ptr.vmem [resolvable:$true] %s85
      %88 = dma.hbm_to_vmem [thread:$0]  %s4, 128, %s86, [#allocation9]
    $region21: #{tpu_custom_call.1} parent=1 // pred_fallthru
      _
    // Predicated region
    $region22: #{tpu_custom_call.1} parent=1 // pred_check
      _
    $region23: #{tpu_custom_call.1} parent=1 // pred_check_branch
      %90 = sbr.rel (0) target = $region25
    $region24: #{tpu_custom_call.1} parent=1 // pred_region
      %s92 = ssub.s32 32, 32
      %93 = vsyncadd [#allocation12], %s92
      %s95 = sshll.u32 [#allocation11], 4
      %s96 = int_to_ptr.vmem [resolvable:$true] %s95
      %98 = dma.hbm_to_vmem [thread:$0]  %s5, 32, %s96, [#allocation12]
    $region25: #{tpu_custom_call.1} parent=1 // pred_fallthru
      _
    // Predicated region
    $region26: #{tpu_custom_call.1} parent=1 // pred_check
      _
    $region27: #{tpu_custom_call.1} parent=1 // pred_check_branch
      %100 = sbr.rel (0) target = $region29
    $region28: #{tpu_custom_call.1} parent=1 // pred_region
      %s102 = ssub.s32 32, 32
      %103 = vsyncadd [#allocation12], %s102
      %s105 = sshll.u32 [#allocation13], 4
      %s106 = int_to_ptr.vmem [resolvable:$true] %s105
      %108 = dma.hbm_to_vmem [thread:$0]  %s6, 32, %s106, [#allocation12]
    $region29: #{tpu_custom_call.1} parent=1 // pred_fallthru
      _
    // Predicated region
    $region30: #{tpu_custom_call.1} parent=1 // pred_check
      _
    $region31: #{tpu_custom_call.1} parent=1 // pred_check_branch
      %110 = sbr.rel (0) target = $region33
    $region32: #{tpu_custom_call.1} parent=1 // pred_region
      %s112 = ssub.s32 8192, 8192
      %113 = vsyncadd [#allocation15], %s112
      %s114 = sshll.u32 [#allocation14], 4
      %s115 = int_to_ptr.vmem [resolvable:$true] %s114
      %120 = dma.hbm_to_vmem [thread:$0]  %s7, 8192, %s115, [#allocation15], 256, 256, 16
    $region33: #{tpu_custom_call.1} parent=1 // pred_fallthru
      _
    // Predicated region
    $region34: #{tpu_custom_call.1} parent=1 // pred_check
      _
    $region35: #{tpu_custom_call.1} parent=1 // pred_check_branch
      %122 = sbr.rel (0) target = $region37
    $region36: #{tpu_custom_call.1} parent=1 // pred_region
      %s124 = ssub.s32 64, 64
      %125 = vsyncadd [#allocation15], %s124
      %s127 = sshll.u32 [#allocation16], 4
      %s128 = int_to_ptr.vmem [resolvable:$true] %s127
      %130 = dma.hbm_to_vmem [thread:$0]  %s8, 64, %s128, [#allocation15]
    $region37: #{tpu_custom_call.1} parent=1 // pred_fallthru
      _
    // Predicated region
    $region38: #{tpu_custom_call.1} parent=1 // pred_check
      _
    $region39: #{tpu_custom_call.1} parent=1 // pred_check_branch
      %132 = sbr.rel (0) target = $region41
    $region40: #{tpu_custom_call.1} parent=1 // pred_region
      %s134 = ssub.s32 4096, 4096
      %135 = vsyncadd [#allocation18], %s134
      %s136 = sshll.u32 [#allocation17], 4
      %s137 = int_to_ptr.vmem [resolvable:$true] %s136
      %142 = dma.hbm_to_vmem [thread:$0]  %s9, 4096, %s137, [#allocation18], 128, 128, 8
    $region41: #{tpu_custom_call.1} parent=1 // pred_fallthru
      _
    // Predicated region
    $region42: #{tpu_custom_call.1} parent=1 // pred_check
      _
    $region43: #{tpu_custom_call.1} parent=1 // pred_check_branch
      %144 = sbr.rel (0) target = $region45
    $region44: #{tpu_custom_call.1} parent=1 // pred_region
      %s146 = ssub.s32 32, 32
      %147 = vsyncadd [#allocation18], %s146
      %s149 = sshll.u32 [#allocation19], 4
      %s150 = int_to_ptr.vmem [resolvable:$true] %s149
      %152 = dma.hbm_to_vmem [thread:$0]  %s10, 32, %s150, [#allocation18]
    $region45: #{tpu_custom_call.1} parent=1 // pred_fallthru
      _
    // Predicated region
    $region46: #{tpu_custom_call.1} parent=1 // pred_check
      _
    $region47: #{tpu_custom_call.1} parent=1 // pred_check_branch
      %154 = sbr.rel (0) target = $region49
    $region48: #{tpu_custom_call.1} parent=1 // pred_region
      %s156 = ssub.s32 4096, 4096
      %157 = vsyncadd [#allocation21], %s156
      %s158 = sshll.u32 [#allocation20], 4
      %s159 = int_to_ptr.vmem [resolvable:$true] %s158
      %164 = dma.hbm_to_vmem [thread:$0]  %s11, 4096, %s159, [#allocation21], 128, 128, 8
    $region49: #{tpu_custom_call.1} parent=1 // pred_fallthru
      _
    // Predicated region
    $region50: #{tpu_custom_call.1} parent=1 // pred_check
      _
    $region51: #{tpu_custom_call.1} parent=1 // pred_check_branch
      %166 = sbr.rel (0) target = $region53
    $region52: #{tpu_custom_call.1} parent=1 // pred_region
      %s168 = ssub.s32 32, 32
      %169 = vsyncadd [#allocation21], %s168
      %s171 = sshll.u32 [#allocation22], 4
      %s172 = int_to_ptr.vmem [resolvable:$true] %s171
      %174 = dma.hbm_to_vmem [thread:$0]  %s12, 32, %s172, [#allocation21]
    $region53: #{tpu_custom_call.1} parent=1 // pred_fallthru
      _
    // Predicated region
    $region54: #{tpu_custom_call.1} parent=1 // pred_check
      _
    $region55: #{tpu_custom_call.1} parent=1 // pred_check_branch
      %176 = sbr.rel (0) target = $region57
    $region56: #{tpu_custom_call.1} parent=1 // pred_region
      %s178 = ssub.s32 32, 32
      %179 = vsyncadd [#allocation24], %s178
      %s181 = sshll.u32 [#allocation23], 4
      %s182 = int_to_ptr.vmem [resolvable:$true] %s181
      %184 = dma.hbm_to_vmem [thread:$0]  %s13, 32, %s182, [#allocation24]
    $region57: #{tpu_custom_call.1} parent=1 // pred_fallthru
      _
    // Predicated region
    $region58: #{tpu_custom_call.1} parent=1 // pred_check
      _
    $region59: #{tpu_custom_call.1} parent=1 // pred_check_branch
      %186 = sbr.rel (0) target = $region61
    $region60: #{tpu_custom_call.1} parent=1 // pred_region
      %s188 = ssub.s32 32, 32
      %189 = vsyncadd [#allocation24], %s188
      %s191 = sshll.u32 [#allocation25], 4
      %s192 = int_to_ptr.vmem [resolvable:$true] %s191
      %194 = dma.hbm_to_vmem [thread:$0]  %s14, 32, %s192, [#allocation24]
    $region61: #{tpu_custom_call.1} parent=1 // pred_fallthru
      _
    // Predicated region
    $region62: #{tpu_custom_call.1} parent=1 // pred_check
      _
    $region63: #{tpu_custom_call.1} parent=1 // pred_check_branch
      %196 = sbr.rel (0) target = $region65
    $region64: #{tpu_custom_call.1} parent=1 // pred_region
      %s198 = ssub.s32 16384, 16384
      %199 = vsyncadd [#allocation27], %s198
      %s200 = sshll.u32 [#allocation26], 4
      %s201 = int_to_ptr.vmem [resolvable:$true] %s200
      %206 = dma.hbm_to_vmem [thread:$0]  %s15, 16384, %s201, [#allocation27], 512, 512, 32
    $region65: #{tpu_custom_call.1} parent=1 // pred_fallthru
      _
    // Predicated region
    $region66: #{tpu_custom_call.1} parent=1 // pred_check
      _
    $region67: #{tpu_custom_call.1} parent=1 // pred_check_branch
      %208 = sbr.rel (0) target = $region69
    $region68: #{tpu_custom_call.1} parent=1 // pred_region
      %s210 = ssub.s32 128, 128
      %211 = vsyncadd [#allocation27], %s210
      %s213 = sshll.u32 [#allocation28], 4
      %s214 = int_to_ptr.vmem [resolvable:$true] %s213
      %216 = dma.hbm_to_vmem [thread:$0]  %s16, 128, %s214, [#allocation27]
    $region69: #{tpu_custom_call.1} parent=1 // pred_fallthru
      _
    // Predicated region
    $region70: #{tpu_custom_call.1} parent=1 // pred_check
      _
    $region71: #{tpu_custom_call.1} parent=1 // pred_check_branch
      %218 = sbr.rel (0) target = $region73
    $region72: #{tpu_custom_call.1} parent=1 // pred_region
      %219 = dma.done [#allocation3], 256
    $region73: #{tpu_custom_call.1} parent=1 // pred_fallthru
      _
    // Predicated region
    $region74: #{tpu_custom_call.1} parent=1 // pred_check
      _
    $region75: #{tpu_custom_call.1} parent=1 // pred_check_branch
      %221 = sbr.rel (0) target = $region77
    $region76: #{tpu_custom_call.1} parent=1 // pred_region
      %222 = dma.done [#allocation6], 1024
    $region77: #{tpu_custom_call.1} parent=1 // pred_fallthru
      _
    // Predicated region
    $region78: #{tpu_custom_call.1} parent=1 // pred_check
      _
    $region79: #{tpu_custom_call.1} parent=1 // pred_check_branch
      %224 = sbr.rel (0) target = $region81
    $region80: #{tpu_custom_call.1} parent=1 // pred_region
      %225 = dma.done [#allocation6], 256
    $region81: #{tpu_custom_call.1} parent=1 // pred_fallthru
      _
    // Predicated region
    $region82: #{tpu_custom_call.1} parent=1 // pred_check
      _
    $region83: #{tpu_custom_call.1} parent=1 // pred_check_branch
      %227 = sbr.rel (0) target = $region85
    $region84: #{tpu_custom_call.1} parent=1 // pred_region
      %228 = dma.done [#allocation9], 4096
    $region85: #{tpu_custom_call.1} parent=1 // pred_fallthru
      _
    // Predicated region
    $region86: #{tpu_custom_call.1} parent=1 // pred_check
      _
    $region87: #{tpu_custom_call.1} parent=1 // pred_check_branch
      %230 = sbr.rel (0) target = $region89
    $region88: #{tpu_custom_call.1} parent=1 // pred_region
      %231 = dma.done [#allocation9], 128
    $region89: #{tpu_custom_call.1} parent=1 // pred_fallthru
      _
    // Predicated region
    $region90: #{tpu_custom_call.1} parent=1 // pred_check
      _
    $region91: #{tpu_custom_call.1} parent=1 // pred_check_branch
      %233 = sbr.rel (0) target = $region93
    $region92: #{tpu_custom_call.1} parent=1 // pred_region
      %234 = dma.done [#allocation12], 32
    $region93: #{tpu_custom_call.1} parent=1 // pred_fallthru
      _
    // Predicated region
    $region94: #{tpu_custom_call.1} parent=1 // pred_check
      _
    $region95: #{tpu_custom_call.1} parent=1 // pred_check_branch
      %236 = sbr.rel (0) target = $region97
    $region96: #{tpu_custom_call.1} parent=1 // pred_region
      %237 = dma.done [#allocation12], 32
    $region97: #{tpu_custom_call.1} parent=1 // pred_fallthru
      _
    // Predicated region
    $region98: #{tpu_custom_call.1} parent=1 // pred_check
      _
    $region99: #{tpu_custom_call.1} parent=1 // pred_check_branch
      %239 = sbr.rel (0) target = $region101
    $region100: #{tpu_custom_call.1} parent=1 // pred_region
      %240 = dma.done [#allocation15], 8192
    $region101: #{tpu_custom_call.1} parent=1 // pred_fallthru
      _
    // Predicated region
    $region102: #{tpu_custom_call.1} parent=1 // pred_check
      _
    $region103: #{tpu_custom_call.1} parent=1 // pred_check_branch
      %242 = sbr.rel (0) target = $region105
    $region104: #{tpu_custom_call.1} parent=1 // pred_region
      %243 = dma.done [#allocation15], 64
    $region105: #{tpu_custom_call.1} parent=1 // pred_fallthru
      _
    // Predicated region
    $region106: #{tpu_custom_call.1} parent=1 // pred_check
      _
    $region107: #{tpu_custom_call.1} parent=1 // pred_check_branch
      %245 = sbr.rel (0) target = $region109
    $region108: #{tpu_custom_call.1} parent=1 // pred_region
      %246 = dma.done [#allocation18], 4096
    $region109: #{tpu_custom_call.1} parent=1 // pred_fallthru
      _
    // Predicated region
    $region110: #{tpu_custom_call.1} parent=1 // pred_check
      _
    $region111: #{tpu_custom_call.1} parent=1 // pred_check_branch
      %248 = sbr.rel (0) target = $region113
    $region112: #{tpu_custom_call.1} parent=1 // pred_region
      %249 = dma.done [#allocation18], 32
    $region113: #{tpu_custom_call.1} parent=1 // pred_fallthru
      _
    // Predicated region
    $region114: #{tpu_custom_call.1} parent=1 // pred_check
      _
    $region115: #{tpu_custom_call.1} parent=1 // pred_check_branch
      %251 = sbr.rel (0) target = $region117
    $region116: #{tpu_custom_call.1} parent=1 // pred_region
      %252 = dma.done [#allocation21], 4096
    $region117: #{tpu_custom_call.1} parent=1 // pred_fallthru
      _
    // Predicated region
    $region118: #{tpu_custom_call.1} parent=1 // pred_check
      _
    $region119: #{tpu_custom_call.1} parent=1 // pred_check_branch
      %254 = sbr.rel (0) target = $region121
    $region120: #{tpu_custom_call.1} parent=1 // pred_region
      %255 = dma.done [#allocation21], 32
    $region121: #{tpu_custom_call.1} parent=1 // pred_fallthru
      _
    // Predicated region
    $region122: #{tpu_custom_call.1} parent=1 // pred_check
      _
    $region123: #{tpu_custom_call.1} parent=1 // pred_check_branch
      %257 = sbr.rel (0) target = $region125
    $region124: #{tpu_custom_call.1} parent=1 // pred_region
      %258 = dma.done [#allocation24], 32
    $region125: #{tpu_custom_call.1} parent=1 // pred_fallthru
      _
    // Predicated region
    $region126: #{tpu_custom_call.1} parent=1 // pred_check
      _
    $region127: #{tpu_custom_call.1} parent=1 // pred_check_branch
      %260 = sbr.rel (0) target = $region129
    $region128: #{tpu_custom_call.1} parent=1 // pred_region
      %261 = dma.done [#allocation24], 32
    $region129: #{tpu_custom_call.1} parent=1 // pred_fallthru
      _
    // Predicated region
    $region130: #{tpu_custom_call.1} parent=1 // pred_check
      _
    $region131: #{tpu_custom_call.1} parent=1 // pred_check_branch
      %263 = sbr.rel (0) target = $region133
    $region132: #{tpu_custom_call.1} parent=1 // pred_region
      %264 = dma.done [#allocation27], 16384
    $region133: #{tpu_custom_call.1} parent=1 // pred_fallthru
      _
    // Predicated region
    $region134: #{tpu_custom_call.1} parent=1 // pred_check
      _
    $region135: #{tpu_custom_call.1} parent=1 // pred_check_branch
      %266 = sbr.rel (0) target = $region137
    $region136: #{tpu_custom_call.1} parent=1 // pred_region
      %267 = dma.done [#allocation27], 128
    $region137: #{tpu_custom_call.1} parent=1 // pred_fallthru
      _
    %v268 = vld [vmem:[#allocation2] sm:$0xff]
    %v269 = vld [vmem:[#allocation2 + $0x8] sm:$0xff]
    %v270 = vld [vmem:[#allocation5] sm:$0xff]
    %v271 = vld [vmem:[#allocation5 + $0x8] sm:$0xff]
    %v272 = vld [vmem:[#allocation5 + $0x10] sm:$0xff]
    %v273 = vld [vmem:[#allocation5 + $0x18] sm:$0xff]
    %v274 = vld [vmem:[#allocation5 + $0x20] sm:$0xff]
    %v275 = vld [vmem:[#allocation5 + $0x28] sm:$0xff]
    %v276 = vld [vmem:[#allocation5 + $0x30] sm:$0xff]
    %v277 = vld [vmem:[#allocation5 + $0x38] sm:$0xff]
    %v278 = vld [vmem:[#allocation7] sm:$0xff]
    %v279 = vld [vmem:[#allocation7 + $0x8] sm:$0xff]
    %v280 = vadd.f32 %v270, %v271
    %281 = vadd.xlane.f32.xlu0 %v280
    %v282 = vpop.xlane.xlu0 %281
    %v283 = vadd.f32 %v272, %v273
    %284 = vadd.xlane.f32.xlu0 %v283
    %v285 = vpop.xlane.xlu0 %284
    %v286 = vadd.f32 %v274, %v275
    %287 = vadd.xlane.f32.xlu0 %v286
    %v288 = vpop.xlane.xlu0 %287
    %v289 = vadd.f32 %v276, %v277
    %290 = vadd.xlane.f32.xlu0 %v289
    %v291 = vpop.xlane.xlu0 %290
    %v292 = vrcp.pop 256.0
    %v293 = vmul.f32 %v282, %v292
    %v294 = vmul.f32 %v285, %v292
    %v295 = vmul.f32 %v288, %v292
    %v296 = vmul.f32 %v291, %v292
    %v297 = vsub.f32 %v270, %v293
    %v298 = vsub.f32 %v271, %v293
    %v299 = vsub.f32 %v272, %v294
    %v300 = vsub.f32 %v273, %v294
    %v301 = vsub.f32 %v274, %v295
    %v302 = vsub.f32 %v275, %v295
    %v303 = vsub.f32 %v276, %v296
    %v304 = vsub.f32 %v277, %v296
    %v305 = vmul.f32 %v297, %v297
    %v306 = vmul.f32 %v298, %v298
    %v307 = vmul.f32 %v299, %v299
    %v308 = vmul.f32 %v300, %v300
    %v309 = vmul.f32 %v301, %v301
    %v310 = vmul.f32 %v302, %v302
    %v311 = vmul.f32 %v303, %v303
    %v312 = vmul.f32 %v304, %v304
    %v313 = vadd.f32 %v305, %v306
    %314 = vadd.xlane.f32.xlu0 %v313
    %v315 = vpop.xlane.xlu0 %314
    %v316 = vadd.f32 %v307, %v308
    %317 = vadd.xlane.f32.xlu0 %v316
    %v318 = vpop.xlane.xlu0 %317
    %v319 = vadd.f32 %v309, %v310
    %320 = vadd.xlane.f32.xlu0 %v319
    %v321 = vpop.xlane.xlu0 %320
    %v322 = vadd.f32 %v311, %v312
    %323 = vadd.xlane.f32.xlu0 %v322
    %v324 = vpop.xlane.xlu0 %323
    %v325 = vmul.f32 %v315, %v292
    %v326 = vmul.f32 %v318, %v292
    %v327 = vmul.f32 %v321, %v292
    %v328 = vmul.f32 %v324, %v292
    %v329 = vadd.f32 %v325, 1e-05
    %v330 = vadd.f32 %v326, 1e-05
    %v331 = vadd.f32 %v327, 1e-05
    %v332 = vadd.f32 %v328, 1e-05
    %v333 = vrsqrt.pop %v329
    %v334 = vrsqrt.pop %v330
    %v335 = vrsqrt.pop %v331
    %v336 = vrsqrt.pop %v332
    %v337 = vmul.f32 %v297, %v333
    %v338 = vmul.f32 %v298, %v333
    %v339 = vmul.f32 %v299, %v334
    %v340 = vmul.f32 %v300, %v334
    %v341 = vmul.f32 %v301, %v335
    %v342 = vmul.f32 %v302, %v335
    %v343 = vmul.f32 %v303, %v336
    %v344 = vmul.f32 %v304, %v336
    %v345 = vld [vmem:[#allocation11] sm:$0x3]
    %v347 = vlaneseq
    %v348 = vshrl.u32 %v347, 7
    %v349 = vsub.s32 0, %v348
    %v350 = vrot.slane %v345, %v349
    %v351 = vlaneseq
    %v352 = vshrl.u32 %v351, 7
    %v353 = vsub.s32 1, %v352
    %v354 = vrot.slane %v345, %v353
    %v357 = vmul.f32 %v337, %v350
    %v358 = vmul.f32 %v338, %v354
    %v359 = vmul.f32 %v339, %v350
    %v360 = vmul.f32 %v340, %v354
    %v361 = vmul.f32 %v341, %v350
    %v362 = vmul.f32 %v342, %v354
    %v363 = vmul.f32 %v343, %v350
    %v364 = vmul.f32 %v344, %v354
    %v365 = vld [vmem:[#allocation13] sm:$0x3]
    %v367 = vlaneseq
    %v368 = vshrl.u32 %v367, 7
    %v369 = vsub.s32 0, %v368
    %v370 = vrot.slane %v365, %v369
    %v371 = vlaneseq
    %v372 = vshrl.u32 %v371, 7
    %v373 = vsub.s32 1, %v372
    %v374 = vrot.slane %v365, %v373
    %v377 = vadd.f32 %v357, %v370
    %v378 = vadd.f32 %v358, %v374
    %v379 = vadd.f32 %v359, %v370
    %v380 = vadd.f32 %v360, %v374
    %v381 = vadd.f32 %v361, %v370
    %v382 = vadd.f32 %v362, %v374
    %v383 = vadd.f32 %v363, %v370
    %v384 = vadd.f32 %v364, %v374
    %v385 = vpack.c.bf16 %v379, %v377
    %v386 = vpack.c.bf16 %v380, %v378
    %v387 = vpack.c.bf16 %v383, %v381
    %v388 = vpack.c.bf16 %v384, %v382
    %v389 = vld [vmem:[#allocation14] sm:$0xff]
    %v390 = vld [vmem:[#allocation14 + $0x8] sm:$0xff]
    %v391 = vld [vmem:[#allocation14 + $0x10] sm:$0xff]
    %v392 = vld [vmem:[#allocation14 + $0x18] sm:$0xff]
    %v393 = vld [vmem:[#allocation14 + $0x20] sm:$0xff]
    %v394 = vld [vmem:[#allocation14 + $0x28] sm:$0xff]
    %v395 = vld [vmem:[#allocation14 + $0x30] sm:$0xff]
    %v396 = vld [vmem:[#allocation14 + $0x38] sm:$0xff]
    %v397 = vld [vmem:[#allocation14 + $0x40] sm:$0xff]
    %v398 = vld [vmem:[#allocation14 + $0x48] sm:$0xff]
    %v399 = vld [vmem:[#allocation14 + $0x50] sm:$0xff]
    %v400 = vld [vmem:[#allocation14 + $0x58] sm:$0xff]
    %v401 = vld [vmem:[#allocation14 + $0x60] sm:$0xff]
    %v402 = vld [vmem:[#allocation14 + $0x68] sm:$0xff]
    %v403 = vld [vmem:[#allocation14 + $0x70] sm:$0xff]
    %v404 = vld [vmem:[#allocation14 + $0x78] sm:$0xff]
    %v405 = vld [vmem:[#allocation14 + $0x80] sm:$0xff]
    %v406 = vld [vmem:[#allocation14 + $0x88] sm:$0xff]
    %v407 = vld [vmem:[#allocation14 + $0x90] sm:$0xff]
    %v408 = vld [vmem:[#allocation14 + $0x98] sm:$0xff]
    %v409 = vld [vmem:[#allocation14 + $0xa0] sm:$0xff]
    %v410 = vld [vmem:[#allocation14 + $0xa8] sm:$0xff]
    %v411 = vld [vmem:[#allocation14 + $0xb0] sm:$0xff]
    %v412 = vld [vmem:[#allocation14 + $0xb8] sm:$0xff]
    %v413 = vld [vmem:[#allocation14 + $0xc0] sm:$0xff]
    %v414 = vld [vmem:[#allocation14 + $0xc8] sm:$0xff]
    %v415 = vld [vmem:[#allocation14 + $0xd0] sm:$0xff]
    %v416 = vld [vmem:[#allocation14 + $0xd8] sm:$0xff]
    %v417 = vld [vmem:[#allocation14 + $0xe0] sm:$0xff]
    %v418 = vld [vmem:[#allocation14 + $0xe8] sm:$0xff]
    %v419 = vld [vmem:[#allocation14 + $0xf0] sm:$0xff]
    %v420 = vld [vmem:[#allocation14 + $0xf8] sm:$0xff]
    %v421 = vld [vmem:[#allocation14 + $0x100] sm:$0xff]
    %v422 = vld [vmem:[#allocation14 + $0x108] sm:$0xff]
    %v423 = vld [vmem:[#allocation14 + $0x110] sm:$0xff]
    %v424 = vld [vmem:[#allocation14 + $0x118] sm:$0xff]
    %v425 = vld [vmem:[#allocation14 + $0x120] sm:$0xff]
    %v426 = vld [vmem:[#allocation14 + $0x128] sm:$0xff]
    %v427 = vld [vmem:[#allocation14 + $0x130] sm:$0xff]
    %v428 = vld [vmem:[#allocation14 + $0x138] sm:$0xff]
    %v429 = vld [vmem:[#allocation14 + $0x140] sm:$0xff]
    %v430 = vld [vmem:[#allocation14 + $0x148] sm:$0xff]
    %v431 = vld [vmem:[#allocation14 + $0x150] sm:$0xff]
    %v432 = vld [vmem:[#allocation14 + $0x158] sm:$0xff]
    %v433 = vld [vmem:[#allocation14 + $0x160] sm:$0xff]
    %v434 = vld [vmem:[#allocation14 + $0x168] sm:$0xff]
    %v435 = vld [vmem:[#allocation14 + $0x170] sm:$0xff]
    %v436 = vld [vmem:[#allocation14 + $0x178] sm:$0xff]
    %v437 = vld [vmem:[#allocation14 + $0x180] sm:$0xff]
    %v438 = vld [vmem:[#allocation14 + $0x188] sm:$0xff]
    %v439 = vld [vmem:[#allocation14 + $0x190] sm:$0xff]
    %v440 = vld [vmem:[#allocation14 + $0x198] sm:$0xff]
    %v441 = vld [vmem:[#allocation14 + $0x1a0] sm:$0xff]
    %v442 = vld [vmem:[#allocation14 + $0x1a8] sm:$0xff]
    %v443 = vld [vmem:[#allocation14 + $0x1b0] sm:$0xff]
    %v444 = vld [vmem:[#allocation14 + $0x1b8] sm:$0xff]
    %v445 = vld [vmem:[#allocation14 + $0x1c0] sm:$0xff]
    %v446 = vld [vmem:[#allocation14 + $0x1c8] sm:$0xff]
    %v447 = vld [vmem:[#allocation14 + $0x1d0] sm:$0xff]
    %v448 = vld [vmem:[#allocation14 + $0x1d8] sm:$0xff]
    %v449 = vld [vmem:[#allocation14 + $0x1e0] sm:$0xff]
    %v450 = vld [vmem:[#allocation14 + $0x1e8] sm:$0xff]
    %v451 = vld [vmem:[#allocation14 + $0x1f0] sm:$0xff]
    %v452 = vld [vmem:[#allocation14 + $0x1f8] sm:$0xff]
    %v453 = vld [vmem:[#allocation16] sm:$0xf]
    %v455 = vlaneseq
    %v456 = vshrl.u32 %v455, 7
    %v457 = vsub.s32 0, %v456
    %v458 = vrot.slane %v453, %v457
    %v459 = vlaneseq
    %v460 = vshrl.u32 %v459, 7
    %v461 = vsub.s32 1, %v460
    %v462 = vrot.slane %v453, %v461
    %v463 = vlaneseq
    %v464 = vshrl.u32 %v463, 7
    %v465 = vsub.s32 2, %v464
    %v466 = vrot.slane %v453, %v465
    %v467 = vlaneseq
    %v468 = vshrl.u32 %v467, 7
    %v469 = vsub.s32 3, %v468
    %v470 = vrot.slane %v453, %v469
    %v539 = vunpack.c.l.b16 %v389
    %v540 = vunpack.c.h.b16 %v389
    %v541 = vunpack.c.l.b16 %v390
    %v542 = vunpack.c.h.b16 %v390
    %v543 = vunpack.c.l.b16 %v391
    %v544 = vunpack.c.h.b16 %v391
    %v545 = vunpack.c.l.b16 %v392
    %v546 = vunpack.c.h.b16 %v392
    %v547 = vunpack.c.l.b16 %v393
    %v548 = vunpack.c.h.b16 %v393
    %v549 = vunpack.c.l.b16 %v394
    %v550 = vunpack.c.h.b16 %v394
    %v551 = vunpack.c.l.b16 %v395
    %v552 = vunpack.c.h.b16 %v395
    %v553 = vunpack.c.l.b16 %v396
    %v554 = vunpack.c.h.b16 %v396
    %v555 = vunpack.c.l.b16 %v397
    %v556 = vunpack.c.h.b16 %v397
    %v557 = vunpack.c.l.b16 %v398
    %v558 = vunpack.c.h.b16 %v398
    %v559 = vunpack.c.l.b16 %v399
    %v560 = vunpack.c.h.b16 %v399
    %v561 = vunpack.c.l.b16 %v400
    %v562 = vunpack.c.h.b16 %v400
    %v563 = vunpack.c.l.b16 %v401
    %v564 = vunpack.c.h.b16 %v401
    %v565 = vunpack.c.l.b16 %v402
    %v566 = vunpack.c.h.b16 %v402
    %v567 = vunpack.c.l.b16 %v403
    %v568 = vunpack.c.h.b16 %v403
    %v569 = vunpack.c.l.b16 %v404
    %v570 = vunpack.c.h.b16 %v404
    %v571 = vunpack.c.l.b16 %v405
    %v572 = vunpack.c.h.b16 %v405
    %v573 = vunpack.c.l.b16 %v406
    %v574 = vunpack.c.h.b16 %v406
    %v575 = vunpack.c.l.b16 %v407
    %v576 = vunpack.c.h.b16 %v407
    %v577 = vunpack.c.l.b16 %v408
    %v578 = vunpack.c.h.b16 %v408
    %v579 = vunpack.c.l.b16 %v409
    %v580 = vunpack.c.h.b16 %v409
    %v581 = vunpack.c.l.b16 %v410
    %v582 = vunpack.c.h.b16 %v410
    %v583 = vunpack.c.l.b16 %v411
    %v584 = vunpack.c.h.b16 %v411
    %v585 = vunpack.c.l.b16 %v412
    %v586 = vunpack.c.h.b16 %v412
    %v587 = vunpack.c.l.b16 %v413
    %v588 = vunpack.c.h.b16 %v413
    %v589 = vunpack.c.l.b16 %v414
    %v590 = vunpack.c.h.b16 %v414
    %v591 = vunpack.c.l.b16 %v415
    %v592 = vunpack.c.h.b16 %v415
    %v593 = vunpack.c.l.b16 %v416
    %v594 = vunpack.c.h.b16 %v416
    %v595 = vunpack.c.l.b16 %v417
    %v596 = vunpack.c.h.b16 %v417
    %v597 = vunpack.c.l.b16 %v418
    %v598 = vunpack.c.h.b16 %v418
    %v599 = vunpack.c.l.b16 %v419
    %v600 = vunpack.c.h.b16 %v419
    %v601 = vunpack.c.l.b16 %v420
    %v602 = vunpack.c.h.b16 %v420
    %v603 = vunpack.c.l.b16 %v421
    %v604 = vunpack.c.h.b16 %v421
    %v605 = vunpack.c.l.b16 %v422
    %v606 = vunpack.c.h.b16 %v422
    %v607 = vunpack.c.l.b16 %v423
    %v608 = vunpack.c.h.b16 %v423
    %v609 = vunpack.c.l.b16 %v424
    %v610 = vunpack.c.h.b16 %v424
    %v611 = vunpack.c.l.b16 %v425
    %v612 = vunpack.c.h.b16 %v425
    %v613 = vunpack.c.l.b16 %v426
    %v614 = vunpack.c.h.b16 %v426
    %v615 = vunpack.c.l.b16 %v427
    %v616 = vunpack.c.h.b16 %v427
    %v617 = vunpack.c.l.b16 %v428
    %v618 = vunpack.c.h.b16 %v428
    %v619 = vunpack.c.l.b16 %v429
    %v620 = vunpack.c.h.b16 %v429
    %v621 = vunpack.c.l.b16 %v430
    %v622 = vunpack.c.h.b16 %v430
    %v623 = vunpack.c.l.b16 %v431
    %v624 = vunpack.c.h.b16 %v431
    %v625 = vunpack.c.l.b16 %v432
    %v626 = vunpack.c.h.b16 %v432
    %v627 = vunpack.c.l.b16 %v433
    %v628 = vunpack.c.h.b16 %v433
    %v629 = vunpack.c.l.b16 %v434
    %v630 = vunpack.c.h.b16 %v434
    %v631 = vunpack.c.l.b16 %v435
    %v632 = vunpack.c.h.b16 %v435
    %v633 = vunpack.c.l.b16 %v436
    %v634 = vunpack.c.h.b16 %v436
    %v635 = vunpack.c.l.b16 %v437
    %v636 = vunpack.c.h.b16 %v437
    %v637 = vunpack.c.l.b16 %v438
    %v638 = vunpack.c.h.b16 %v438
    %v639 = vunpack.c.l.b16 %v439
    %v640 = vunpack.c.h.b16 %v439
    %v641 = vunpack.c.l.b16 %v440
    %v642 = vunpack.c.h.b16 %v440
    %v643 = vunpack.c.l.b16 %v441
    %v644 = vunpack.c.h.b16 %v441
    %v645 = vunpack.c.l.b16 %v442
    %v646 = vunpack.c.h.b16 %v442
    %v647 = vunpack.c.l.b16 %v443
    %v648 = vunpack.c.h.b16 %v443
    %v649 = vunpack.c.l.b16 %v444
    %v650 = vunpack.c.h.b16 %v444
    %v651 = vunpack.c.l.b16 %v445
    %v652 = vunpack.c.h.b16 %v445
    %v653 = vunpack.c.l.b16 %v446
    %v654 = vunpack.c.h.b16 %v446
    %v655 = vunpack.c.l.b16 %v447
    %v656 = vunpack.c.h.b16 %v447
    %v657 = vunpack.c.l.b16 %v448
    %v658 = vunpack.c.h.b16 %v448
    %v659 = vunpack.c.l.b16 %v449
    %v660 = vunpack.c.h.b16 %v449
    %v661 = vunpack.c.l.b16 %v450
    %v662 = vunpack.c.h.b16 %v450
    %v663 = vunpack.c.l.b16 %v451
    %v664 = vunpack.c.h.b16 %v451
    %v665 = vunpack.c.l.b16 %v452
    %v666 = vunpack.c.h.b16 %v452
    %v667 = vpack.c.b16 %v543, %v539
    %v668 = vpack.c.b16 %v544, %v540
    %v669 = vpack.c.b16 %v545, %v541
    %v670 = vpack.c.b16 %v546, %v542
    %v671 = vpack.c.b16 %v551, %v547
    %v672 = vpack.c.b16 %v552, %v548
    %v673 = vpack.c.b16 %v553, %v549
    %v674 = vpack.c.b16 %v554, %v550
    %v675 = vpack.c.b16 %v559, %v555
    %v676 = vpack.c.b16 %v560, %v556
    %v677 = vpack.c.b16 %v561, %v557
    %v678 = vpack.c.b16 %v562, %v558
    %v679 = vpack.c.b16 %v567, %v563
    %v680 = vpack.c.b16 %v568, %v564
    %v681 = vpack.c.b16 %v569, %v565
    %v682 = vpack.c.b16 %v570, %v566
    %v683 = vpack.c.b16 %v575, %v571
    %v684 = vpack.c.b16 %v576, %v572
    %v685 = vpack.c.b16 %v577, %v573
    %v686 = vpack.c.b16 %v578, %v574
    %v687 = vpack.c.b16 %v583, %v579
    %v688 = vpack.c.b16 %v584, %v580
    %v689 = vpack.c.b16 %v585, %v581
    %v690 = vpack.c.b16 %v586, %v582
    %v691 = vpack.c.b16 %v591, %v587
    %v692 = vpack.c.b16 %v592, %v588
    %v693 = vpack.c.b16 %v593, %v589
    %v694 = vpack.c.b16 %v594, %v590
    %v695 = vpack.c.b16 %v599, %v595
    %v696 = vpack.c.b16 %v600, %v596
    %v697 = vpack.c.b16 %v601, %v597
    %v698 = vpack.c.b16 %v602, %v598
    %v699 = vpack.c.b16 %v607, %v603
    %v700 = vpack.c.b16 %v608, %v604
    %v701 = vpack.c.b16 %v609, %v605
    %v702 = vpack.c.b16 %v610, %v606
    %v703 = vpack.c.b16 %v615, %v611
    %v704 = vpack.c.b16 %v616, %v612
    %v705 = vpack.c.b16 %v617, %v613
    %v706 = vpack.c.b16 %v618, %v614
    %v707 = vpack.c.b16 %v623, %v619
    %v708 = vpack.c.b16 %v624, %v620
    %v709 = vpack.c.b16 %v625, %v621
    %v710 = vpack.c.b16 %v626, %v622
    %v711 = vpack.c.b16 %v631, %v627
    %v712 = vpack.c.b16 %v632, %v628
    %v713 = vpack.c.b16 %v633, %v629
    %v714 = vpack.c.b16 %v634, %v630
    %v715 = vpack.c.b16 %v639, %v635
    %v716 = vpack.c.b16 %v640, %v636
    %v717 = vpack.c.b16 %v641, %v637
    %v718 = vpack.c.b16 %v642, %v638
    %v719 = vpack.c.b16 %v647, %v643
    %v720 = vpack.c.b16 %v648, %v644
    %v721 = vpack.c.b16 %v649, %v645
    %v722 = vpack.c.b16 %v650, %v646
    %v723 = vpack.c.b16 %v655, %v651
    %v724 = vpack.c.b16 %v656, %v652
    %v725 = vpack.c.b16 %v657, %v653
    %v726 = vpack.c.b16 %v658, %v654
    %v727 = vpack.c.b16 %v663, %v659
    %v728 = vpack.c.b16 %v664, %v660
    %v729 = vpack.c.b16 %v665, %v661
    %v730 = vpack.c.b16 %v666, %v662
    %795 = vmatprep.subr.bf16.mxu0 %v668
    %796 = vmatpush1.bf16.msra.mxu0 %v667
    %797 = vmatprep.subr.bf16.mxu0 %v672
    %798 = vmatpush1.bf16.msra.mxu0 %v671
    %799 = vmatprep.subr.bf16.mxu0 %v676
    %800 = vmatpush1.bf16.msra.mxu0 %v675
    %801 = vmatprep.subr.bf16.mxu0 %v680
    %802 = vmatpush1.bf16.msra.mxu0 %v679
    %803 = vmatprep.subr.bf16.mxu0 %v684
    %804 = vmatpush1.bf16.msra.mxu0 %v683
    %805 = vmatprep.subr.bf16.mxu0 %v688
    %806 = vmatpush1.bf16.msra.mxu0 %v687
    %807 = vmatprep.subr.bf16.mxu0 %v692
    %808 = vmatpush1.bf16.msra.mxu0 %v691
    %809 = vmatprep.subr.bf16.mxu0 %v696
    %810 = vmatpush1.bf16.msra.mxu0 %v695
    %811 = vmatprep.subr.bf16.mxu0 %v700
    %812 = vmatpush1.bf16.msra.mxu0 %v699
    %813 = vmatprep.subr.bf16.mxu0 %v704
    %814 = vmatpush1.bf16.msra.mxu0 %v703
    %815 = vmatprep.subr.bf16.mxu0 %v708
    %816 = vmatpush1.bf16.msra.mxu0 %v707
    %817 = vmatprep.subr.bf16.mxu0 %v712
    %818 = vmatpush1.bf16.msra.mxu0 %v711
    %819 = vmatprep.subr.bf16.mxu0 %v716
    %820 = vmatpush1.bf16.msra.mxu0 %v715
    %821 = vmatprep.subr.bf16.mxu0 %v720
    %822 = vmatpush1.bf16.msra.mxu0 %v719
    %823 = vmatprep.subr.bf16.mxu0 %v724
    %824 = vmatpush1.bf16.msra.mxu0 %v723
    %825 = vmatprep.subr.bf16.mxu0 %v728
    %826 = vmatpush1.bf16.msra.mxu0 %v727
    %827 = vmatprep.mubr.bf16.mxu0 %v386
    %828 = vmatmul.mubr.bf16.gmra.mrb[0].mxu0 %v385
    %v829 = vpop.f32.mrb[0].mxu0
    %v830 = vadd.f32 %v458, %v829
    %v831 = vpop.f32.mrb[0].mxu0
    %v832 = vadd.f32 %v462, %v831
    %v833 = vpop.f32.mrb[0].mxu0
    %v834 = vadd.f32 %v458, %v833
    %v835 = vpop.f32.mrb[0].mxu0
    %v836 = vadd.f32 %v462, %v835
    %837 = vmatprep.mubr.bf16.mxu0 %v388
    %838 = vmatmul.mubr.bf16.gmra.mrb[0].mxu0 %v387
    %v839 = vpop.f32.mrb[0].mxu0
    %v840 = vadd.f32 %v458, %v839
    %v841 = vpop.f32.mrb[0].mxu0
    %v842 = vadd.f32 %v462, %v841
    %v843 = vpop.f32.mrb[0].mxu0
    %v844 = vadd.f32 %v458, %v843
    %v845 = vpop.f32.mrb[0].mxu0
    %v846 = vadd.f32 %v462, %v845
    %847 = vdwg.mxu0
    %848 = vmatprep.subr.bf16.mxu0 %v670
    %849 = vmatpush1.bf16.msra.mxu0 %v669
    %850 = vmatprep.subr.bf16.mxu0 %v674
    %851 = vmatpush1.bf16.msra.mxu0 %v673
    %852 = vmatprep.subr.bf16.mxu0 %v678
    %853 = vmatpush1.bf16.msra.mxu0 %v677
    %854 = vmatprep.subr.bf16.mxu0 %v682
    %855 = vmatpush1.bf16.msra.mxu0 %v681
    %856 = vmatprep.subr.bf16.mxu0 %v686
    %857 = vmatpush1.bf16.msra.mxu0 %v685
    %858 = vmatprep.subr.bf16.mxu0 %v690
    %859 = vmatpush1.bf16.msra.mxu0 %v689
    %860 = vmatprep.subr.bf16.mxu0 %v694
    %861 = vmatpush1.bf16.msra.mxu0 %v693
    %862 = vmatprep.subr.bf16.mxu0 %v698
    %863 = vmatpush1.bf16.msra.mxu0 %v697
    %864 = vmatprep.subr.bf16.mxu0 %v702
    %865 = vmatpush1.bf16.msra.mxu0 %v701
    %866 = vmatprep.subr.bf16.mxu0 %v706
    %867 = vmatpush1.bf16.msra.mxu0 %v705
    %868 = vmatprep.subr.bf16.mxu0 %v710
    %869 = vmatpush1.bf16.msra.mxu0 %v709
    %870 = vmatprep.subr.bf16.mxu0 %v714
    %871 = vmatpush1.bf16.msra.mxu0 %v713
    %872 = vmatprep.subr.bf16.mxu0 %v718
    %873 = vmatpush1.bf16.msra.mxu0 %v717
    %874 = vmatprep.subr.bf16.mxu0 %v722
    %875 = vmatpush1.bf16.msra.mxu0 %v721
    %876 = vmatprep.subr.bf16.mxu0 %v726
    %877 = vmatpush1.bf16.msra.mxu0 %v725
    %878 = vmatprep.subr.bf16.mxu0 %v730
    %879 = vmatpush1.bf16.msra.mxu0 %v729
    %880 = vmatprep.mubr.bf16.mxu0 %v386
    %881 = vmatmul.mubr.bf16.gmra.mrb[0].mxu0 %v385
    %v882 = vpop.f32.mrb[0].mxu0
    %v883 = vadd.f32 %v466, %v882
    %v884 = vpop.f32.mrb[0].mxu0
    %v885 = vadd.f32 %v470, %v884
    %v886 = vpop.f32.mrb[0].mxu0
    %v887 = vadd.f32 %v466, %v886
    %v888 = vpop.f32.mrb[0].mxu0
    %v889 = vadd.f32 %v470, %v888
    %890 = vmatprep.mubr.bf16.mxu0 %v388
    %891 = vmatmul.mubr.bf16.gmra.mrb[0].mxu0 %v387
    %v892 = vpop.f32.mrb[0].mxu0
    %v893 = vadd.f32 %v466, %v892
    %v894 = vpop.f32.mrb[0].mxu0
    %v895 = vadd.f32 %v470, %v894
    %v896 = vpop.f32.mrb[0].mxu0
    %v897 = vadd.f32 %v466, %v896
    %v898 = vpop.f32.mrb[0].mxu0
    %v899 = vadd.f32 %v470, %v898
    %900 = vdwg.mxu0
    %v901 = vpack.c.bf16 %v268, %v268
    %v902 = vpack.c.bf16 %v269, %v269
    %v903 = vld [vmem:[#allocation17] sm:$0xff]
    %v904 = vld [vmem:[#allocation17 + $0x8] sm:$0xff]
    %v905 = vld [vmem:[#allocation17 + $0x10] sm:$0xff]
    %v906 = vld [vmem:[#allocation17 + $0x18] sm:$0xff]
    %v907 = vld [vmem:[#allocation17 + $0x20] sm:$0xff]
    %v908 = vld [vmem:[#allocation17 + $0x28] sm:$0xff]
    %v909 = vld [vmem:[#allocation17 + $0x30] sm:$0xff]
    %v910 = vld [vmem:[#allocation17 + $0x38] sm:$0xff]
    %v911 = vld [vmem:[#allocation17 + $0x40] sm:$0xff]
    %v912 = vld [vmem:[#allocation17 + $0x48] sm:$0xff]
    %v913 = vld [vmem:[#allocation17 + $0x50] sm:$0xff]
    %v914 = vld [vmem:[#allocation17 + $0x58] sm:$0xff]
    %v915 = vld [vmem:[#allocation17 + $0x60] sm:$0xff]
    %v916 = vld [vmem:[#allocation17 + $0x68] sm:$0xff]
    %v917 = vld [vmem:[#allocation17 + $0x70] sm:$0xff]
    %v918 = vld [vmem:[#allocation17 + $0x78] sm:$0xff]
    %v919 = vld [vmem:[#allocation17 + $0x80] sm:$0xff]
    %v920 = vld [vmem:[#allocation17 + $0x88] sm:$0xff]
    %v921 = vld [vmem:[#allocation17 + $0x90] sm:$0xff]
    %v922 = vld [vmem:[#allocation17 + $0x98] sm:$0xff]
    %v923 = vld [vmem:[#allocation17 + $0xa0] sm:$0xff]
    %v924 = vld [vmem:[#allocation17 + $0xa8] sm:$0xff]
    %v925 = vld [vmem:[#allocation17 + $0xb0] sm:$0xff]
    %v926 = vld [vmem:[#allocation17 + $0xb8] sm:$0xff]
    %v927 = vld [vmem:[#allocation17 + $0xc0] sm:$0xff]
    %v928 = vld [vmem:[#allocation17 + $0xc8] sm:$0xff]
    %v929 = vld [vmem:[#allocation17 + $0xd0] sm:$0xff]
    %v930 = vld [vmem:[#allocation17 + $0xd8] sm:$0xff]
    %v931 = vld [vmem:[#allocation17 + $0xe0] sm:$0xff]
    %v932 = vld [vmem:[#allocation17 + $0xe8] sm:$0xff]
    %v933 = vld [vmem:[#allocation17 + $0xf0] sm:$0xff]
    %v934 = vld [vmem:[#allocation17 + $0xf8] sm:$0xff]
    %v935 = vld [vmem:[#allocation19] sm:$0x3]
    %v937 = vlaneseq
    %v938 = vshrl.u32 %v937, 7
    %v939 = vsub.s32 0, %v938
    %v940 = vrot.slane %v935, %v939
    %v941 = vlaneseq
    %v942 = vshrl.u32 %v941, 7
    %v943 = vsub.s32 1, %v942
    %v944 = vrot.slane %v935, %v943
    %v979 = vunpack.c.l.b16 %v903
    %v980 = vunpack.c.h.b16 %v903
    %v981 = vunpack.c.l.b16 %v904
    %v982 = vunpack.c.h.b16 %v904
    %v983 = vunpack.c.l.b16 %v905
    %v984 = vunpack.c.h.b16 %v905
    %v985 = vunpack.c.l.b16 %v906
    %v986 = vunpack.c.h.b16 %v906
    %v987 = vunpack.c.l.b16 %v907
    %v988 = vunpack.c.h.b16 %v907
    %v989 = vunpack.c.l.b16 %v908
    %v990 = vunpack.c.h.b16 %v908
    %v991 = vunpack.c.l.b16 %v909
    %v992 = vunpack.c.h.b16 %v909
    %v993 = vunpack.c.l.b16 %v910
    %v994 = vunpack.c.h.b16 %v910
    %v995 = vunpack.c.l.b16 %v911
    %v996 = vunpack.c.h.b16 %v911
    %v997 = vunpack.c.l.b16 %v912
    %v998 = vunpack.c.h.b16 %v912
    %v999 = vunpack.c.l.b16 %v913
    %v1000 = vunpack.c.h.b16 %v913
    %v1001 = vunpack.c.l.b16 %v914
    %v1002 = vunpack.c.h.b16 %v914
    %v1003 = vunpack.c.l.b16 %v915
    %v1004 = vunpack.c.h.b16 %v915
    %v1005 = vunpack.c.l.b16 %v916
    %v1006 = vunpack.c.h.b16 %v916
    %v1007 = vunpack.c.l.b16 %v917
    %v1008 = vunpack.c.h.b16 %v917
    %v1009 = vunpack.c.l.b16 %v918
    %v1010 = vunpack.c.h.b16 %v918
    %v1011 = vunpack.c.l.b16 %v919
    %v1012 = vunpack.c.h.b16 %v919
    %v1013 = vunpack.c.l.b16 %v920
    %v1014 = vunpack.c.h.b16 %v920
    %v1015 = vunpack.c.l.b16 %v921
    %v1016 = vunpack.c.h.b16 %v921
    %v1017 = vunpack.c.l.b16 %v922
    %v1018 = vunpack.c.h.b16 %v922
    %v1019 = vunpack.c.l.b16 %v923
    %v1020 = vunpack.c.h.b16 %v923
    %v1021 = vunpack.c.l.b16 %v924
    %v1022 = vunpack.c.h.b16 %v924
    %v1023 = vunpack.c.l.b16 %v925
    %v1024 = vunpack.c.h.b16 %v925
    %v1025 = vunpack.c.l.b16 %v926
    %v1026 = vunpack.c.h.b16 %v926
    %v1027 = vunpack.c.l.b16 %v927
    %v1028 = vunpack.c.h.b16 %v927
    %v1029 = vunpack.c.l.b16 %v928
    %v1030 = vunpack.c.h.b16 %v928
    %v1031 = vunpack.c.l.b16 %v929
    %v1032 = vunpack.c.h.b16 %v929
    %v1033 = vunpack.c.l.b16 %v930
    %v1034 = vunpack.c.h.b16 %v930
    %v1035 = vunpack.c.l.b16 %v931
    %v1036 = vunpack.c.h.b16 %v931
    %v1037 = vunpack.c.l.b16 %v932
    %v1038 = vunpack.c.h.b16 %v932
    %v1039 = vunpack.c.l.b16 %v933
    %v1040 = vunpack.c.h.b16 %v933
    %v1041 = vunpack.c.l.b16 %v934
    %v1042 = vunpack.c.h.b16 %v934
    %v1043 = vpack.c.b16 %v981, %v979
    %v1044 = vpack.c.b16 %v982, %v980
    %v1045 = vpack.c.b16 %v985, %v983
    %v1046 = vpack.c.b16 %v986, %v984
    %v1047 = vpack.c.b16 %v989, %v987
    %v1048 = vpack.c.b16 %v990, %v988
    %v1049 = vpack.c.b16 %v993, %v991
    %v1050 = vpack.c.b16 %v994, %v992
    %v1051 = vpack.c.b16 %v997, %v995
    %v1052 = vpack.c.b16 %v998, %v996
    %v1053 = vpack.c.b16 %v1001, %v999
    %v1054 = vpack.c.b16 %v1002, %v1000
    %v1055 = vpack.c.b16 %v1005, %v1003
    %v1056 = vpack.c.b16 %v1006, %v1004
    %v1057 = vpack.c.b16 %v1009, %v1007
    %v1058 = vpack.c.b16 %v1010, %v1008
    %v1059 = vpack.c.b16 %v1013, %v1011
    %v1060 = vpack.c.b16 %v1014, %v1012
    %v1061 = vpack.c.b16 %v1017, %v1015
    %v1062 = vpack.c.b16 %v1018, %v1016
    %v1063 = vpack.c.b16 %v1021, %v1019
    %v1064 = vpack.c.b16 %v1022, %v1020
    %v1065 = vpack.c.b16 %v1025, %v1023
    %v1066 = vpack.c.b16 %v1026, %v1024
    %v1067 = vpack.c.b16 %v1029, %v1027
    %v1068 = vpack.c.b16 %v1030, %v1028
    %v1069 = vpack.c.b16 %v1033, %v1031
    %v1070 = vpack.c.b16 %v1034, %v1032
    %v1071 = vpack.c.b16 %v1037, %v1035
    %v1072 = vpack.c.b16 %v1038, %v1036
    %v1073 = vpack.c.b16 %v1041, %v1039
    %v1074 = vpack.c.b16 %v1042, %v1040
    %1107 = vmatprep.subr.bf16.mxu0 %v1044
    %1108 = vmatpush1.bf16.msra.mxu0 %v1043
    %1109 = vmatprep.subr.bf16.mxu0 %v1046
    %1110 = vmatpush1.bf16.msra.mxu0 %v1045
    %1111 = vmatprep.subr.bf16.mxu0 %v1048
    %1112 = vmatpush1.bf16.msra.mxu0 %v1047
    %1113 = vmatprep.subr.bf16.mxu0 %v1050
    %1114 = vmatpush1.bf16.msra.mxu0 %v1049
    %1115 = vmatprep.subr.bf16.mxu0 %v1052
    %1116 = vmatpush1.bf16.msra.mxu0 %v1051
    %1117 = vmatprep.subr.bf16.mxu0 %v1054
    %1118 = vmatpush1.bf16.msra.mxu0 %v1053
    %1119 = vmatprep.subr.bf16.mxu0 %v1056
    %1120 = vmatpush1.bf16.msra.mxu0 %v1055
    %1121 = vmatprep.subr.bf16.mxu0 %v1058
    %1122 = vmatpush1.bf16.msra.mxu0 %v1057
    %1123 = vmatprep.subr.bf16.mxu0 %v1060
    %1124 = vmatpush1.bf16.msra.mxu0 %v1059
    %1125 = vmatprep.subr.bf16.mxu0 %v1062
    %1126 = vmatpush1.bf16.msra.mxu0 %v1061
    %1127 = vmatprep.subr.bf16.mxu0 %v1064
    %1128 = vmatpush1.bf16.msra.mxu0 %v1063
    %1129 = vmatprep.subr.bf16.mxu0 %v1066
    %1130 = vmatpush1.bf16.msra.mxu0 %v1065
    %1131 = vmatprep.subr.bf16.mxu0 %v1068
    %1132 = vmatpush1.bf16.msra.mxu0 %v1067
    %1133 = vmatprep.subr.bf16.mxu0 %v1070
    %1134 = vmatpush1.bf16.msra.mxu0 %v1069
    %1135 = vmatprep.subr.bf16.mxu0 %v1072
    %1136 = vmatpush1.bf16.msra.mxu0 %v1071
    %1137 = vmatprep.subr.bf16.mxu0 %v1074
    %1138 = vmatpush1.bf16.msra.mxu0 %v1073
    %1139 = vmatprep.mubr.bf16.mxu0 %v902
    %1140 = vmatmul.mubr.bf16.gmra.mrb[0].mxu0 %v901
    %v1141 = vpop.f32.mrb[0].mxu0
    %v1142 = vadd.f32 %v940, %v1141
    %v1143 = vpop.f32.mrb[0].mxu0
    %v1144 = vadd.f32 %v944, %v1143
    %v1145 = vpop.f32.mrb[0].mxu0
    %v1146 = vpop.f32.mrb[0].mxu0
    %1147 = vdwg.mxu0
    %v1148 = vmul.f32 %v1142, 0.125
    %v1149 = vmul.f32 %v1144, 0.125
    %v1150 = vmul.f32 %v1148, %v830
    %v1151 = vmul.f32 %v1149, %v832
    %v1152 = vmul.f32 %v1148, %v834
    %v1153 = vmul.f32 %v1149, %v836
    %v1154 = vmul.f32 %v1148, %v840
    %v1155 = vmul.f32 %v1149, %v842
    %v1156 = vmul.f32 %v1148, %v844
    %v1157 = vmul.f32 %v1149, %v846
    %v1158 = vld [vmem:[#allocation8] sm:$0xff]
    %v1159 = vld [vmem:[#allocation8 + $0x8] sm:$0xff]
    %v1160 = vld [vmem:[#allocation8 + $0x10] sm:$0xff]
    %v1161 = vld [vmem:[#allocation8 + $0x18] sm:$0xff]
    %v1162 = vld [vmem:[#allocation8 + $0x20] sm:$0xff]
    %v1163 = vld [vmem:[#allocation8 + $0x28] sm:$0xff]
    %v1164 = vld [vmem:[#allocation8 + $0x30] sm:$0xff]
    %v1165 = vld [vmem:[#allocation8 + $0x38] sm:$0xff]
    %v1166 = vld [vmem:[#allocation8 + $0x40] sm:$0xff]
    %v1167 = vld [vmem:[#allocation8 + $0x48] sm:$0xff]
    %v1168 = vld [vmem:[#allocation8 + $0x50] sm:$0xff]
    %v1169 = vld [vmem:[#allocation8 + $0x58] sm:$0xff]
    %v1170 = vld [vmem:[#allocation8 + $0x60] sm:$0xff]
    %v1171 = vld [vmem:[#allocation8 + $0x68] sm:$0xff]
    %v1172 = vld [vmem:[#allocation8 + $0x70] sm:$0xff]
    %v1173 = vld [vmem:[#allocation8 + $0x78] sm:$0xff]
    %v1174 = vld [vmem:[#allocation8 + $0x80] sm:$0xff]
    %v1175 = vld [vmem:[#allocation8 + $0x88] sm:$0xff]
    %v1176 = vld [vmem:[#allocation8 + $0x90] sm:$0xff]
    %v1177 = vld [vmem:[#allocation8 + $0x98] sm:$0xff]
    %v1178 = vld [vmem:[#allocation8 + $0xa0] sm:$0xff]
    %v1179 = vld [vmem:[#allocation8 + $0xa8] sm:$0xff]
    %v1180 = vld [vmem:[#allocation8 + $0xb0] sm:$0xff]
    %v1181 = vld [vmem:[#allocation8 + $0xb8] sm:$0xff]
    %v1182 = vld [vmem:[#allocation8 + $0xc0] sm:$0xff]
    %v1183 = vld [vmem:[#allocation8 + $0xc8] sm:$0xff]
    %v1184 = vld [vmem:[#allocation8 + $0xd0] sm:$0xff]
    %v1185 = vld [vmem:[#allocation8 + $0xd8] sm:$0xff]
    %v1186 = vld [vmem:[#allocation8 + $0xe0] sm:$0xff]
    %v1187 = vld [vmem:[#allocation8 + $0xe8] sm:$0xff]
    %v1188 = vld [vmem:[#allocation8 + $0xf0] sm:$0xff]
    %v1189 = vld [vmem:[#allocation8 + $0xf8] sm:$0xff]
    %1190 = vmatprep.subr.mxu0 0.0
    %1191 = vmatpush1.msra.mxu0 %v1158
    %1192 = vmatprep.subr.mxu0 0.0
    %1193 = vmatpush1.msra.mxu0 %v1159
    %1194 = vmatprep.subr.mxu0 0.0
    %1195 = vmatpush1.msra.mxu0 %v1160
    %1196 = vmatprep.subr.mxu0 0.0
    %1197 = vmatpush1.msra.mxu0 %v1161
    %1198 = vmatprep.subr.mxu0 0.0
    %1199 = vmatpush1.msra.mxu0 %v1162
    %1200 = vmatprep.subr.mxu0 0.0
    %1201 = vmatpush1.msra.mxu0 %v1163
    %1202 = vmatprep.subr.mxu0 0.0
    %1203 = vmatpush1.msra.mxu0 %v1164
    %1204 = vmatprep.subr.mxu0 0.0
    %1205 = vmatpush1.msra.mxu0 %v1165
    %1206 = vmatprep.subr.mxu0 0.0
    %1207 = vmatpush1.msra.mxu0 %v1166
    %1208 = vmatprep.subr.mxu0 0.0
    %1209 = vmatpush1.msra.mxu0 %v1167
    %1210 = vmatprep.subr.mxu0 0.0
    %1211 = vmatpush1.msra.mxu0 %v1168
    %1212 = vmatprep.subr.mxu0 0.0
    %1213 = vmatpush1.msra.mxu0 %v1169
    %1214 = vmatprep.subr.mxu0 0.0
    %1215 = vmatpush1.msra.mxu0 %v1170
    %1216 = vmatprep.subr.mxu0 0.0
    %1217 = vmatpush1.msra.mxu0 %v1171
    %1218 = vmatprep.subr.mxu0 0.0
    %1219 = vmatpush1.msra.mxu0 %v1172
    %1220 = vmatprep.subr.mxu0 0.0
    %1221 = vmatpush1.msra.mxu0 %v1173
    %1222 = vmatprep.subr.mxu0 0.0
    %1223 = vmatpush1.msra.mxu0 %v1174
    %1224 = vmatprep.subr.mxu0 0.0
    %1225 = vmatpush1.msra.mxu0 %v1175
    %1226 = vmatprep.subr.mxu0 0.0
    %1227 = vmatpush1.msra.mxu0 %v1176
    %1228 = vmatprep.subr.mxu0 0.0
    %1229 = vmatpush1.msra.mxu0 %v1177
    %1230 = vmatprep.subr.mxu0 0.0
    %1231 = vmatpush1.msra.mxu0 %v1178
    %1232 = vmatprep.subr.mxu0 0.0
    %1233 = vmatpush1.msra.mxu0 %v1179
    %1234 = vmatprep.subr.mxu0 0.0
    %1235 = vmatpush1.msra.mxu0 %v1180
    %1236 = vmatprep.subr.mxu0 0.0
    %1237 = vmatpush1.msra.mxu0 %v1181
    %1238 = vmatprep.subr.mxu0 0.0
    %1239 = vmatpush1.msra.mxu0 %v1182
    %1240 = vmatprep.subr.mxu0 0.0
    %1241 = vmatpush1.msra.mxu0 %v1183
    %1242 = vmatprep.subr.mxu0 0.0
    %1243 = vmatpush1.msra.mxu0 %v1184
    %1244 = vmatprep.subr.mxu0 0.0
    %1245 = vmatpush1.msra.mxu0 %v1185
    %1246 = vmatprep.subr.mxu0 0.0
    %1247 = vmatpush1.msra.mxu0 %v1186
    %1248 = vmatprep.subr.mxu0 0.0
    %1249 = vmatpush1.msra.mxu0 %v1187
    %1250 = vmatprep.subr.mxu0 0.0
    %1251 = vmatpush1.msra.mxu0 %v1188
    %1252 = vmatprep.subr.mxu0 0.0
    %1253 = vmatpush1.msra.mxu0 %v1189
    %1254 = vmatprep.mubr.f32.mxu0 %v1151
    %1255 = vmatmul.mubr.f32.gmra.mrb[0].mxu0 %v1150
    %v1256 = vpop.f32.mrb[0].mxu0
    %v1257 = vadd.f32 0.0, %v1256
    %v1258 = vpop.f32.mrb[0].mxu0
    %1259 = vmatprep.mubr.f32.mxu0 %v1153
    %1260 = vmatmul.mubr.f32.gmra.mrb[0].mxu0 %v1152
    %v1261 = vpop.f32.mrb[0].mxu0
    %v1262 = vadd.f32 0.0, %v1261
    %v1263 = vpop.f32.mrb[0].mxu0
    %1264 = vmatprep.mubr.f32.mxu0 %v1155
    %1265 = vmatmul.mubr.f32.gmra.mrb[0].mxu0 %v1154
    %v1266 = vpop.f32.mrb[0].mxu0
    %v1267 = vadd.f32 0.0, %v1266
    %v1268 = vpop.f32.mrb[0].mxu0
    %1269 = vmatprep.mubr.f32.mxu0 %v1157
    %1270 = vmatmul.mubr.f32.gmra.mrb[0].mxu0 %v1156
    %v1271 = vpop.f32.mrb[0].mxu0
    %v1272 = vadd.f32 0.0, %v1271
    %v1273 = vpop.f32.mrb[0].mxu0
    %1274 = vdwg.mxu0
    %vm1275 = vcmask 31744
    %v1276 = vsel %vm1275, %v1257, -inf
    %v1277 = vsel %vm1275, %v1262, -inf
    %v1278 = vsel %vm1275, %v1267, -inf
    %v1279 = vsel %vm1275, %v1272, -inf
    %v1280 = vmax.f32 %v1276, %v1277
    %v1281 = vmax.f32 %v1278, %v1279
    %v1282 = vmax.f32 %v1280, %v1281
    %v1283 = vsub.f32 %v1257, %v1282
    %v1284 = vsub.f32 %v1262, %v1282
    %v1285 = vsub.f32 %v1267, %v1282
    %v1286 = vsub.f32 %v1272, %v1282
    %v1287 = vmul.f32 %v1283, 1.442695
    %v1288 = vpow.pop %v1287
    %v1289 = vmul.f32 %v1284, 1.442695
    %v1290 = vpow.pop %v1289
    %v1291 = vmul.f32 %v1285, 1.442695
    %v1292 = vpow.pop %v1291
    %v1293 = vmul.f32 %v1286, 1.442695
    %v1294 = vpow.pop %v1293
    %v1295 = vsel %vm1275, %v1288, 0.0
    %v1296 = vsel %vm1275, %v1290, 0.0
    %v1297 = vadd.f32 %v1295, %v1296
    %v1298 = vsel %vm1275, %v1292, 0.0
    %v1299 = vadd.f32 %v1297, %v1298
    %v1300 = vsel %vm1275, %v1294, 0.0
    %v1301 = vadd.f32 %v1299, %v1300
    %v1302 = vrcp.pop %v1301
    %v1303 = vmul.f32 %v1288, %v1302
    %v1304 = vmul.f32 %v1290, %v1302
    %v1305 = vmul.f32 %v1292, %v1302
    %v1306 = vmul.f32 %v1294, %v1302
    %v1307 = vld [vmem:[#allocation10] sm:$0xff]
    %v1309 = vcombine.high %v1307, %v1307
    %v1311 = vsel %vm1275, %v1303, 0
    %v1314 = vsel %vm1275, %v1304, 0
    %v1317 = vsel %vm1275, %v1305, 0
    %v1320 = vsel %vm1275, %v1306, 0
    %vm1322 = vcmask 1043456
    %v1323 = vsel %vm1322, %v1307, 0
    %v1325 = vsel %vm1322, %v1309, 0
    %1327 = vmatprep.subr.mxu0 %v1325
    %1328 = vmatpush1.msra.mxu0 %v1323
    %1329 = vmatprep.subr.mxu0 0.0
    %1330 = vmatpush1.msra.mxu0 0.0
    %1331 = vmatprep.subr.mxu0 0.0
    %1332 = vmatpush1.msra.mxu0 0.0
    %1333 = vmatprep.subr.mxu0 0.0
    %1334 = vmatpush1.msra.mxu0 0.0
    %1335 = vmatprep.subr.mxu0 0.0
    %1336 = vmatpush1.msra.mxu0 0.0
    %1337 = vmatprep.subr.mxu0 0.0
    %1338 = vmatpush1.msra.mxu0 0.0
    %1339 = vmatprep.subr.mxu0 0.0
    %1340 = vmatpush1.msra.mxu0 0.0
    %1341 = vmatprep.subr.mxu0 0.0
    %1342 = vmatpush1.msra.mxu0 0.0
    %1343 = vmatprep.subr.mxu0 0.0
    %1344 = vmatpush1.msra.mxu0 0.0
    %1345 = vmatprep.subr.mxu0 0.0
    %1346 = vmatpush1.msra.mxu0 0.0
    %1347 = vmatprep.subr.mxu0 0.0
    %1348 = vmatpush1.msra.mxu0 0.0
    %1349 = vmatprep.subr.mxu0 0.0
    %1350 = vmatpush1.msra.mxu0 0.0
    %1351 = vmatprep.subr.mxu0 0.0
    %1352 = vmatpush1.msra.mxu0 0.0
    %1353 = vmatprep.subr.mxu0 0.0
    %1354 = vmatpush1.msra.mxu0 0.0
    %1355 = vmatprep.subr.mxu0 0.0
    %1356 = vmatpush1.msra.mxu0 0.0
    %1357 = vmatprep.subr.mxu0 0.0
    %1358 = vmatpush1.msra.mxu0 0.0
    %1359 = vmatprep.subr.mxu0 0.0
    %1360 = vmatpush1.msra.mxu0 0.0
    %1361 = vmatprep.subr.mxu0 0.0
    %1362 = vmatpush1.msra.mxu0 0.0
    %1363 = vmatprep.subr.mxu0 0.0
    %1364 = vmatpush1.msra.mxu0 0.0
    %1365 = vmatprep.subr.mxu0 0.0
    %1366 = vmatpush1.msra.mxu0 0.0
    %1367 = vmatprep.subr.mxu0 0.0
    %1368 = vmatpush1.msra.mxu0 0.0
    %1369 = vmatprep.subr.mxu0 0.0
    %1370 = vmatpush1.msra.mxu0 0.0
    %1371 = vmatprep.subr.mxu0 0.0
    %1372 = vmatpush1.msra.mxu0 0.0
    %1373 = vmatprep.subr.mxu0 0.0
    %1374 = vmatpush1.msra.mxu0 0.0
    %1375 = vmatprep.subr.mxu0 0.0
    %1376 = vmatpush1.msra.mxu0 0.0
    %1377 = vmatprep.subr.mxu0 0.0
    %1378 = vmatpush1.msra.mxu0 0.0
    %1379 = vmatprep.subr.mxu0 0.0
    %1380 = vmatpush1.msra.mxu0 0.0
    %1381 = vmatprep.subr.mxu0 0.0
    %1382 = vmatpush1.msra.mxu0 0.0
    %1383 = vmatprep.subr.mxu0 0.0
    %1384 = vmatpush1.msra.mxu0 0.0
    %1385 = vmatprep.subr.mxu0 0.0
    %1386 = vmatpush1.msra.mxu0 0.0
    %1387 = vmatprep.subr.mxu0 0.0
    %1388 = vmatpush1.msra.mxu0 0.0
    %1389 = vmatprep.subr.mxu0 0.0
    %1390 = vmatpush1.msra.mxu0 0.0
    %1391 = vmatprep.mubr.f32.mxu0 0.0
    %1392 = vmatmul.mubr.f32.gmra.mrb[0].mxu0 %v1311
    %v1393 = vpop.f32.mrb[0].mxu0
    %v1394 = vadd.f32 0.0, %v1393
    %v1395 = vpop.f32.mrb[0].mxu0
    %v1396 = vadd.f32 0.0, %v1395
    %1397 = vmatprep.mubr.f32.mxu0 0.0
    %1398 = vmatmul.mubr.f32.gmra.mrb[0].mxu0 %v1314
    %v1399 = vpop.f32.mrb[0].mxu0
    %v1400 = vadd.f32 0.0, %v1399
    %v1401 = vpop.f32.mrb[0].mxu0
    %v1402 = vadd.f32 0.0, %v1401
    %1403 = vmatprep.mubr.f32.mxu0 0.0
    %1404 = vmatmul.mubr.f32.gmra.mrb[0].mxu0 %v1317
    %v1405 = vpop.f32.mrb[0].mxu0
    %v1406 = vadd.f32 0.0, %v1405
    %v1407 = vpop.f32.mrb[0].mxu0
    %v1408 = vadd.f32 0.0, %v1407
    %1409 = vmatprep.mubr.f32.mxu0 0.0
    %1410 = vmatmul.mubr.f32.gmra.mrb[0].mxu0 %v1320
    %v1411 = vpop.f32.mrb[0].mxu0
    %v1412 = vadd.f32 0.0, %v1411
    %v1413 = vpop.f32.mrb[0].mxu0
    %v1414 = vadd.f32 0.0, %v1413
    %1415 = vdwg.mxu0
    %v1416 = vmul.f32 %v1394, %v883
    %v1417 = vmul.f32 %v1396, %v885
    %v1418 = vmul.f32 %v1400, %v887
    %v1419 = vmul.f32 %v1402, %v889
    %v1420 = vmul.f32 %v1406, %v893
    %v1421 = vmul.f32 %v1408, %v895
    %v1422 = vmul.f32 %v1412, %v897
    %v1423 = vmul.f32 %v1414, %v899
    %v1424 = vadd.f32 %v1416, %v1418
    %v1425 = vadd.f32 %v1424, %v1420
    %v1426 = vadd.f32 %v1425, %v1422
    %v1427 = vadd.f32 %v1417, %v1419
    %v1428 = vadd.f32 %v1427, %v1421
    %v1429 = vadd.f32 %v1428, %v1423
    %v1430 = vpack.c.bf16 %v1426, %v1426
    %v1431 = vpack.c.bf16 %v1429, %v1429
    %v1432 = vld [vmem:[#allocation20] sm:$0xff]
    %v1433 = vld [vmem:[#allocation20 + $0x8] sm:$0xff]
    %v1434 = vld [vmem:[#allocation20 + $0x10] sm:$0xff]
    %v1435 = vld [vmem:[#allocation20 + $0x18] sm:$0xff]
    %v1436 = vld [vmem:[#allocation20 + $0x20] sm:$0xff]
    %v1437 = vld [vmem:[#allocation20 + $0x28] sm:$0xff]
    %v1438 = vld [vmem:[#allocation20 + $0x30] sm:$0xff]
    %v1439 = vld [vmem:[#allocation20 + $0x38] sm:$0xff]
    %v1440 = vld [vmem:[#allocation20 + $0x40] sm:$0xff]
    %v1441 = vld [vmem:[#allocation20 + $0x48] sm:$0xff]
    %v1442 = vld [vmem:[#allocation20 + $0x50] sm:$0xff]
    %v1443 = vld [vmem:[#allocation20 + $0x58] sm:$0xff]
    %v1444 = vld [vmem:[#allocation20 + $0x60] sm:$0xff]
    %v1445 = vld [vmem:[#allocation20 + $0x68] sm:$0xff]
    %v1446 = vld [vmem:[#allocation20 + $0x70] sm:$0xff]
    %v1447 = vld [vmem:[#allocation20 + $0x78] sm:$0xff]
    %v1448 = vld [vmem:[#allocation20 + $0x80] sm:$0xff]
    %v1449 = vld [vmem:[#allocation20 + $0x88] sm:$0xff]
    %v1450 = vld [vmem:[#allocation20 + $0x90] sm:$0xff]
    %v1451 = vld [vmem:[#allocation20 + $0x98] sm:$0xff]
    %v1452 = vld [vmem:[#allocation20 + $0xa0] sm:$0xff]
    %v1453 = vld [vmem:[#allocation20 + $0xa8] sm:$0xff]
    %v1454 = vld [vmem:[#allocation20 + $0xb0] sm:$0xff]
    %v1455 = vld [vmem:[#allocation20 + $0xb8] sm:$0xff]
    %v1456 = vld [vmem:[#allocation20 + $0xc0] sm:$0xff]
    %v1457 = vld [vmem:[#allocation20 + $0xc8] sm:$0xff]
    %v1458 = vld [vmem:[#allocation20 + $0xd0] sm:$0xff]
    %v1459 = vld [vmem:[#allocation20 + $0xd8] sm:$0xff]
    %v1460 = vld [vmem:[#allocation20 + $0xe0] sm:$0xff]
    %v1461 = vld [vmem:[#allocation20 + $0xe8] sm:$0xff]
    %v1462 = vld [vmem:[#allocation20 + $0xf0] sm:$0xff]
    %v1463 = vld [vmem:[#allocation20 + $0xf8] sm:$0xff]
    %v1464 = vld [vmem:[#allocation22] sm:$0x3]
    %v1466 = vlaneseq
    %v1467 = vshrl.u32 %v1466, 7
    %v1468 = vsub.s32 0, %v1467
    %v1469 = vrot.slane %v1464, %v1468
    %v1470 = vlaneseq
    %v1471 = vshrl.u32 %v1470, 7
    %v1472 = vsub.s32 1, %v1471
    %v1473 = vrot.slane %v1464, %v1472
    %v1508 = vunpack.c.l.b16 %v1432
    %v1509 = vunpack.c.h.b16 %v1432
    %v1510 = vunpack.c.l.b16 %v1433
    %v1511 = vunpack.c.h.b16 %v1433
    %v1512 = vunpack.c.l.b16 %v1434
    %v1513 = vunpack.c.h.b16 %v1434
    %v1514 = vunpack.c.l.b16 %v1435
    %v1515 = vunpack.c.h.b16 %v1435
    %v1516 = vunpack.c.l.b16 %v1436
    %v1517 = vunpack.c.h.b16 %v1436
    %v1518 = vunpack.c.l.b16 %v1437
    %v1519 = vunpack.c.h.b16 %v1437
    %v1520 = vunpack.c.l.b16 %v1438
    %v1521 = vunpack.c.h.b16 %v1438
    %v1522 = vunpack.c.l.b16 %v1439
    %v1523 = vunpack.c.h.b16 %v1439
    %v1524 = vunpack.c.l.b16 %v1440
    %v1525 = vunpack.c.h.b16 %v1440
    %v1526 = vunpack.c.l.b16 %v1441
    %v1527 = vunpack.c.h.b16 %v1441
    %v1528 = vunpack.c.l.b16 %v1442
    %v1529 = vunpack.c.h.b16 %v1442
    %v1530 = vunpack.c.l.b16 %v1443
    %v1531 = vunpack.c.h.b16 %v1443
    %v1532 = vunpack.c.l.b16 %v1444
    %v1533 = vunpack.c.h.b16 %v1444
    %v1534 = vunpack.c.l.b16 %v1445
    %v1535 = vunpack.c.h.b16 %v1445
    %v1536 = vunpack.c.l.b16 %v1446
    %v1537 = vunpack.c.h.b16 %v1446
    %v1538 = vunpack.c.l.b16 %v1447
    %v1539 = vunpack.c.h.b16 %v1447
    %v1540 = vunpack.c.l.b16 %v1448
    %v1541 = vunpack.c.h.b16 %v1448
    %v1542 = vunpack.c.l.b16 %v1449
    %v1543 = vunpack.c.h.b16 %v1449
    %v1544 = vunpack.c.l.b16 %v1450
    %v1545 = vunpack.c.h.b16 %v1450
    %v1546 = vunpack.c.l.b16 %v1451
    %v1547 = vunpack.c.h.b16 %v1451
    %v1548 = vunpack.c.l.b16 %v1452
    %v1549 = vunpack.c.h.b16 %v1452
    %v1550 = vunpack.c.l.b16 %v1453
    %v1551 = vunpack.c.h.b16 %v1453
    %v1552 = vunpack.c.l.b16 %v1454
    %v1553 = vunpack.c.h.b16 %v1454
    %v1554 = vunpack.c.l.b16 %v1455
    %v1555 = vunpack.c.h.b16 %v1455
    %v1556 = vunpack.c.l.b16 %v1456
    %v1557 = vunpack.c.h.b16 %v1456
    %v1558 = vunpack.c.l.b16 %v1457
    %v1559 = vunpack.c.h.b16 %v1457
    %v1560 = vunpack.c.l.b16 %v1458
    %v1561 = vunpack.c.h.b16 %v1458
    %v1562 = vunpack.c.l.b16 %v1459
    %v1563 = vunpack.c.h.b16 %v1459
    %v1564 = vunpack.c.l.b16 %v1460
    %v1565 = vunpack.c.h.b16 %v1460
    %v1566 = vunpack.c.l.b16 %v1461
    %v1567 = vunpack.c.h.b16 %v1461
    %v1568 = vunpack.c.l.b16 %v1462
    %v1569 = vunpack.c.h.b16 %v1462
    %v1570 = vunpack.c.l.b16 %v1463
    %v1571 = vunpack.c.h.b16 %v1463
    %v1572 = vpack.c.b16 %v1510, %v1508
    %v1573 = vpack.c.b16 %v1511, %v1509
    %v1574 = vpack.c.b16 %v1514, %v1512
    %v1575 = vpack.c.b16 %v1515, %v1513
    %v1576 = vpack.c.b16 %v1518, %v1516
    %v1577 = vpack.c.b16 %v1519, %v1517
    %v1578 = vpack.c.b16 %v1522, %v1520
    %v1579 = vpack.c.b16 %v1523, %v1521
    %v1580 = vpack.c.b16 %v1526, %v1524
    %v1581 = vpack.c.b16 %v1527, %v1525
    %v1582 = vpack.c.b16 %v1530, %v1528
    %v1583 = vpack.c.b16 %v1531, %v1529
    %v1584 = vpack.c.b16 %v1534, %v1532
    %v1585 = vpack.c.b16 %v1535, %v1533
    %v1586 = vpack.c.b16 %v1538, %v1536
    %v1587 = vpack.c.b16 %v1539, %v1537
    %v1588 = vpack.c.b16 %v1542, %v1540
    %v1589 = vpack.c.b16 %v1543, %v1541
    %v1590 = vpack.c.b16 %v1546, %v1544
    %v1591 = vpack.c.b16 %v1547, %v1545
    %v1592 = vpack.c.b16 %v1550, %v1548
    %v1593 = vpack.c.b16 %v1551, %v1549
    %v1594 = vpack.c.b16 %v1554, %v1552
    %v1595 = vpack.c.b16 %v1555, %v1553
    %v1596 = vpack.c.b16 %v1558, %v1556
    %v1597 = vpack.c.b16 %v1559, %v1557
    %v1598 = vpack.c.b16 %v1562, %v1560
    %v1599 = vpack.c.b16 %v1563, %v1561
    %v1600 = vpack.c.b16 %v1566, %v1564
    %v1601 = vpack.c.b16 %v1567, %v1565
    %v1602 = vpack.c.b16 %v1570, %v1568
    %v1603 = vpack.c.b16 %v1571, %v1569
    %1636 = vmatprep.subr.bf16.mxu0 %v1573
    %1637 = vmatpush1.bf16.msra.mxu0 %v1572
    %1638 = vmatprep.subr.bf16.mxu0 %v1575
    %1639 = vmatpush1.bf16.msra.mxu0 %v1574
    %1640 = vmatprep.subr.bf16.mxu0 %v1577
    %1641 = vmatpush1.bf16.msra.mxu0 %v1576
    %1642 = vmatprep.subr.bf16.mxu0 %v1579
    %1643 = vmatpush1.bf16.msra.mxu0 %v1578
    %1644 = vmatprep.subr.bf16.mxu0 %v1581
    %1645 = vmatpush1.bf16.msra.mxu0 %v1580
    %1646 = vmatprep.subr.bf16.mxu0 %v1583
    %1647 = vmatpush1.bf16.msra.mxu0 %v1582
    %1648 = vmatprep.subr.bf16.mxu0 %v1585
    %1649 = vmatpush1.bf16.msra.mxu0 %v1584
    %1650 = vmatprep.subr.bf16.mxu0 %v1587
    %1651 = vmatpush1.bf16.msra.mxu0 %v1586
    %1652 = vmatprep.subr.bf16.mxu0 %v1589
    %1653 = vmatpush1.bf16.msra.mxu0 %v1588
    %1654 = vmatprep.subr.bf16.mxu0 %v1591
    %1655 = vmatpush1.bf16.msra.mxu0 %v1590
    %1656 = vmatprep.subr.bf16.mxu0 %v1593
    %1657 = vmatpush1.bf16.msra.mxu0 %v1592
    %1658 = vmatprep.subr.bf16.mxu0 %v1595
    %1659 = vmatpush1.bf16.msra.mxu0 %v1594
    %1660 = vmatprep.subr.bf16.mxu0 %v1597
    %1661 = vmatpush1.bf16.msra.mxu0 %v1596
    %1662 = vmatprep.subr.bf16.mxu0 %v1599
    %1663 = vmatpush1.bf16.msra.mxu0 %v1598
    %1664 = vmatprep.subr.bf16.mxu0 %v1601
    %1665 = vmatpush1.bf16.msra.mxu0 %v1600
    %1666 = vmatprep.subr.bf16.mxu0 %v1603
    %1667 = vmatpush1.bf16.msra.mxu0 %v1602
    %1668 = vmatprep.mubr.bf16.mxu0 %v1431
    %1669 = vmatmul.mubr.bf16.gmra.mrb[0].mxu0 %v1430
    %v1670 = vpop.f32.mrb[0].mxu0
    %v1671 = vadd.f32 %v1469, %v1670
    %v1672 = vpop.f32.mrb[0].mxu0
    %v1673 = vadd.f32 %v1473, %v1672
    %v1674 = vpop.f32.mrb[0].mxu0
    %v1675 = vpop.f32.mrb[0].mxu0
    %1676 = vdwg.mxu0
    %v1677 = vadd.f32 %v1671, %v268
    %v1678 = vadd.f32 %v1673, %v269
    %v1679 = vadd.f32 %v1677, %v1678
    %1680 = vadd.xlane.f32.xlu0 %v1679
    %v1681 = vpop.xlane.xlu0 %1680
    %v1682 = vmul.f32 %v1681, %v292
    %v1683 = vsub.f32 %v1677, %v1682
    %v1684 = vsub.f32 %v1678, %v1682
    %v1685 = vmul.f32 %v1683, %v1683
    %v1686 = vmul.f32 %v1684, %v1684
    %v1687 = vadd.f32 %v1685, %v1686
    %1688 = vadd.xlane.f32.xlu0 %v1687
    %v1689 = vpop.xlane.xlu0 %1688
    %v1690 = vmul.f32 %v1689, %v292
    %v1691 = vadd.f32 %v1690, 1e-05
    %v1692 = vrsqrt.pop %v1691
    %v1693 = vmul.f32 %v1683, %v1692
    %v1694 = vmul.f32 %v1684, %v1692
    %v1695 = vld [vmem:[#allocation23] sm:$0x3]
    %v1697 = vlaneseq
    %v1698 = vshrl.u32 %v1697, 7
    %v1699 = vsub.s32 0, %v1698
    %v1700 = vrot.slane %v1695, %v1699
    %v1701 = vlaneseq
    %v1702 = vshrl.u32 %v1701, 7
    %v1703 = vsub.s32 1, %v1702
    %v1704 = vrot.slane %v1695, %v1703
    %v1707 = vmul.f32 %v1693, %v1700
    %v1708 = vmul.f32 %v1694, %v1704
    %v1709 = vld [vmem:[#allocation25] sm:$0x3]
    %v1711 = vlaneseq
    %v1712 = vshrl.u32 %v1711, 7
    %v1713 = vsub.s32 0, %v1712
    %v1714 = vrot.slane %v1709, %v1713
    %v1715 = vlaneseq
    %v1716 = vshrl.u32 %v1715, 7
    %v1717 = vsub.s32 1, %v1716
    %v1718 = vrot.slane %v1709, %v1717
    %v1721 = vadd.f32 %v1707, %v1714
    %v1722 = vadd.f32 %v1708, %v1718
    %v1723 = vpack.c.bf16 %v1721, %v1721
    %v1724 = vpack.c.bf16 %v1722, %v1722
    %v1725 = vld [vmem:[#allocation26] sm:$0xff]
    %v1726 = vld [vmem:[#allocation26 + $0x8] sm:$0xff]
    %v1727 = vld [vmem:[#allocation26 + $0x10] sm:$0xff]
    %v1728 = vld [vmem:[#allocation26 + $0x18] sm:$0xff]
    %v1729 = vld [vmem:[#allocation26 + $0x20] sm:$0xff]
    %v1730 = vld [vmem:[#allocation26 + $0x28] sm:$0xff]
    %v1731 = vld [vmem:[#allocation26 + $0x30] sm:$0xff]
    %v1732 = vld [vmem:[#allocation26 + $0x38] sm:$0xff]
    %v1733 = vld [vmem:[#allocation26 + $0x40] sm:$0xff]
    %v1734 = vld [vmem:[#allocation26 + $0x48] sm:$0xff]
    %v1735 = vld [vmem:[#allocation26 + $0x50] sm:$0xff]
    %v1736 = vld [vmem:[#allocation26 + $0x58] sm:$0xff]
    %v1737 = vld [vmem:[#allocation26 + $0x60] sm:$0xff]
    %v1738 = vld [vmem:[#allocation26 + $0x68] sm:$0xff]
    %v1739 = vld [vmem:[#allocation26 + $0x70] sm:$0xff]
    %v1740 = vld [vmem:[#allocation26 + $0x78] sm:$0xff]
    %v1741 = vld [vmem:[#allocation26 + $0x80] sm:$0xff]
    %v1742 = vld [vmem:[#allocation26 + $0x88] sm:$0xff]
    %v1743 = vld [vmem:[#allocation26 + $0x90] sm:$0xff]
    %v1744 = vld [vmem:[#allocation26 + $0x98] sm:$0xff]
    %v1745 = vld [vmem:[#allocation26 + $0xa0] sm:$0xff]
    %v1746 = vld [vmem:[#allocation26 + $0xa8] sm:$0xff]
    %v1747 = vld [vmem:[#allocation26 + $0xb0] sm:$0xff]
    %v1748 = vld [vmem:[#allocation26 + $0xb8] sm:$0xff]
    %v1749 = vld [vmem:[#allocation26 + $0xc0] sm:$0xff]
    %v1750 = vld [vmem:[#allocation26 + $0xc8] sm:$0xff]
    %v1751 = vld [vmem:[#allocation26 + $0xd0] sm:$0xff]
    %v1752 = vld [vmem:[#allocation26 + $0xd8] sm:$0xff]
    %v1753 = vld [vmem:[#allocation26 + $0xe0] sm:$0xff]
    %v1754 = vld [vmem:[#allocation26 + $0xe8] sm:$0xff]
    %v1755 = vld [vmem:[#allocation26 + $0xf0] sm:$0xff]
    %v1756 = vld [vmem:[#allocation26 + $0xf8] sm:$0xff]
    %v1757 = vld [vmem:[#allocation26 + $0x100] sm:$0xff]
    %v1758 = vld [vmem:[#allocation26 + $0x108] sm:$0xff]
    %v1759 = vld [vmem:[#allocation26 + $0x110] sm:$0xff]
    %v1760 = vld [vmem:[#allocation26 + $0x118] sm:$0xff]
    %v1761 = vld [vmem:[#allocation26 + $0x120] sm:$0xff]
    %v1762 = vld [vmem:[#allocation26 + $0x128] sm:$0xff]
    %v1763 = vld [vmem:[#allocation26 + $0x130] sm:$0xff]
    %v1764 = vld [vmem:[#allocation26 + $0x138] sm:$0xff]
    %v1765 = vld [vmem:[#allocation26 + $0x140] sm:$0xff]
    %v1766 = vld [vmem:[#allocation26 + $0x148] sm:$0xff]
    %v1767 = vld [vmem:[#allocation26 + $0x150] sm:$0xff]
    %v1768 = vld [vmem:[#allocation26 + $0x158] sm:$0xff]
    %v1769 = vld [vmem:[#allocation26 + $0x160] sm:$0xff]
    %v1770 = vld [vmem:[#allocation26 + $0x168] sm:$0xff]
    %v1771 = vld [vmem:[#allocation26 + $0x170] sm:$0xff]
    %v1772 = vld [vmem:[#allocation26 + $0x178] sm:$0xff]
    %v1773 = vld [vmem:[#allocation26 + $0x180] sm:$0xff]
    %v1774 = vld [vmem:[#allocation26 + $0x188] sm:$0xff]
    %v1775 = vld [vmem:[#allocation26 + $0x190] sm:$0xff]
    %v1776 = vld [vmem:[#allocation26 + $0x198] sm:$0xff]
    %v1777 = vld [vmem:[#allocation26 + $0x1a0] sm:$0xff]
    %v1778 = vld [vmem:[#allocation26 + $0x1a8] sm:$0xff]
    %v1779 = vld [vmem:[#allocation26 + $0x1b0] sm:$0xff]
    %v1780 = vld [vmem:[#allocation26 + $0x1b8] sm:$0xff]
    %v1781 = vld [vmem:[#allocation26 + $0x1c0] sm:$0xff]
    %v1782 = vld [vmem:[#allocation26 + $0x1c8] sm:$0xff]
    %v1783 = vld [vmem:[#allocation26 + $0x1d0] sm:$0xff]
    %v1784 = vld [vmem:[#allocation26 + $0x1d8] sm:$0xff]
    %v1785 = vld [vmem:[#allocation26 + $0x1e0] sm:$0xff]
    %v1786 = vld [vmem:[#allocation26 + $0x1e8] sm:$0xff]
    %v1787 = vld [vmem:[#allocation26 + $0x1f0] sm:$0xff]
    %v1788 = vld [vmem:[#allocation26 + $0x1f8] sm:$0xff]
    %v1789 = vld [vmem:[#allocation26 + $0x200] sm:$0xff]
    %v1790 = vld [vmem:[#allocation26 + $0x208] sm:$0xff]
    %v1791 = vld [vmem:[#allocation26 + $0x210] sm:$0xff]
    %v1792 = vld [vmem:[#allocation26 + $0x218] sm:$0xff]
    %v1793 = vld [vmem:[#allocation26 + $0x220] sm:$0xff]
    %v1794 = vld [vmem:[#allocation26 + $0x228] sm:$0xff]
    %v1795 = vld [vmem:[#allocation26 + $0x230] sm:$0xff]
    %v1796 = vld [vmem:[#allocation26 + $0x238] sm:$0xff]
    %v1797 = vld [vmem:[#allocation26 + $0x240] sm:$0xff]
    %v1798 = vld [vmem:[#allocation26 + $0x248] sm:$0xff]
    %v1799 = vld [vmem:[#allocation26 + $0x250] sm:$0xff]
    %v1800 = vld [vmem:[#allocation26 + $0x258] sm:$0xff]
    %v1801 = vld [vmem:[#allocation26 + $0x260] sm:$0xff]
    %v1802 = vld [vmem:[#allocation26 + $0x268] sm:$0xff]
    %v1803 = vld [vmem:[#allocation26 + $0x270] sm:$0xff]
    %v1804 = vld [vmem:[#allocation26 + $0x278] sm:$0xff]
    %v1805 = vld [vmem:[#allocation26 + $0x280] sm:$0xff]
    %v1806 = vld [vmem:[#allocation26 + $0x288] sm:$0xff]
    %v1807 = vld [vmem:[#allocation26 + $0x290] sm:$0xff]
    %v1808 = vld [vmem:[#allocation26 + $0x298] sm:$0xff]
    %v1809 = vld [vmem:[#allocation26 + $0x2a0] sm:$0xff]
    %v1810 = vld [vmem:[#allocation26 + $0x2a8] sm:$0xff]
    %v1811 = vld [vmem:[#allocation26 + $0x2b0] sm:$0xff]
    %v1812 = vld [vmem:[#allocation26 + $0x2b8] sm:$0xff]
    %v1813 = vld [vmem:[#allocation26 + $0x2c0] sm:$0xff]
    %v1814 = vld [vmem:[#allocation26 + $0x2c8] sm:$0xff]
    %v1815 = vld [vmem:[#allocation26 + $0x2d0] sm:$0xff]
    %v1816 = vld [vmem:[#allocation26 + $0x2d8] sm:$0xff]
    %v1817 = vld [vmem:[#allocation26 + $0x2e0] sm:$0xff]
    %v1818 = vld [vmem:[#allocation26 + $0x2e8] sm:$0xff]
    %v1819 = vld [vmem:[#allocation26 + $0x2f0] sm:$0xff]
    %v1820 = vld [vmem:[#allocation26 + $0x2f8] sm:$0xff]
    %v1821 = vld [vmem:[#allocation26 + $0x300] sm:$0xff]
    %v1822 = vld [vmem:[#allocation26 + $0x308] sm:$0xff]
    %v1823 = vld [vmem:[#allocation26 + $0x310] sm:$0xff]
    %v1824 = vld [vmem:[#allocation26 + $0x318] sm:$0xff]
    %v1825 = vld [vmem:[#allocation26 + $0x320] sm:$0xff]
    %v1826 = vld [vmem:[#allocation26 + $0x328] sm:$0xff]
    %v1827 = vld [vmem:[#allocation26 + $0x330] sm:$0xff]
    %v1828 = vld [vmem:[#allocation26 + $0x338] sm:$0xff]
    %v1829 = vld [vmem:[#allocation26 + $0x340] sm:$0xff]
    %v1830 = vld [vmem:[#allocation26 + $0x348] sm:$0xff]
    %v1831 = vld [vmem:[#allocation26 + $0x350] sm:$0xff]
    %v1832 = vld [vmem:[#allocation26 + $0x358] sm:$0xff]
    %v1833 = vld [vmem:[#allocation26 + $0x360] sm:$0xff]
    %v1834 = vld [vmem:[#allocation26 + $0x368] sm:$0xff]
    %v1835 = vld [vmem:[#allocation26 + $0x370] sm:$0xff]
    %v1836 = vld [vmem:[#allocation26 + $0x378] sm:$0xff]
    %v1837 = vld [vmem:[#allocation26 + $0x380] sm:$0xff]
    %v1838 = vld [vmem:[#allocation26 + $0x388] sm:$0xff]
    %v1839 = vld [vmem:[#allocation26 + $0x390] sm:$0xff]
    %v1840 = vld [vmem:[#allocation26 + $0x398] sm:$0xff]
    %v1841 = vld [vmem:[#allocation26 + $0x3a0] sm:$0xff]
    %v1842 = vld [vmem:[#allocation26 + $0x3a8] sm:$0xff]
    %v1843 = vld [vmem:[#allocation26 + $0x3b0] sm:$0xff]
    %v1844 = vld [vmem:[#allocation26 + $0x3b8] sm:$0xff]
    %v1845 = vld [vmem:[#allocation26 + $0x3c0] sm:$0xff]
    %v1846 = vld [vmem:[#allocation26 + $0x3c8] sm:$0xff]
    %v1847 = vld [vmem:[#allocation26 + $0x3d0] sm:$0xff]
    %v1848 = vld [vmem:[#allocation26 + $0x3d8] sm:$0xff]
    %v1849 = vld [vmem:[#allocation26 + $0x3e0] sm:$0xff]
    %v1850 = vld [vmem:[#allocation26 + $0x3e8] sm:$0xff]
    %v1851 = vld [vmem:[#allocation26 + $0x3f0] sm:$0xff]
    %v1852 = vld [vmem:[#allocation26 + $0x3f8] sm:$0xff]
    %v1853 = vld [vmem:[#allocation28] sm:$0xff]
    %v1855 = vlaneseq
    %v1856 = vshrl.u32 %v1855, 7
    %v1857 = vsub.s32 0, %v1856
    %v1858 = vrot.slane %v1853, %v1857
    %v1859 = vlaneseq
    %v1860 = vshrl.u32 %v1859, 7
    %v1861 = vsub.s32 1, %v1860
    %v1862 = vrot.slane %v1853, %v1861
    %v1863 = vlaneseq
    %v1864 = vshrl.u32 %v1863, 7
    %v1865 = vsub.s32 2, %v1864
    %v1866 = vrot.slane %v1853, %v1865
    %v1867 = vlaneseq
    %v1868 = vshrl.u32 %v1867, 7
    %v1869 = vsub.s32 3, %v1868
    %v1870 = vrot.slane %v1853, %v1869
    %v1871 = vlaneseq
    %v1872 = vshrl.u32 %v1871, 7
    %v1873 = vsub.s32 4, %v1872
    %v1874 = vrot.slane %v1853, %v1873
    %v1875 = vlaneseq
    %v1876 = vshrl.u32 %v1875, 7
    %v1877 = vsub.s32 5, %v1876
    %v1878 = vrot.slane %v1853, %v1877
    %v1879 = vlaneseq
    %v1880 = vshrl.u32 %v1879, 7
    %v1881 = vsub.s32 6, %v1880
    %v1882 = vrot.slane %v1853, %v1881
    %v1883 = vlaneseq
    %v1884 = vshrl.u32 %v1883, 7
    %v1885 = vsub.s32 7, %v1884
    %v1886 = vrot.slane %v1853, %v1885
    %v2023 = vunpack.c.l.b16 %v1725
    %v2024 = vunpack.c.h.b16 %v1725
    %v2025 = vunpack.c.l.b16 %v1726
    %v2026 = vunpack.c.h.b16 %v1726
    %v2027 = vunpack.c.l.b16 %v1727
    %v2028 = vunpack.c.h.b16 %v1727
    %v2029 = vunpack.c.l.b16 %v1728
    %v2030 = vunpack.c.h.b16 %v1728
    %v2031 = vunpack.c.l.b16 %v1729
    %v2032 = vunpack.c.h.b16 %v1729
    %v2033 = vunpack.c.l.b16 %v1730
    %v2034 = vunpack.c.h.b16 %v1730
    %v2035 = vunpack.c.l.b16 %v1731
    %v2036 = vunpack.c.h.b16 %v1731
    %v2037 = vunpack.c.l.b16 %v1732
    %v2038 = vunpack.c.h.b16 %v1732
    %v2039 = vunpack.c.l.b16 %v1733
    %v2040 = vunpack.c.h.b16 %v1733
    %v2041 = vunpack.c.l.b16 %v1734
    %v2042 = vunpack.c.h.b16 %v1734
    %v2043 = vunpack.c.l.b16 %v1735
    %v2044 = vunpack.c.h.b16 %v1735
    %v2045 = vunpack.c.l.b16 %v1736
    %v2046 = vunpack.c.h.b16 %v1736
    %v2047 = vunpack.c.l.b16 %v1737
    %v2048 = vunpack.c.h.b16 %v1737
    %v2049 = vunpack.c.l.b16 %v1738
    %v2050 = vunpack.c.h.b16 %v1738
    %v2051 = vunpack.c.l.b16 %v1739
    %v2052 = vunpack.c.h.b16 %v1739
    %v2053 = vunpack.c.l.b16 %v1740
    %v2054 = vunpack.c.h.b16 %v1740
    %v2055 = vunpack.c.l.b16 %v1741
    %v2056 = vunpack.c.h.b16 %v1741
    %v2057 = vunpack.c.l.b16 %v1742
    %v2058 = vunpack.c.h.b16 %v1742
    %v2059 = vunpack.c.l.b16 %v1743
    %v2060 = vunpack.c.h.b16 %v1743
    %v2061 = vunpack.c.l.b16 %v1744
    %v2062 = vunpack.c.h.b16 %v1744
    %v2063 = vunpack.c.l.b16 %v1745
    %v2064 = vunpack.c.h.b16 %v1745
    %v2065 = vunpack.c.l.b16 %v1746
    %v2066 = vunpack.c.h.b16 %v1746
    %v2067 = vunpack.c.l.b16 %v1747
    %v2068 = vunpack.c.h.b16 %v1747
    %v2069 = vunpack.c.l.b16 %v1748
    %v2070 = vunpack.c.h.b16 %v1748
    %v2071 = vunpack.c.l.b16 %v1749
    %v2072 = vunpack.c.h.b16 %v1749
    %v2073 = vunpack.c.l.b16 %v1750
    %v2074 = vunpack.c.h.b16 %v1750
    %v2075 = vunpack.c.l.b16 %v1751
    %v2076 = vunpack.c.h.b16 %v1751
    %v2077 = vunpack.c.l.b16 %v1752
    %v2078 = vunpack.c.h.b16 %v1752
    %v2079 = vunpack.c.l.b16 %v1753
    %v2080 = vunpack.c.h.b16 %v1753
    %v2081 = vunpack.c.l.b16 %v1754
    %v2082 = vunpack.c.h.b16 %v1754
    %v2083 = vunpack.c.l.b16 %v1755
    %v2084 = vunpack.c.h.b16 %v1755
    %v2085 = vunpack.c.l.b16 %v1756
    %v2086 = vunpack.c.h.b16 %v1756
    %v2087 = vunpack.c.l.b16 %v1757
    %v2088 = vunpack.c.h.b16 %v1757
    %v2089 = vunpack.c.l.b16 %v1758
    %v2090 = vunpack.c.h.b16 %v1758
    %v2091 = vunpack.c.l.b16 %v1759
    %v2092 = vunpack.c.h.b16 %v1759
    %v2093 = vunpack.c.l.b16 %v1760
    %v2094 = vunpack.c.h.b16 %v1760
    %v2095 = vunpack.c.l.b16 %v1761
    %v2096 = vunpack.c.h.b16 %v1761
    %v2097 = vunpack.c.l.b16 %v1762
    %v2098 = vunpack.c.h.b16 %v1762
    %v2099 = vunpack.c.l.b16 %v1763
    %v2100 = vunpack.c.h.b16 %v1763
    %v2101 = vunpack.c.l.b16 %v1764
    %v2102 = vunpack.c.h.b16 %v1764
    %v2103 = vunpack.c.l.b16 %v1765
    %v2104 = vunpack.c.h.b16 %v1765
    %v2105 = vunpack.c.l.b16 %v1766
    %v2106 = vunpack.c.h.b16 %v1766
    %v2107 = vunpack.c.l.b16 %v1767
    %v2108 = vunpack.c.h.b16 %v1767
    %v2109 = vunpack.c.l.b16 %v1768
    %v2110 = vunpack.c.h.b16 %v1768
    %v2111 = vunpack.c.l.b16 %v1769
    %v2112 = vunpack.c.h.b16 %v1769
    %v2113 = vunpack.c.l.b16 %v1770
    %v2114 = vunpack.c.h.b16 %v1770
    %v2115 = vunpack.c.l.b16 %v1771
    %v2116 = vunpack.c.h.b16 %v1771
    %v2117 = vunpack.c.l.b16 %v1772
    %v2118 = vunpack.c.h.b16 %v1772
    %v2119 = vunpack.c.l.b16 %v1773
    %v2120 = vunpack.c.h.b16 %v1773
    %v2121 = vunpack.c.l.b16 %v1774
    %v2122 = vunpack.c.h.b16 %v1774
    %v2123 = vunpack.c.l.b16 %v1775
    %v2124 = vunpack.c.h.b16 %v1775
    %v2125 = vunpack.c.l.b16 %v1776
    %v2126 = vunpack.c.h.b16 %v1776
    %v2127 = vunpack.c.l.b16 %v1777
    %v2128 = vunpack.c.h.b16 %v1777
    %v2129 = vunpack.c.l.b16 %v1778
    %v2130 = vunpack.c.h.b16 %v1778
    %v2131 = vunpack.c.l.b16 %v1779
    %v2132 = vunpack.c.h.b16 %v1779
    %v2133 = vunpack.c.l.b16 %v1780
    %v2134 = vunpack.c.h.b16 %v1780
    %v2135 = vunpack.c.l.b16 %v1781
    %v2136 = vunpack.c.h.b16 %v1781
    %v2137 = vunpack.c.l.b16 %v1782
    %v2138 = vunpack.c.h.b16 %v1782
    %v2139 = vunpack.c.l.b16 %v1783
    %v2140 = vunpack.c.h.b16 %v1783
    %v2141 = vunpack.c.l.b16 %v1784
    %v2142 = vunpack.c.h.b16 %v1784
    %v2143 = vunpack.c.l.b16 %v1785
    %v2144 = vunpack.c.h.b16 %v1785
    %v2145 = vunpack.c.l.b16 %v1786
    %v2146 = vunpack.c.h.b16 %v1786
    %v2147 = vunpack.c.l.b16 %v1787
    %v2148 = vunpack.c.h.b16 %v1787
    %v2149 = vunpack.c.l.b16 %v1788
    %v2150 = vunpack.c.h.b16 %v1788
    %v2151 = vunpack.c.l.b16 %v1789
    %v2152 = vunpack.c.h.b16 %v1789
    %v2153 = vunpack.c.l.b16 %v1790
    %v2154 = vunpack.c.h.b16 %v1790
    %v2155 = vunpack.c.l.b16 %v1791
    %v2156 = vunpack.c.h.b16 %v1791
    %v2157 = vunpack.c.l.b16 %v1792
    %v2158 = vunpack.c.h.b16 %v1792
    %v2159 = vunpack.c.l.b16 %v1793
    %v2160 = vunpack.c.h.b16 %v1793
    %v2161 = vunpack.c.l.b16 %v1794
    %v2162 = vunpack.c.h.b16 %v1794
    %v2163 = vunpack.c.l.b16 %v1795
    %v2164 = vunpack.c.h.b16 %v1795
    %v2165 = vunpack.c.l.b16 %v1796
    %v2166 = vunpack.c.h.b16 %v1796
    %v2167 = vunpack.c.l.b16 %v1797
    %v2168 = vunpack.c.h.b16 %v1797
    %v2169 = vunpack.c.l.b16 %v1798
    %v2170 = vunpack.c.h.b16 %v1798
    %v2171 = vunpack.c.l.b16 %v1799
    %v2172 = vunpack.c.h.b16 %v1799
    %v2173 = vunpack.c.l.b16 %v1800
    %v2174 = vunpack.c.h.b16 %v1800
    %v2175 = vunpack.c.l.b16 %v1801
    %v2176 = vunpack.c.h.b16 %v1801
    %v2177 = vunpack.c.l.b16 %v1802
    %v2178 = vunpack.c.h.b16 %v1802
    %v2179 = vunpack.c.l.b16 %v1803
    %v2180 = vunpack.c.h.b16 %v1803
    %v2181 = vunpack.c.l.b16 %v1804
    %v2182 = vunpack.c.h.b16 %v1804
    %v2183 = vunpack.c.l.b16 %v1805
    %v2184 = vunpack.c.h.b16 %v1805
    %v2185 = vunpack.c.l.b16 %v1806
    %v2186 = vunpack.c.h.b16 %v1806
    %v2187 = vunpack.c.l.b16 %v1807
    %v2188 = vunpack.c.h.b16 %v1807
    %v2189 = vunpack.c.l.b16 %v1808
    %v2190 = vunpack.c.h.b16 %v1808
    %v2191 = vunpack.c.l.b16 %v1809
    %v2192 = vunpack.c.h.b16 %v1809
    %v2193 = vunpack.c.l.b16 %v1810
    %v2194 = vunpack.c.h.b16 %v1810
    %v2195 = vunpack.c.l.b16 %v1811
    %v2196 = vunpack.c.h.b16 %v1811
    %v2197 = vunpack.c.l.b16 %v1812
    %v2198 = vunpack.c.h.b16 %v1812
    %v2199 = vunpack.c.l.b16 %v1813
    %v2200 = vunpack.c.h.b16 %v1813
    %v2201 = vunpack.c.l.b16 %v1814
    %v2202 = vunpack.c.h.b16 %v1814
    %v2203 = vunpack.c.l.b16 %v1815
    %v2204 = vunpack.c.h.b16 %v1815
    %v2205 = vunpack.c.l.b16 %v1816
    %v2206 = vunpack.c.h.b16 %v1816
    %v2207 = vunpack.c.l.b16 %v1817
    %v2208 = vunpack.c.h.b16 %v1817
    %v2209 = vunpack.c.l.b16 %v1818
    %v2210 = vunpack.c.h.b16 %v1818
    %v2211 = vunpack.c.l.b16 %v1819
    %v2212 = vunpack.c.h.b16 %v1819
    %v2213 = vunpack.c.l.b16 %v1820
    %v2214 = vunpack.c.h.b16 %v1820
    %v2215 = vunpack.c.l.b16 %v1821
    %v2216 = vunpack.c.h.b16 %v1821
    %v2217 = vunpack.c.l.b16 %v1822
    %v2218 = vunpack.c.h.b16 %v1822
    %v2219 = vunpack.c.l.b16 %v1823
    %v2220 = vunpack.c.h.b16 %v1823
    %v2221 = vunpack.c.l.b16 %v1824
    %v2222 = vunpack.c.h.b16 %v1824
    %v2223 = vunpack.c.l.b16 %v1825
    %v2224 = vunpack.c.h.b16 %v1825
    %v2225 = vunpack.c.l.b16 %v1826
    %v2226 = vunpack.c.h.b16 %v1826
    %v2227 = vunpack.c.l.b16 %v1827
    %v2228 = vunpack.c.h.b16 %v1827
    %v2229 = vunpack.c.l.b16 %v1828
    %v2230 = vunpack.c.h.b16 %v1828
    %v2231 = vunpack.c.l.b16 %v1829
    %v2232 = vunpack.c.h.b16 %v1829
    %v2233 = vunpack.c.l.b16 %v1830
    %v2234 = vunpack.c.h.b16 %v1830
    %v2235 = vunpack.c.l.b16 %v1831
    %v2236 = vunpack.c.h.b16 %v1831
    %v2237 = vunpack.c.l.b16 %v1832
    %v2238 = vunpack.c.h.b16 %v1832
    %v2239 = vunpack.c.l.b16 %v1833
    %v2240 = vunpack.c.h.b16 %v1833
    %v2241 = vunpack.c.l.b16 %v1834
    %v2242 = vunpack.c.h.b16 %v1834
    %v2243 = vunpack.c.l.b16 %v1835
    %v2244 = vunpack.c.h.b16 %v1835
    %v2245 = vunpack.c.l.b16 %v1836
    %v2246 = vunpack.c.h.b16 %v1836
    %v2247 = vunpack.c.l.b16 %v1837
    %v2248 = vunpack.c.h.b16 %v1837
    %v2249 = vunpack.c.l.b16 %v1838
    %v2250 = vunpack.c.h.b16 %v1838
    %v2251 = vunpack.c.l.b16 %v1839
    %v2252 = vunpack.c.h.b16 %v1839
    %v2253 = vunpack.c.l.b16 %v1840
    %v2254 = vunpack.c.h.b16 %v1840
    %v2255 = vunpack.c.l.b16 %v1841
    %v2256 = vunpack.c.h.b16 %v1841
    %v2257 = vunpack.c.l.b16 %v1842
    %v2258 = vunpack.c.h.b16 %v1842
    %v2259 = vunpack.c.l.b16 %v1843
    %v2260 = vunpack.c.h.b16 %v1843
    %v2261 = vunpack.c.l.b16 %v1844
    %v2262 = vunpack.c.h.b16 %v1844
    %v2263 = vunpack.c.l.b16 %v1845
    %v2264 = vunpack.c.h.b16 %v1845
    %v2265 = vunpack.c.l.b16 %v1846
    %v2266 = vunpack.c.h.b16 %v1846
    %v2267 = vunpack.c.l.b16 %v1847
    %v2268 = vunpack.c.h.b16 %v1847
    %v2269 = vunpack.c.l.b16 %v1848
    %v2270 = vunpack.c.h.b16 %v1848
    %v2271 = vunpack.c.l.b16 %v1849
    %v2272 = vunpack.c.h.b16 %v1849
    %v2273 = vunpack.c.l.b16 %v1850
    %v2274 = vunpack.c.h.b16 %v1850
    %v2275 = vunpack.c.l.b16 %v1851
    %v2276 = vunpack.c.h.b16 %v1851
    %v2277 = vunpack.c.l.b16 %v1852
    %v2278 = vunpack.c.h.b16 %v1852
    %v2279 = vpack.c.b16 %v2031, %v2023
    %v2280 = vpack.c.b16 %v2032, %v2024
    %v2281 = vpack.c.b16 %v2033, %v2025
    %v2282 = vpack.c.b16 %v2034, %v2026
    %v2283 = vpack.c.b16 %v2035, %v2027
    %v2284 = vpack.c.b16 %v2036, %v2028
    %v2285 = vpack.c.b16 %v2037, %v2029
    %v2286 = vpack.c.b16 %v2038, %v2030
    %v2287 = vpack.c.b16 %v2047, %v2039
    %v2288 = vpack.c.b16 %v2048, %v2040
    %v2289 = vpack.c.b16 %v2049, %v2041
    %v2290 = vpack.c.b16 %v2050, %v2042
    %v2291 = vpack.c.b16 %v2051, %v2043
    %v2292 = vpack.c.b16 %v2052, %v2044
    %v2293 = vpack.c.b16 %v2053, %v2045
    %v2294 = vpack.c.b16 %v2054, %v2046
    %v2295 = vpack.c.b16 %v2063, %v2055
    %v2296 = vpack.c.b16 %v2064, %v2056
    %v2297 = vpack.c.b16 %v2065, %v2057
    %v2298 = vpack.c.b16 %v2066, %v2058
    %v2299 = vpack.c.b16 %v2067, %v2059
    %v2300 = vpack.c.b16 %v2068, %v2060
    %v2301 = vpack.c.b16 %v2069, %v2061
    %v2302 = vpack.c.b16 %v2070, %v2062
    %v2303 = vpack.c.b16 %v2079, %v2071
    %v2304 = vpack.c.b16 %v2080, %v2072
    %v2305 = vpack.c.b16 %v2081, %v2073
    %v2306 = vpack.c.b16 %v2082, %v2074
    %v2307 = vpack.c.b16 %v2083, %v2075
    %v2308 = vpack.c.b16 %v2084, %v2076
    %v2309 = vpack.c.b16 %v2085, %v2077
    %v2310 = vpack.c.b16 %v2086, %v2078
    %v2311 = vpack.c.b16 %v2095, %v2087
    %v2312 = vpack.c.b16 %v2096, %v2088
    %v2313 = vpack.c.b16 %v2097, %v2089
    %v2314 = vpack.c.b16 %v2098, %v2090
    %v2315 = vpack.c.b16 %v2099, %v2091
    %v2316 = vpack.c.b16 %v2100, %v2092
    %v2317 = vpack.c.b16 %v2101, %v2093
    %v2318 = vpack.c.b16 %v2102, %v2094
    %v2319 = vpack.c.b16 %v2111, %v2103
    %v2320 = vpack.c.b16 %v2112, %v2104
    %v2321 = vpack.c.b16 %v2113, %v2105
    %v2322 = vpack.c.b16 %v2114, %v2106
    %v2323 = vpack.c.b16 %v2115, %v2107
    %v2324 = vpack.c.b16 %v2116, %v2108
    %v2325 = vpack.c.b16 %v2117, %v2109
    %v2326 = vpack.c.b16 %v2118, %v2110
    %v2327 = vpack.c.b16 %v2127, %v2119
    %v2328 = vpack.c.b16 %v2128, %v2120
    %v2329 = vpack.c.b16 %v2129, %v2121
    %v2330 = vpack.c.b16 %v2130, %v2122
    %v2331 = vpack.c.b16 %v2131, %v2123
    %v2332 = vpack.c.b16 %v2132, %v2124
    %v2333 = vpack.c.b16 %v2133, %v2125
    %v2334 = vpack.c.b16 %v2134, %v2126
    %v2335 = vpack.c.b16 %v2143, %v2135
    %v2336 = vpack.c.b16 %v2144, %v2136
    %v2337 = vpack.c.b16 %v2145, %v2137
    %v2338 = vpack.c.b16 %v2146, %v2138
    %v2339 = vpack.c.b16 %v2147, %v2139
    %v2340 = vpack.c.b16 %v2148, %v2140
    %v2341 = vpack.c.b16 %v2149, %v2141
    %v2342 = vpack.c.b16 %v2150, %v2142
    %v2343 = vpack.c.b16 %v2159, %v2151
    %v2344 = vpack.c.b16 %v2160, %v2152
    %v2345 = vpack.c.b16 %v2161, %v2153
    %v2346 = vpack.c.b16 %v2162, %v2154
    %v2347 = vpack.c.b16 %v2163, %v2155
    %v2348 = vpack.c.b16 %v2164, %v2156
    %v2349 = vpack.c.b16 %v2165, %v2157
    %v2350 = vpack.c.b16 %v2166, %v2158
    %v2351 = vpack.c.b16 %v2175, %v2167
    %v2352 = vpack.c.b16 %v2176, %v2168
    %v2353 = vpack.c.b16 %v2177, %v2169
    %v2354 = vpack.c.b16 %v2178, %v2170
    %v2355 = vpack.c.b16 %v2179, %v2171
    %v2356 = vpack.c.b16 %v2180, %v2172
    %v2357 = vpack.c.b16 %v2181, %v2173
    %v2358 = vpack.c.b16 %v2182, %v2174
    %v2359 = vpack.c.b16 %v2191, %v2183
    %v2360 = vpack.c.b16 %v2192, %v2184
    %v2361 = vpack.c.b16 %v2193, %v2185
    %v2362 = vpack.c.b16 %v2194, %v2186
    %v2363 = vpack.c.b16 %v2195, %v2187
    %v2364 = vpack.c.b16 %v2196, %v2188
    %v2365 = vpack.c.b16 %v2197, %v2189
    %v2366 = vpack.c.b16 %v2198, %v2190
    %v2367 = vpack.c.b16 %v2207, %v2199
    %v2368 = vpack.c.b16 %v2208, %v2200
    %v2369 = vpack.c.b16 %v2209, %v2201
    %v2370 = vpack.c.b16 %v2210, %v2202
    %v2371 = vpack.c.b16 %v2211, %v2203
    %v2372 = vpack.c.b16 %v2212, %v2204
    %v2373 = vpack.c.b16 %v2213, %v2205
    %v2374 = vpack.c.b16 %v2214, %v2206
    %v2375 = vpack.c.b16 %v2223, %v2215
    %v2376 = vpack.c.b16 %v2224, %v2216
    %v2377 = vpack.c.b16 %v2225, %v2217
    %v2378 = vpack.c.b16 %v2226, %v2218
    %v2379 = vpack.c.b16 %v2227, %v2219
    %v2380 = vpack.c.b16 %v2228, %v2220
    %v2381 = vpack.c.b16 %v2229, %v2221
    %v2382 = vpack.c.b16 %v2230, %v2222
    %v2383 = vpack.c.b16 %v2239, %v2231
    %v2384 = vpack.c.b16 %v2240, %v2232
    %v2385 = vpack.c.b16 %v2241, %v2233
    %v2386 = vpack.c.b16 %v2242, %v2234
    %v2387 = vpack.c.b16 %v2243, %v2235
    %v2388 = vpack.c.b16 %v2244, %v2236
    %v2389 = vpack.c.b16 %v2245, %v2237
    %v2390 = vpack.c.b16 %v2246, %v2238
    %v2391 = vpack.c.b16 %v2255, %v2247
    %v2392 = vpack.c.b16 %v2256, %v2248
    %v2393 = vpack.c.b16 %v2257, %v2249
    %v2394 = vpack.c.b16 %v2258, %v2250
    %v2395 = vpack.c.b16 %v2259, %v2251
    %v2396 = vpack.c.b16 %v2260, %v2252
    %v2397 = vpack.c.b16 %v2261, %v2253
    %v2398 = vpack.c.b16 %v2262, %v2254
    %v2399 = vpack.c.b16 %v2271, %v2263
    %v2400 = vpack.c.b16 %v2272, %v2264
    %v2401 = vpack.c.b16 %v2273, %v2265
    %v2402 = vpack.c.b16 %v2274, %v2266
    %v2403 = vpack.c.b16 %v2275, %v2267
    %v2404 = vpack.c.b16 %v2276, %v2268
    %v2405 = vpack.c.b16 %v2277, %v2269
    %v2406 = vpack.c.b16 %v2278, %v2270
    %2535 = vmatprep.subr.bf16.mxu0 %v2280
    %2536 = vmatpush1.bf16.msra.mxu0 %v2279
    %2537 = vmatprep.subr.bf16.mxu0 %v2288
    %2538 = vmatpush1.bf16.msra.mxu0 %v2287
    %2539 = vmatprep.subr.bf16.mxu0 %v2296
    %2540 = vmatpush1.bf16.msra.mxu0 %v2295
    %2541 = vmatprep.subr.bf16.mxu0 %v2304
    %2542 = vmatpush1.bf16.msra.mxu0 %v2303
    %2543 = vmatprep.subr.bf16.mxu0 %v2312
    %2544 = vmatpush1.bf16.msra.mxu0 %v2311
    %2545 = vmatprep.subr.bf16.mxu0 %v2320
    %2546 = vmatpush1.bf16.msra.mxu0 %v2319
    %2547 = vmatprep.subr.bf16.mxu0 %v2328
    %2548 = vmatpush1.bf16.msra.mxu0 %v2327
    %2549 = vmatprep.subr.bf16.mxu0 %v2336
    %2550 = vmatpush1.bf16.msra.mxu0 %v2335
    %2551 = vmatprep.subr.bf16.mxu0 %v2344
    %2552 = vmatpush1.bf16.msra.mxu0 %v2343
    %2553 = vmatprep.subr.bf16.mxu0 %v2352
    %2554 = vmatpush1.bf16.msra.mxu0 %v2351
    %2555 = vmatprep.subr.bf16.mxu0 %v2360
    %2556 = vmatpush1.bf16.msra.mxu0 %v2359
    %2557 = vmatprep.subr.bf16.mxu0 %v2368
    %2558 = vmatpush1.bf16.msra.mxu0 %v2367
    %2559 = vmatprep.subr.bf16.mxu0 %v2376
    %2560 = vmatpush1.bf16.msra.mxu0 %v2375
    %2561 = vmatprep.subr.bf16.mxu0 %v2384
    %2562 = vmatpush1.bf16.msra.mxu0 %v2383
    %2563 = vmatprep.subr.bf16.mxu0 %v2392
    %2564 = vmatpush1.bf16.msra.mxu0 %v2391
    %2565 = vmatprep.subr.bf16.mxu0 %v2400
    %2566 = vmatpush1.bf16.msra.mxu0 %v2399
    %2567 = vmatprep.mubr.bf16.mxu0 %v1724
    %2568 = vmatmul.mubr.bf16.gmra.mrb[0].mxu0 %v1723
    %v2569 = vpop.f32.mrb[0].mxu0
    %v2570 = vadd.f32 %v1858, %v2569
    %v2571 = vpop.f32.mrb[0].mxu0
    %v2572 = vadd.f32 %v1862, %v2571
    %v2573 = vpop.f32.mrb[0].mxu0
    %v2574 = vpop.f32.mrb[0].mxu0
    %2575 = vdwg.mxu0
    %2576 = vmatprep.subr.bf16.mxu0 %v2282
    %2577 = vmatpush1.bf16.msra.mxu0 %v2281
    %2578 = vmatprep.subr.bf16.mxu0 %v2290
    %2579 = vmatpush1.bf16.msra.mxu0 %v2289
    %2580 = vmatprep.subr.bf16.mxu0 %v2298
    %2581 = vmatpush1.bf16.msra.mxu0 %v2297
    %2582 = vmatprep.subr.bf16.mxu0 %v2306
    %2583 = vmatpush1.bf16.msra.mxu0 %v2305
    %2584 = vmatprep.subr.bf16.mxu0 %v2314
    %2585 = vmatpush1.bf16.msra.mxu0 %v2313
    %2586 = vmatprep.subr.bf16.mxu0 %v2322
    %2587 = vmatpush1.bf16.msra.mxu0 %v2321
    %2588 = vmatprep.subr.bf16.mxu0 %v2330
    %2589 = vmatpush1.bf16.msra.mxu0 %v2329
    %2590 = vmatprep.subr.bf16.mxu0 %v2338
    %2591 = vmatpush1.bf16.msra.mxu0 %v2337
    %2592 = vmatprep.subr.bf16.mxu0 %v2346
    %2593 = vmatpush1.bf16.msra.mxu0 %v2345
    %2594 = vmatprep.subr.bf16.mxu0 %v2354
    %2595 = vmatpush1.bf16.msra.mxu0 %v2353
    %2596 = vmatprep.subr.bf16.mxu0 %v2362
    %2597 = vmatpush1.bf16.msra.mxu0 %v2361
    %2598 = vmatprep.subr.bf16.mxu0 %v2370
    %2599 = vmatpush1.bf16.msra.mxu0 %v2369
    %2600 = vmatprep.subr.bf16.mxu0 %v2378
    %2601 = vmatpush1.bf16.msra.mxu0 %v2377
    %2602 = vmatprep.subr.bf16.mxu0 %v2386
    %2603 = vmatpush1.bf16.msra.mxu0 %v2385
    %2604 = vmatprep.subr.bf16.mxu0 %v2394
    %2605 = vmatpush1.bf16.msra.mxu0 %v2393
    %2606 = vmatprep.subr.bf16.mxu0 %v2402
    %2607 = vmatpush1.bf16.msra.mxu0 %v2401
    %2608 = vmatprep.mubr.bf16.mxu0 %v1724
    %2609 = vmatmul.mubr.bf16.gmra.mrb[0].mxu0 %v1723
    %v2610 = vpop.f32.mrb[0].mxu0
    %v2611 = vadd.f32 %v1866, %v2610
    %v2612 = vpop.f32.mrb[0].mxu0
    %v2613 = vadd.f32 %v1870, %v2612
    %v2614 = vpop.f32.mrb[0].mxu0
    %v2615 = vpop.f32.mrb[0].mxu0
    %2616 = vdwg.mxu0
    %2617 = vmatprep.subr.bf16.mxu0 %v2284
    %2618 = vmatpush1.bf16.msra.mxu0 %v2283
    %2619 = vmatprep.subr.bf16.mxu0 %v2292
    %2620 = vmatpush1.bf16.msra.mxu0 %v2291
    %2621 = vmatprep.subr.bf16.mxu0 %v2300
    %2622 = vmatpush1.bf16.msra.mxu0 %v2299
    %2623 = vmatprep.subr.bf16.mxu0 %v2308
    %2624 = vmatpush1.bf16.msra.mxu0 %v2307
    %2625 = vmatprep.subr.bf16.mxu0 %v2316
    %2626 = vmatpush1.bf16.msra.mxu0 %v2315
    %2627 = vmatprep.subr.bf16.mxu0 %v2324
    %2628 = vmatpush1.bf16.msra.mxu0 %v2323
    %2629 = vmatprep.subr.bf16.mxu0 %v2332
    %2630 = vmatpush1.bf16.msra.mxu0 %v2331
    %2631 = vmatprep.subr.bf16.mxu0 %v2340
    %2632 = vmatpush1.bf16.msra.mxu0 %v2339
    %2633 = vmatprep.subr.bf16.mxu0 %v2348
    %2634 = vmatpush1.bf16.msra.mxu0 %v2347
    %2635 = vmatprep.subr.bf16.mxu0 %v2356
    %2636 = vmatpush1.bf16.msra.mxu0 %v2355
    %2637 = vmatprep.subr.bf16.mxu0 %v2364
    %2638 = vmatpush1.bf16.msra.mxu0 %v2363
    %2639 = vmatprep.subr.bf16.mxu0 %v2372
    %2640 = vmatpush1.bf16.msra.mxu0 %v2371
    %2641 = vmatprep.subr.bf16.mxu0 %v2380
    %2642 = vmatpush1.bf16.msra.mxu0 %v2379
    %2643 = vmatprep.subr.bf16.mxu0 %v2388
    %2644 = vmatpush1.bf16.msra.mxu0 %v2387
    %2645 = vmatprep.subr.bf16.mxu0 %v2396
    %2646 = vmatpush1.bf16.msra.mxu0 %v2395
    %2647 = vmatprep.subr.bf16.mxu0 %v2404
    %2648 = vmatpush1.bf16.msra.mxu0 %v2403
    %2649 = vmatprep.mubr.bf16.mxu0 %v1724
    %2650 = vmatmul.mubr.bf16.gmra.mrb[0].mxu0 %v1723
    %v2651 = vpop.f32.mrb[0].mxu0
    %v2652 = vadd.f32 %v1874, %v2651
    %v2653 = vpop.f32.mrb[0].mxu0
    %v2654 = vadd.f32 %v1878, %v2653
    %v2655 = vpop.f32.mrb[0].mxu0
    %v2656 = vpop.f32.mrb[0].mxu0
    %2657 = vdwg.mxu0
    %2658 = vmatprep.subr.bf16.mxu0 %v2286
    %2659 = vmatpush1.bf16.msra.mxu0 %v2285
    %2660 = vmatprep.subr.bf16.mxu0 %v2294
    %2661 = vmatpush1.bf16.msra.mxu0 %v2293
    %2662 = vmatprep.subr.bf16.mxu0 %v2302
    %2663 = vmatpush1.bf16.msra.mxu0 %v2301
    %2664 = vmatprep.subr.bf16.mxu0 %v2310
    %2665 = vmatpush1.bf16.msra.mxu0 %v2309
    %2666 = vmatprep.subr.bf16.mxu0 %v2318
    %2667 = vmatpush1.bf16.msra.mxu0 %v2317
    %2668 = vmatprep.subr.bf16.mxu0 %v2326
    %2669 = vmatpush1.bf16.msra.mxu0 %v2325
    %2670 = vmatprep.subr.bf16.mxu0 %v2334
    %2671 = vmatpush1.bf16.msra.mxu0 %v2333
    %2672 = vmatprep.subr.bf16.mxu0 %v2342
    %2673 = vmatpush1.bf16.msra.mxu0 %v2341
    %2674 = vmatprep.subr.bf16.mxu0 %v2350
    %2675 = vmatpush1.bf16.msra.mxu0 %v2349
    %2676 = vmatprep.subr.bf16.mxu0 %v2358
    %2677 = vmatpush1.bf16.msra.mxu0 %v2357
    %2678 = vmatprep.subr.bf16.mxu0 %v2366
    %2679 = vmatpush1.bf16.msra.mxu0 %v2365
    %2680 = vmatprep.subr.bf16.mxu0 %v2374
    %2681 = vmatpush1.bf16.msra.mxu0 %v2373
    %2682 = vmatprep.subr.bf16.mxu0 %v2382
    %2683 = vmatpush1.bf16.msra.mxu0 %v2381
    %2684 = vmatprep.subr.bf16.mxu0 %v2390
    %2685 = vmatpush1.bf16.msra.mxu0 %v2389
    %2686 = vmatprep.subr.bf16.mxu0 %v2398
    %2687 = vmatpush1.bf16.msra.mxu0 %v2397
    %2688 = vmatprep.subr.bf16.mxu0 %v2406
    %2689 = vmatpush1.bf16.msra.mxu0 %v2405
    %2690 = vmatprep.mubr.bf16.mxu0 %v1724
    %2691 = vmatmul.mubr.bf16.gmra.mrb[0].mxu0 %v1723
    %v2692 = vpop.f32.mrb[0].mxu0
    %v2693 = vadd.f32 %v1882, %v2692
    %v2694 = vpop.f32.mrb[0].mxu0
    %v2695 = vadd.f32 %v1886, %v2694
    %v2696 = vpop.f32.mrb[0].mxu0
    %v2697 = vpop.f32.mrb[0].mxu0
    %2698 = vdwg.mxu0
    %v2699 = vxor.u32 %v2570, 2147483648
    %v2700 = vxor.u32 %v2572, 2147483648
    %v2701 = vmul.f32 %v2699, 1.442695
    %v2702 = vpow.pop %v2701
    %v2703 = vmul.f32 %v2700, 1.442695
    %v2704 = vpow.pop %v2703
    %v2705 = vadd.f32 %v2702, 1.0
    %v2706 = vadd.f32 %v2704, 1.0
    %v2707 = vrcp.pop %v2705
    %v2708 = vmul.f32 1.0, %v2707
    %v2709 = vrcp.pop %v2706
    %v2710 = vmul.f32 1.0, %v2709
    %v2711 = vxor.u32 %v2611, 2147483648
    %v2712 = vxor.u32 %v2613, 2147483648
    %v2713 = vmul.f32 %v2711, 1.442695
    %v2714 = vpow.pop %v2713
    %v2715 = vmul.f32 %v2712, 1.442695
    %v2716 = vpow.pop %v2715
    %v2717 = vadd.f32 %v2714, 1.0
    %v2718 = vadd.f32 %v2716, 1.0
    %v2719 = vrcp.pop %v2717
    %v2720 = vmul.f32 1.0, %v2719
    %v2721 = vrcp.pop %v2718
    %v2722 = vmul.f32 1.0, %v2721
    %v2723 = vxor.u32 %v2652, 2147483648
    %v2724 = vxor.u32 %v2654, 2147483648
    %v2725 = vmul.f32 %v2723, 1.442695
    %v2726 = vpow.pop %v2725
    %v2727 = vmul.f32 %v2724, 1.442695
    %v2728 = vpow.pop %v2727
    %v2729 = vadd.f32 %v2726, 1.0
    %v2730 = vadd.f32 %v2728, 1.0
    %v2731 = vrcp.pop %v2729
    %v2732 = vmul.f32 1.0, %v2731
    %v2733 = vrcp.pop %v2730
    %v2734 = vmul.f32 1.0, %v2733
    %v2735 = vxor.u32 %v2693, 2147483648
    %v2736 = vxor.u32 %v2695, 2147483648
    %v2737 = vmul.f32 %v2735, 1.442695
    %v2738 = vpow.pop %v2737
    %v2739 = vmul.f32 %v2736, 1.442695
    %v2740 = vpow.pop %v2739
    %v2741 = vadd.f32 %v2738, 1.0
    %v2742 = vadd.f32 %v2740, 1.0
    %v2743 = vrcp.pop %v2741
    %v2744 = vmul.f32 1.0, %v2743
    %v2745 = vrcp.pop %v2742
    %v2746 = vmul.f32 1.0, %v2745
    %v2747 = vmul.f32 %v2720, %v278
    %v2748 = vmul.f32 %v2722, %v279
    %v2749 = vmul.f32 %v2708, %v2732
    %v2750 = vmul.f32 %v2710, %v2734
    %v2751 = vadd.f32 %v2747, %v2749
    %v2752 = vadd.f32 %v2748, %v2750
    %v2753 = vtanh.pop %v2751
    %v2754 = vtanh.pop %v2752
    %v2755 = vmul.f32 %v2744, %v2753
    %v2756 = vmul.f32 %v2746, %v2754
    %2757 = vst [vmem:[#allocation29] sm:$0xff] %v2755
    %2758 = vst [vmem:[#allocation29 + $0x8] sm:$0xff] %v2756
    %2759 = vst [vmem:[#allocation30] sm:$0xff] %v2751
    %2760 = vst [vmem:[#allocation30 + $0x8] sm:$0xff] %v2752
    // Predicated region
    $region138: #{tpu_custom_call.1} parent=1 // pred_check
      _
    $region139: #{tpu_custom_call.1} parent=1 // pred_check_branch
      %2762 = sbr.rel (0) target = $region141
    $region140: #{tpu_custom_call.1} parent=1 // pred_region
      %s2764 = ssub.s32 256, 256
      %2765 = vsyncadd [#allocation4], %s2764
      %s2767 = sshll.u32 [#allocation29], 4
      %s2768 = int_to_ptr.vmem [resolvable:$true] %s2767
      %2770 = dma.vmem_to_hbm [thread:$0]  %s2768, 256, %s17, [#allocation4]
    $region141: #{tpu_custom_call.1} parent=1 // pred_fallthru
      _
    // Predicated region
    $region142: #{tpu_custom_call.1} parent=1 // pred_check
      _
    $region143: #{tpu_custom_call.1} parent=1 // pred_check_branch
      %2772 = sbr.rel (0) target = $region145
    $region144: #{tpu_custom_call.1} parent=1 // pred_region
      %s2774 = ssub.s32 256, 256
      %2775 = vsyncadd [#allocation31], %s2774
      %s2777 = sshll.u32 [#allocation30], 4
      %s2778 = int_to_ptr.vmem [resolvable:$true] %s2777
      %2780 = dma.vmem_to_hbm [thread:$0]  %s2778, 256, %s18, [#allocation31]
    $region145: #{tpu_custom_call.1} parent=1 // pred_fallthru
      _
    // Predicated region
    $region146: #{tpu_custom_call.1} parent=1 // pred_check
      _
    $region147: #{tpu_custom_call.1} parent=1 // pred_check_branch
      %2782 = sbr.rel (0) target = $region149
    $region148: #{tpu_custom_call.1} parent=1 // pred_region
      %2783 = dma.done [#allocation4], 256
    $region149: #{tpu_custom_call.1} parent=1 // pred_fallthru
      _
    // Predicated region
    $region150: #{tpu_custom_call.1} parent=1 // pred_check
      _
    $region151: #{tpu_custom_call.1} parent=1 // pred_check_branch
      %2785 = sbr.rel (0) target = $region153
    $region152: #{tpu_custom_call.1} parent=1 // pred_region
      %2786 = dma.done [#allocation31], 256
    $region153: #{tpu_custom_call.1} parent=1 // pred_fallthru
      _
    %2787 = vsyncpa [#allocation3], 1
    %2788 = vsyncpa [#allocation6], 1
    %2789 = vsyncpa [#allocation9], 1
    %2790 = vsyncpa [#allocation12], 1
    %2791 = vsyncpa [#allocation15], 1
    %2792 = vsyncpa [#allocation18], 1
    %2793 = vsyncpa [#allocation21], 1
    %2794 = vsyncpa [#allocation24], 1
    %2795 = vsyncpa [#allocation27], 1
    %2796 = vsyncpa [#allocation4], 1
    %2797 = vsyncpa [#allocation31], 1

// kernel: tpu_custom_call.1
$region0: #{tpu_custom_call.1}
  #allocation0 [shape = 'u32[]', space=smem, size = 0x4, offset = 0x4, fixed_abs, tag = 'smem constant byte address 0x4 - core index']
  #allocation1 [shape = 'u32[144,128]{1,0:T(1,128)}', space=vmem, size = 0x12000, scoped, tag = 'internal scratch']
  %s0 = inlined_call_operand.vmem [shape: f32[8,256], index: 0, kind: input, shape index: {}]
  %s1 = inlined_call_operand.hbm [shape: f32[4,8,256], index: 1, kind: input, shape index: {}]
  %s2 = inlined_call_operand.vmem [shape: f32[8,256], index: 2, kind: input, shape index: {}]
  %s3 = inlined_call_operand.vmem [shape: f32[256,4], index: 3, kind: input, shape index: {}]
  %s4 = inlined_call_operand.vmem [shape: f32[4,256], index: 4, kind: input, shape index: {}]
  %s5 = inlined_call_operand.hbm [shape: f32[1,256], index: 5, kind: input, shape index: {}]
  %s6 = inlined_call_operand.hbm [shape: f32[1,256], index: 6, kind: input, shape index: {}]
  %s7 = inlined_call_operand.hbm [shape: bf16[256,512], index: 7, kind: input, shape index: {}]
  %s8 = inlined_call_operand.hbm [shape: f32[1,512], index: 8, kind: input, shape index: {}]
  %s9 = inlined_call_operand.vmem [shape: bf16[256,256], index: 9, kind: input, shape index: {}]
  %s10 = inlined_call_operand.hbm [shape: f32[1,256], index: 10, kind: input, shape index: {}]
  %s11 = inlined_call_operand.hbm [shape: bf16[256,256], index: 11, kind: input, shape index: {}]
  %s12 = inlined_call_operand.vmem [shape: f32[1,256], index: 12, kind: input, shape index: {}]
  %s13 = inlined_call_operand.vmem [shape: f32[1,256], index: 13, kind: input, shape index: {}]
  %s14 = inlined_call_operand.vmem [shape: f32[1,256], index: 14, kind: input, shape index: {}]
  %s15 = inlined_call_operand.hbm [shape: bf16[256,1024], index: 15, kind: input, shape index: {}]
  %s16 = inlined_call_operand.vmem [shape: f32[1,1024], index: 16, kind: input, shape index: {}]
  %s17 = inlined_call_operand.hbm [shape: f32[8,256], index: 17, kind: output, shape index: {0}]
  %s18 = inlined_call_operand.hbm [shape: f32[8,256], index: 18, kind: output, shape index: {1}]
  %19 = xla_tuple %s17, %s18
  %s20 = sld [smem:[#allocation0]]
  $region118: #{tpu_custom_call.1} parent=0
    _
  %s22 = ssub.s32 1, %s20
  %s23 = scalar_select 0, %s22, %s20
  $region1: #{tpu_custom_call.1} parent=0
    #allocation2 [shape = 'u8[32768]{0}', space=vmem, size = 0x8000, scoped, tag = 'input window, operand 1, single buffered']
    #allocation3 [shape = 's32[1]{0}', space=sflag, size = 0x4, scoped, tag = 'scoped memory for tpu_custom_call.1']
    #allocation4 [shape = 's32[1]{0}', space=sflag, size = 0x4, scoped, tag = 'scoped memory for tpu_custom_call.1']
    #allocation5 [shape = 'u8[1024]{0}', space=vmem, size = 0x400, scoped, tag = 'input window, operand 5, single buffered']
    #allocation6 [shape = 's32[1]{0}', space=sflag, size = 0x4, scoped, tag = 'scoped memory for tpu_custom_call.1']
    #allocation7 [shape = 'u8[1024]{0}', space=vmem, size = 0x400, scoped, tag = 'input window, operand 6, single buffered']
    #allocation8 [shape = 'u8[262144]{0}', space=vmem, size = 0x40000, scoped, tag = 'input window, operand 7, single buffered']
    #allocation9 [shape = 's32[1]{0}', space=sflag, size = 0x4, scoped, tag = 'scoped memory for tpu_custom_call.1']
    #allocation10 [shape = 'u8[2048]{0}', space=vmem, size = 0x800, scoped, tag = 'input window, operand 8, single buffered']
    #allocation11 [shape = 'u8[1024]{0}', space=vmem, size = 0x400, scoped, tag = 'input window, operand 10, single buffered']
    #allocation12 [shape = 's32[1]{0}', space=sflag, size = 0x4, scoped, tag = 'scoped memory for tpu_custom_call.1']
    #allocation13 [shape = 'u8[131072]{0}', space=vmem, size = 0x20000, scoped, tag = 'input window, operand 11, single buffered']
    #allocation14 [shape = 'u8[524288]{0}', space=vmem, size = 0x80000, scoped, tag = 'input window, operand 15, single buffered']
    #allocation15 [shape = 's32[1]{0}', space=sflag, size = 0x4, scoped, tag = 'scoped memory for tpu_custom_call.1']
    #allocation16 [shape = 'u8[8192]{0}', space=vmem, size = 0x2000, scoped, tag = 'output window, operand 0, single buffered']
    #allocation17 [shape = 'u8[8192]{0}', space=vmem, size = 0x2000, scoped, tag = 'output window, operand 1, single buffered']
    #allocation18 [shape = 's32[1]{0}', space=sflag, size = 0x4, scoped, tag = 'scoped memory for tpu_custom_call.1']
    %24 = vsyncpa [#allocation3], 0
    %25 = vsyncpa [#allocation6], 0
    %26 = vsyncpa [#allocation9], 0
    %27 = vsyncpa [#allocation12], 0
    %28 = vsyncpa [#allocation15], 0
    %29 = vsyncpa [#allocation4], 0
    %30 = vsyncpa [#allocation18], 0
    // Predicated region
    $region2: #{tpu_custom_call.1} parent=1 // pred_check
      _
    $region3: #{tpu_custom_call.1} parent=1 // pred_check_branch
      %32 = sbr.rel (0) target = $region5
    $region4: #{tpu_custom_call.1} parent=1 // pred_region
      _
    $region5: #{tpu_custom_call.1} parent=1 // pred_fallthru
      _
    // Predicated region
    $region6: #{tpu_custom_call.1} parent=1 // pred_check
      _
    $region7: #{tpu_custom_call.1} parent=1 // pred_check_branch
      %34 = sbr.rel (0) target = $region9
    $region8: #{tpu_custom_call.1} parent=1 // pred_region
      %s36 = ssub.s32 1024, 1024
      %37 = vsyncadd [#allocation3], %s36
      %s38 = sshll.u32 [#allocation2], 4
      %s39 = int_to_ptr.vmem [resolvable:$true] %s38
      %44 = dma.hbm_to_vmem [thread:$0]  %s1, 1024, %s39, [#allocation3], 256, 256, 16
    $region9: #{tpu_custom_call.1} parent=1 // pred_fallthru
      _
    // Predicated region
    $region10: #{tpu_custom_call.1} parent=1 // pred_check
      _
    $region11: #{tpu_custom_call.1} parent=1 // pred_check_branch
      %46 = sbr.rel (0) target = $region13
    $region12: #{tpu_custom_call.1} parent=1 // pred_region
      _
    $region13: #{tpu_custom_call.1} parent=1 // pred_fallthru
      _
    // Predicated region
    $region14: #{tpu_custom_call.1} parent=1 // pred_check
      _
    $region15: #{tpu_custom_call.1} parent=1 // pred_check_branch
      %48 = sbr.rel (0) target = $region17
    $region16: #{tpu_custom_call.1} parent=1 // pred_region
      _
    $region17: #{tpu_custom_call.1} parent=1 // pred_fallthru
      _
    // Predicated region
    $region18: #{tpu_custom_call.1} parent=1 // pred_check
      _
    $region19: #{tpu_custom_call.1} parent=1 // pred_check_branch
      %50 = sbr.rel (0) target = $region21
    $region20: #{tpu_custom_call.1} parent=1 // pred_region
      _
    $region21: #{tpu_custom_call.1} parent=1 // pred_fallthru
      _
    // Predicated region
    $region22: #{tpu_custom_call.1} parent=1 // pred_check
      _
    $region23: #{tpu_custom_call.1} parent=1 // pred_check_branch
      %52 = sbr.rel (0) target = $region25
    $region24: #{tpu_custom_call.1} parent=1 // pred_region
      %s54 = ssub.s32 32, 32
      %55 = vsyncadd [#allocation6], %s54
      %s57 = sshll.u32 [#allocation5], 4
      %s58 = int_to_ptr.vmem [resolvable:$true] %s57
      %60 = dma.hbm_to_vmem [thread:$0]  %s5, 32, %s58, [#allocation6]
    $region25: #{tpu_custom_call.1} parent=1 // pred_fallthru
      _
    // Predicated region
    $region26: #{tpu_custom_call.1} parent=1 // pred_check
      _
    $region27: #{tpu_custom_call.1} parent=1 // pred_check_branch
      %62 = sbr.rel (0) target = $region29
    $region28: #{tpu_custom_call.1} parent=1 // pred_region
      %s64 = ssub.s32 32, 32
      %65 = vsyncadd [#allocation6], %s64
      %s67 = sshll.u32 [#allocation7], 4
      %s68 = int_to_ptr.vmem [resolvable:$true] %s67
      %70 = dma.hbm_to_vmem [thread:$0]  %s6, 32, %s68, [#allocation6]
    $region29: #{tpu_custom_call.1} parent=1 // pred_fallthru
      _
    // Predicated region
    $region30: #{tpu_custom_call.1} parent=1 // pred_check
      _
    $region31: #{tpu_custom_call.1} parent=1 // pred_check_branch
      %72 = sbr.rel (0) target = $region33
    $region32: #{tpu_custom_call.1} parent=1 // pred_region
      %s74 = ssub.s32 8192, 8192
      %75 = vsyncadd [#allocation9], %s74
      %s76 = sshll.u32 [#allocation8], 4
      %s77 = int_to_ptr.vmem [resolvable:$true] %s76
      %82 = dma.hbm_to_vmem [thread:$0]  %s7, 8192, %s77, [#allocation9], 256, 256, 16
    $region33: #{tpu_custom_call.1} parent=1 // pred_fallthru
      _
    // Predicated region
    $region34: #{tpu_custom_call.1} parent=1 // pred_check
      _
    $region35: #{tpu_custom_call.1} parent=1 // pred_check_branch
      %84 = sbr.rel (0) target = $region37
    $region36: #{tpu_custom_call.1} parent=1 // pred_region
      %s86 = ssub.s32 64, 64
      %87 = vsyncadd [#allocation9], %s86
      %s89 = sshll.u32 [#allocation10], 4
      %s90 = int_to_ptr.vmem [resolvable:$true] %s89
      %92 = dma.hbm_to_vmem [thread:$0]  %s8, 64, %s90, [#allocation9]
    $region37: #{tpu_custom_call.1} parent=1 // pred_fallthru
      _
    // Predicated region
    $region38: #{tpu_custom_call.1} parent=1 // pred_check
      _
    $region39: #{tpu_custom_call.1} parent=1 // pred_check_branch
      %94 = sbr.rel (0) target = $region41
    $region40: #{tpu_custom_call.1} parent=1 // pred_region
      _
    $region41: #{tpu_custom_call.1} parent=1 // pred_fallthru
      _
    // Predicated region
    $region42: #{tpu_custom_call.1} parent=1 // pred_check
      _
    $region43: #{tpu_custom_call.1} parent=1 // pred_check_branch
      %96 = sbr.rel (0) target = $region45
    $region44: #{tpu_custom_call.1} parent=1 // pred_region
      %s98 = ssub.s32 32, 32
      %99 = vsyncadd [#allocation12], %s98
      %s101 = sshll.u32 [#allocation11], 4
      %s102 = int_to_ptr.vmem [resolvable:$true] %s101
      %104 = dma.hbm_to_vmem [thread:$0]  %s10, 32, %s102, [#allocation12]
    $region45: #{tpu_custom_call.1} parent=1 // pred_fallthru
      _
    // Predicated region
    $region46: #{tpu_custom_call.1} parent=1 // pred_check
      _
    $region47: #{tpu_custom_call.1} parent=1 // pred_check_branch
      %106 = sbr.rel (0) target = $region49
    $region48: #{tpu_custom_call.1} parent=1 // pred_region
      %s108 = ssub.s32 4096, 4096
      %109 = vsyncadd [#allocation12], %s108
      %s110 = sshll.u32 [#allocation13], 4
      %s111 = int_to_ptr.vmem [resolvable:$true] %s110
      %116 = dma.hbm_to_vmem [thread:$0]  %s11, 4096, %s111, [#allocation12], 128, 128, 8
    $region49: #{tpu_custom_call.1} parent=1 // pred_fallthru
      _
    // Predicated region
    $region50: #{tpu_custom_call.1} parent=1 // pred_check
      _
    $region51: #{tpu_custom_call.1} parent=1 // pred_check_branch
      %118 = sbr.rel (0) target = $region53
    $region52: #{tpu_custom_call.1} parent=1 // pred_region
      _
    $region53: #{tpu_custom_call.1} parent=1 // pred_fallthru
      _
    // Predicated region
    $region54: #{tpu_custom_call.1} parent=1 // pred_check
      _
    $region55: #{tpu_custom_call.1} parent=1 // pred_check_branch
      %120 = sbr.rel (0) target = $region57
    $region56: #{tpu_custom_call.1} parent=1 // pred_region
      _
    $region57: #{tpu_custom_call.1} parent=1 // pred_fallthru
      _
    // Predicated region
    $region58: #{tpu_custom_call.1} parent=1 // pred_check
      _
    $region59: #{tpu_custom_call.1} parent=1 // pred_check_branch
      %122 = sbr.rel (0) target = $region61
    $region60: #{tpu_custom_call.1} parent=1 // pred_region
      _
    $region61: #{tpu_custom_call.1} parent=1 // pred_fallthru
      _
    // Predicated region
    $region62: #{tpu_custom_call.1} parent=1 // pred_check
      _
    $region63: #{tpu_custom_call.1} parent=1 // pred_check_branch
      %124 = sbr.rel (0) target = $region65
    $region64: #{tpu_custom_call.1} parent=1 // pred_region
      %s126 = ssub.s32 16384, 16384
      %127 = vsyncadd [#allocation15], %s126
      %s128 = sshll.u32 [#allocation14], 4
      %s129 = int_to_ptr.vmem [resolvable:$true] %s128
      %134 = dma.hbm_to_vmem [thread:$0]  %s15, 16384, %s129, [#allocation15], 512, 512, 32
    $region65: #{tpu_custom_call.1} parent=1 // pred_fallthru
      _
    // Predicated region
    $region66: #{tpu_custom_call.1} parent=1 // pred_check
      _
    $region67: #{tpu_custom_call.1} parent=1 // pred_check_branch
      %136 = sbr.rel (0) target = $region69
    $region68: #{tpu_custom_call.1} parent=1 // pred_region
      _
    $region69: #{tpu_custom_call.1} parent=1 // pred_fallthru
      _
    // Predicated region
    $region70: #{tpu_custom_call.1} parent=1 // pred_check
      _
    $region71: #{tpu_custom_call.1} parent=1 // pred_check_branch
      %138 = sbr.rel (0) target = $region73
    $region72: #{tpu_custom_call.1} parent=1 // pred_region
      %139 = dma.done [#allocation3], 1024
    $region73: #{tpu_custom_call.1} parent=1 // pred_fallthru
      _
    // Predicated region
    $region74: #{tpu_custom_call.1} parent=1 // pred_check
      _
    $region75: #{tpu_custom_call.1} parent=1 // pred_check_branch
      %141 = sbr.rel (0) target = $region77
    $region76: #{tpu_custom_call.1} parent=1 // pred_region
      %142 = dma.done [#allocation6], 32
    $region77: #{tpu_custom_call.1} parent=1 // pred_fallthru
      _
    // Predicated region
    $region78: #{tpu_custom_call.1} parent=1 // pred_check
      _
    $region79: #{tpu_custom_call.1} parent=1 // pred_check_branch
      %144 = sbr.rel (0) target = $region81
    $region80: #{tpu_custom_call.1} parent=1 // pred_region
      %145 = dma.done [#allocation6], 32
    $region81: #{tpu_custom_call.1} parent=1 // pred_fallthru
      _
    // Predicated region
    $region82: #{tpu_custom_call.1} parent=1 // pred_check
      _
    $region83: #{tpu_custom_call.1} parent=1 // pred_check_branch
      %147 = sbr.rel (0) target = $region85
    $region84: #{tpu_custom_call.1} parent=1 // pred_region
      %148 = dma.done [#allocation9], 8192
    $region85: #{tpu_custom_call.1} parent=1 // pred_fallthru
      _
    // Predicated region
    $region86: #{tpu_custom_call.1} parent=1 // pred_check
      _
    $region87: #{tpu_custom_call.1} parent=1 // pred_check_branch
      %150 = sbr.rel (0) target = $region89
    $region88: #{tpu_custom_call.1} parent=1 // pred_region
      %151 = dma.done [#allocation9], 64
    $region89: #{tpu_custom_call.1} parent=1 // pred_fallthru
      _
    // Predicated region
    $region90: #{tpu_custom_call.1} parent=1 // pred_check
      _
    $region91: #{tpu_custom_call.1} parent=1 // pred_check_branch
      %153 = sbr.rel (0) target = $region93
    $region92: #{tpu_custom_call.1} parent=1 // pred_region
      %154 = dma.done [#allocation12], 32
    $region93: #{tpu_custom_call.1} parent=1 // pred_fallthru
      _
    // Predicated region
    $region94: #{tpu_custom_call.1} parent=1 // pred_check
      _
    $region95: #{tpu_custom_call.1} parent=1 // pred_check_branch
      %156 = sbr.rel (0) target = $region97
    $region96: #{tpu_custom_call.1} parent=1 // pred_region
      %157 = dma.done [#allocation12], 4096
    $region97: #{tpu_custom_call.1} parent=1 // pred_fallthru
      _
    // Predicated region
    $region98: #{tpu_custom_call.1} parent=1 // pred_check
      _
    $region99: #{tpu_custom_call.1} parent=1 // pred_check_branch
      %159 = sbr.rel (0) target = $region101
    $region100: #{tpu_custom_call.1} parent=1 // pred_region
      %160 = dma.done [#allocation15], 16384
    $region101: #{tpu_custom_call.1} parent=1 // pred_fallthru
      _
    %v161 = vld [vmem:[%s0] sm:$0xff]
    %v162 = vld [vmem:[%s0 + $0x8] sm:$0xff]
    %v163 = vld [vmem:[#allocation2] sm:$0xff]
    %v164 = vld [vmem:[#allocation2 + $0x8] sm:$0xff]
    %v165 = vld [vmem:[#allocation2 + $0x10] sm:$0xff]
    %v166 = vld [vmem:[#allocation2 + $0x18] sm:$0xff]
    %v167 = vld [vmem:[#allocation2 + $0x20] sm:$0xff]
    %v168 = vld [vmem:[#allocation2 + $0x28] sm:$0xff]
    %v169 = vld [vmem:[#allocation2 + $0x30] sm:$0xff]
    %v170 = vld [vmem:[#allocation2 + $0x38] sm:$0xff]
    %v171 = vld [vmem:[%s2] sm:$0xff]
    %v172 = vld [vmem:[%s2 + $0x8] sm:$0xff]
    %v173 = vadd.f32 %v163, %v164
    %174 = vadd.xlane.f32.xlu0 %v173
    %v175 = vpop.xlane.xlu0 %174
    %v176 = vadd.f32 %v165, %v166
    %177 = vadd.xlane.f32.xlu0 %v176
    %v178 = vpop.xlane.xlu0 %177
    %v179 = vadd.f32 %v167, %v168
    %180 = vadd.xlane.f32.xlu0 %v179
    %v181 = vpop.xlane.xlu0 %180
    %v182 = vadd.f32 %v169, %v170
    %183 = vadd.xlane.f32.xlu0 %v182
    %v184 = vpop.xlane.xlu0 %183
    %v185 = vrcp.pop 256.0
    %v186 = vmul.f32 %v175, %v185
    %v187 = vmul.f32 %v178, %v185
    %v188 = vmul.f32 %v181, %v185
    %v189 = vmul.f32 %v184, %v185
    %v190 = vsub.f32 %v163, %v186
    %v191 = vsub.f32 %v164, %v186
    %v192 = vsub.f32 %v165, %v187
    %v193 = vsub.f32 %v166, %v187
    %v194 = vsub.f32 %v167, %v188
    %v195 = vsub.f32 %v168, %v188
    %v196 = vsub.f32 %v169, %v189
    %v197 = vsub.f32 %v170, %v189
    %v198 = vmul.f32 %v190, %v190
    %v199 = vmul.f32 %v191, %v191
    %v200 = vmul.f32 %v192, %v192
    %v201 = vmul.f32 %v193, %v193
    %v202 = vmul.f32 %v194, %v194
    %v203 = vmul.f32 %v195, %v195
    %v204 = vmul.f32 %v196, %v196
    %v205 = vmul.f32 %v197, %v197
    %v206 = vadd.f32 %v198, %v199
    %207 = vadd.xlane.f32.xlu0 %v206
    %v208 = vpop.xlane.xlu0 %207
    %v209 = vadd.f32 %v200, %v201
    %210 = vadd.xlane.f32.xlu0 %v209
    %v211 = vpop.xlane.xlu0 %210
    %v212 = vadd.f32 %v202, %v203
    %213 = vadd.xlane.f32.xlu0 %v212
    %v214 = vpop.xlane.xlu0 %213
    %v215 = vadd.f32 %v204, %v205
    %216 = vadd.xlane.f32.xlu0 %v215
    %v217 = vpop.xlane.xlu0 %216
    %v218 = vmul.f32 %v208, %v185
    %v219 = vmul.f32 %v211, %v185
    %v220 = vmul.f32 %v214, %v185
    %v221 = vmul.f32 %v217, %v185
    %v222 = vadd.f32 %v218, 1e-05
    %v223 = vadd.f32 %v219, 1e-05
    %v224 = vadd.f32 %v220, 1e-05
    %v225 = vadd.f32 %v221, 1e-05
    %v226 = vrsqrt.pop %v222
    %v227 = vrsqrt.pop %v223
    %v228 = vrsqrt.pop %v224
    %v229 = vrsqrt.pop %v225
    %v230 = vmul.f32 %v190, %v226
    %v231 = vmul.f32 %v191, %v226
    %v232 = vmul.f32 %v192, %v227
    %v233 = vmul.f32 %v193, %v227
    %v234 = vmul.f32 %v194, %v228
    %v235 = vmul.f32 %v195, %v228
    %v236 = vmul.f32 %v196, %v229
    %v237 = vmul.f32 %v197, %v229
    %v238 = vld [vmem:[#allocation5] sm:$0x3]
    %v240 = vlaneseq
    %v241 = vshrl.u32 %v240, 7
    %v242 = vsub.s32 0, %v241
    %v243 = vrot.slane %v238, %v242
    %v244 = vlaneseq
    %v245 = vshrl.u32 %v244, 7
    %v246 = vsub.s32 1, %v245
    %v247 = vrot.slane %v238, %v246
    %v250 = vmul.f32 %v230, %v243
    %v251 = vmul.f32 %v231, %v247
    %v252 = vmul.f32 %v232, %v243
    %v253 = vmul.f32 %v233, %v247
    %v254 = vmul.f32 %v234, %v243
    %v255 = vmul.f32 %v235, %v247
    %v256 = vmul.f32 %v236, %v243
    %v257 = vmul.f32 %v237, %v247
    %v258 = vld [vmem:[#allocation7] sm:$0x3]
    %v260 = vlaneseq
    %v261 = vshrl.u32 %v260, 7
    %v262 = vsub.s32 0, %v261
    %v263 = vrot.slane %v258, %v262
    %v264 = vlaneseq
    %v265 = vshrl.u32 %v264, 7
    %v266 = vsub.s32 1, %v265
    %v267 = vrot.slane %v258, %v266
    %v270 = vadd.f32 %v250, %v263
    %v271 = vadd.f32 %v251, %v267
    %v272 = vadd.f32 %v252, %v263
    %v273 = vadd.f32 %v253, %v267
    %v274 = vadd.f32 %v254, %v263
    %v275 = vadd.f32 %v255, %v267
    %v276 = vadd.f32 %v256, %v263
    %v277 = vadd.f32 %v257, %v267
    %v278 = vpack.c.bf16 %v272, %v270
    %v279 = vpack.c.bf16 %v273, %v271
    %v280 = vpack.c.bf16 %v276, %v274
    %v281 = vpack.c.bf16 %v277, %v275
    %v282 = vld [vmem:[#allocation8] sm:$0xff]
    %v283 = vld [vmem:[#allocation8 + $0x8] sm:$0xff]
    %v284 = vld [vmem:[#allocation8 + $0x10] sm:$0xff]
    %v285 = vld [vmem:[#allocation8 + $0x18] sm:$0xff]
    %v286 = vld [vmem:[#allocation8 + $0x20] sm:$0xff]
    %v287 = vld [vmem:[#allocation8 + $0x28] sm:$0xff]
    %v288 = vld [vmem:[#allocation8 + $0x30] sm:$0xff]
    %v289 = vld [vmem:[#allocation8 + $0x38] sm:$0xff]
    %v290 = vld [vmem:[#allocation8 + $0x40] sm:$0xff]
    %v291 = vld [vmem:[#allocation8 + $0x48] sm:$0xff]
    %v292 = vld [vmem:[#allocation8 + $0x50] sm:$0xff]
    %v293 = vld [vmem:[#allocation8 + $0x58] sm:$0xff]
    %v294 = vld [vmem:[#allocation8 + $0x60] sm:$0xff]
    %v295 = vld [vmem:[#allocation8 + $0x68] sm:$0xff]
    %v296 = vld [vmem:[#allocation8 + $0x70] sm:$0xff]
    %v297 = vld [vmem:[#allocation8 + $0x78] sm:$0xff]
    %v298 = vld [vmem:[#allocation8 + $0x80] sm:$0xff]
    %v299 = vld [vmem:[#allocation8 + $0x88] sm:$0xff]
    %v300 = vld [vmem:[#allocation8 + $0x90] sm:$0xff]
    %v301 = vld [vmem:[#allocation8 + $0x98] sm:$0xff]
    %v302 = vld [vmem:[#allocation8 + $0xa0] sm:$0xff]
    %v303 = vld [vmem:[#allocation8 + $0xa8] sm:$0xff]
    %v304 = vld [vmem:[#allocation8 + $0xb0] sm:$0xff]
    %v305 = vld [vmem:[#allocation8 + $0xb8] sm:$0xff]
    %v306 = vld [vmem:[#allocation8 + $0xc0] sm:$0xff]
    %v307 = vld [vmem:[#allocation8 + $0xc8] sm:$0xff]
    %v308 = vld [vmem:[#allocation8 + $0xd0] sm:$0xff]
    %v309 = vld [vmem:[#allocation8 + $0xd8] sm:$0xff]
    %v310 = vld [vmem:[#allocation8 + $0xe0] sm:$0xff]
    %v311 = vld [vmem:[#allocation8 + $0xe8] sm:$0xff]
    %v312 = vld [vmem:[#allocation8 + $0xf0] sm:$0xff]
    %v313 = vld [vmem:[#allocation8 + $0xf8] sm:$0xff]
    %v314 = vld [vmem:[#allocation8 + $0x100] sm:$0xff]
    %v315 = vld [vmem:[#allocation8 + $0x108] sm:$0xff]
    %v316 = vld [vmem:[#allocation8 + $0x110] sm:$0xff]
    %v317 = vld [vmem:[#allocation8 + $0x118] sm:$0xff]
    %v318 = vld [vmem:[#allocation8 + $0x120] sm:$0xff]
    %v319 = vld [vmem:[#allocation8 + $0x128] sm:$0xff]
    %v320 = vld [vmem:[#allocation8 + $0x130] sm:$0xff]
    %v321 = vld [vmem:[#allocation8 + $0x138] sm:$0xff]
    %v322 = vld [vmem:[#allocation8 + $0x140] sm:$0xff]
    %v323 = vld [vmem:[#allocation8 + $0x148] sm:$0xff]
    %v324 = vld [vmem:[#allocation8 + $0x150] sm:$0xff]
    %v325 = vld [vmem:[#allocation8 + $0x158] sm:$0xff]
    %v326 = vld [vmem:[#allocation8 + $0x160] sm:$0xff]
    %v327 = vld [vmem:[#allocation8 + $0x168] sm:$0xff]
    %v328 = vld [vmem:[#allocation8 + $0x170] sm:$0xff]
    %v329 = vld [vmem:[#allocation8 + $0x178] sm:$0xff]
    %v330 = vld [vmem:[#allocation8 + $0x180] sm:$0xff]
    %v331 = vld [vmem:[#allocation8 + $0x188] sm:$0xff]
    %v332 = vld [vmem:[#allocation8 + $0x190] sm:$0xff]
    %v333 = vld [vmem:[#allocation8 + $0x198] sm:$0xff]
    %v334 = vld [vmem:[#allocation8 + $0x1a0] sm:$0xff]
    %v335 = vld [vmem:[#allocation8 + $0x1a8] sm:$0xff]
    %v336 = vld [vmem:[#allocation8 + $0x1b0] sm:$0xff]
    %v337 = vld [vmem:[#allocation8 + $0x1b8] sm:$0xff]
    %v338 = vld [vmem:[#allocation8 + $0x1c0] sm:$0xff]
    %v339 = vld [vmem:[#allocation8 + $0x1c8] sm:$0xff]
    %v340 = vld [vmem:[#allocation8 + $0x1d0] sm:$0xff]
    %v341 = vld [vmem:[#allocation8 + $0x1d8] sm:$0xff]
    %v342 = vld [vmem:[#allocation8 + $0x1e0] sm:$0xff]
    %v343 = vld [vmem:[#allocation8 + $0x1e8] sm:$0xff]
    %v344 = vld [vmem:[#allocation8 + $0x1f0] sm:$0xff]
    %v345 = vld [vmem:[#allocation8 + $0x1f8] sm:$0xff]
    %v346 = vld [vmem:[#allocation10] sm:$0xf]
    %v348 = vlaneseq
    %v349 = vshrl.u32 %v348, 7
    %v350 = vsub.s32 0, %v349
    %v351 = vrot.slane %v346, %v350
    %v352 = vlaneseq
    %v353 = vshrl.u32 %v352, 7
    %v354 = vsub.s32 1, %v353
    %v355 = vrot.slane %v346, %v354
    %v356 = vlaneseq
    %v357 = vshrl.u32 %v356, 7
    %v358 = vsub.s32 2, %v357
    %v359 = vrot.slane %v346, %v358
    %v360 = vlaneseq
    %v361 = vshrl.u32 %v360, 7
    %v362 = vsub.s32 3, %v361
    %v363 = vrot.slane %v346, %v362
    %v432 = vunpack.c.l.b16 %v282
    %v433 = vunpack.c.h.b16 %v282
    %v434 = vunpack.c.l.b16 %v283
    %v435 = vunpack.c.h.b16 %v283
    %v436 = vunpack.c.l.b16 %v284
    %v437 = vunpack.c.h.b16 %v284
    %v438 = vunpack.c.l.b16 %v285
    %v439 = vunpack.c.h.b16 %v285
    %v440 = vunpack.c.l.b16 %v286
    %v441 = vunpack.c.h.b16 %v286
    %v442 = vunpack.c.l.b16 %v287
    %v443 = vunpack.c.h.b16 %v287
    %v444 = vunpack.c.l.b16 %v288
    %v445 = vunpack.c.h.b16 %v288
    %v446 = vunpack.c.l.b16 %v289
    %v447 = vunpack.c.h.b16 %v289
    %v448 = vunpack.c.l.b16 %v290
    %v449 = vunpack.c.h.b16 %v290
    %v450 = vunpack.c.l.b16 %v291
    %v451 = vunpack.c.h.b16 %v291
    %v452 = vunpack.c.l.b16 %v292
    %v453 = vunpack.c.h.b16 %v292
    %v454 = vunpack.c.l.b16 %v293
    %v455 = vunpack.c.h.b16 %v293
    %v456 = vunpack.c.l.b16 %v294
    %v457 = vunpack.c.h.b16 %v294
    %v458 = vunpack.c.l.b16 %v295
    %v459 = vunpack.c.h.b16 %v295
    %v460 = vunpack.c.l.b16 %v296
    %v461 = vunpack.c.h.b16 %v296
    %v462 = vunpack.c.l.b16 %v297
    %v463 = vunpack.c.h.b16 %v297
    %v464 = vunpack.c.l.b16 %v298
    %v465 = vunpack.c.h.b16 %v298
    %v466 = vunpack.c.l.b16 %v299
    %v467 = vunpack.c.h.b16 %v299
    %v468 = vunpack.c.l.b16 %v300
    %v469 = vunpack.c.h.b16 %v300
    %v470 = vunpack.c.l.b16 %v301
    %v471 = vunpack.c.h.b16 %v301
    %v472 = vunpack.c.l.b16 %v302
    %v473 = vunpack.c.h.b16 %v302
    %v474 = vunpack.c.l.b16 %v303
    %v475 = vunpack.c.h.b16 %v303
    %v476 = vunpack.c.l.b16 %v304
    %v477 = vunpack.c.h.b16 %v304
    %v478 = vunpack.c.l.b16 %v305
    %v479 = vunpack.c.h.b16 %v305
    %v480 = vunpack.c.l.b16 %v306
    %v481 = vunpack.c.h.b16 %v306
    %v482 = vunpack.c.l.b16 %v307
    %v483 = vunpack.c.h.b16 %v307
    %v484 = vunpack.c.l.b16 %v308
    %v485 = vunpack.c.h.b16 %v308
    %v486 = vunpack.c.l.b16 %v309
    %v487 = vunpack.c.h.b16 %v309
    %v488 = vunpack.c.l.b16 %v310
    %v489 = vunpack.c.h.b16 %v310
    %v490 = vunpack.c.l.b16 %v311
    %v491 = vunpack.c.h.b16 %v311
    %v492 = vunpack.c.l.b16 %v312
    %v493 = vunpack.c.h.b16 %v312
    %v494 = vunpack.c.l.b16 %v313
    %v495 = vunpack.c.h.b16 %v313
    %v496 = vunpack.c.l.b16 %v314
    %v497 = vunpack.c.h.b16 %v314
    %v498 = vunpack.c.l.b16 %v315
    %v499 = vunpack.c.h.b16 %v315
    %v500 = vunpack.c.l.b16 %v316
    %v501 = vunpack.c.h.b16 %v316
    %v502 = vunpack.c.l.b16 %v317
    %v503 = vunpack.c.h.b16 %v317
    %v504 = vunpack.c.l.b16 %v318
    %v505 = vunpack.c.h.b16 %v318
    %v506 = vunpack.c.l.b16 %v319
    %v507 = vunpack.c.h.b16 %v319
    %v508 = vunpack.c.l.b16 %v320
    %v509 = vunpack.c.h.b16 %v320
    %v510 = vunpack.c.l.b16 %v321
    %v511 = vunpack.c.h.b16 %v321
    %v512 = vunpack.c.l.b16 %v322
    %v513 = vunpack.c.h.b16 %v322
    %v514 = vunpack.c.l.b16 %v323
    %v515 = vunpack.c.h.b16 %v323
    %v516 = vunpack.c.l.b16 %v324
    %v517 = vunpack.c.h.b16 %v324
    %v518 = vunpack.c.l.b16 %v325
    %v519 = vunpack.c.h.b16 %v325
    %v520 = vunpack.c.l.b16 %v326
    %v521 = vunpack.c.h.b16 %v326
    %v522 = vunpack.c.l.b16 %v327
    %v523 = vunpack.c.h.b16 %v327
    %v524 = vunpack.c.l.b16 %v328
    %v525 = vunpack.c.h.b16 %v328
    %v526 = vunpack.c.l.b16 %v329
    %v527 = vunpack.c.h.b16 %v329
    %v528 = vunpack.c.l.b16 %v330
    %v529 = vunpack.c.h.b16 %v330
    %v530 = vunpack.c.l.b16 %v331
    %v531 = vunpack.c.h.b16 %v331
    %v532 = vunpack.c.l.b16 %v332
    %v533 = vunpack.c.h.b16 %v332
    %v534 = vunpack.c.l.b16 %v333
    %v535 = vunpack.c.h.b16 %v333
    %v536 = vunpack.c.l.b16 %v334
    %v537 = vunpack.c.h.b16 %v334
    %v538 = vunpack.c.l.b16 %v335
    %v539 = vunpack.c.h.b16 %v335
    %v540 = vunpack.c.l.b16 %v336
    %v541 = vunpack.c.h.b16 %v336
    %v542 = vunpack.c.l.b16 %v337
    %v543 = vunpack.c.h.b16 %v337
    %v544 = vunpack.c.l.b16 %v338
    %v545 = vunpack.c.h.b16 %v338
    %v546 = vunpack.c.l.b16 %v339
    %v547 = vunpack.c.h.b16 %v339
    %v548 = vunpack.c.l.b16 %v340
    %v549 = vunpack.c.h.b16 %v340
    %v550 = vunpack.c.l.b16 %v341
    %v551 = vunpack.c.h.b16 %v341
    %v552 = vunpack.c.l.b16 %v342
    %v553 = vunpack.c.h.b16 %v342
    %v554 = vunpack.c.l.b16 %v343
    %v555 = vunpack.c.h.b16 %v343
    %v556 = vunpack.c.l.b16 %v344
    %v557 = vunpack.c.h.b16 %v344
    %v558 = vunpack.c.l.b16 %v345
    %v559 = vunpack.c.h.b16 %v345
    %v560 = vpack.c.b16 %v436, %v432
    %v561 = vpack.c.b16 %v437, %v433
    %v562 = vpack.c.b16 %v438, %v434
    %v563 = vpack.c.b16 %v439, %v435
    %v564 = vpack.c.b16 %v444, %v440
    %v565 = vpack.c.b16 %v445, %v441
    %v566 = vpack.c.b16 %v446, %v442
    %v567 = vpack.c.b16 %v447, %v443
    %v568 = vpack.c.b16 %v452, %v448
    %v569 = vpack.c.b16 %v453, %v449
    %v570 = vpack.c.b16 %v454, %v450
    %v571 = vpack.c.b16 %v455, %v451
    %v572 = vpack.c.b16 %v460, %v456
    %v573 = vpack.c.b16 %v461, %v457
    %v574 = vpack.c.b16 %v462, %v458
    %v575 = vpack.c.b16 %v463, %v459
    %v576 = vpack.c.b16 %v468, %v464
    %v577 = vpack.c.b16 %v469, %v465
    %v578 = vpack.c.b16 %v470, %v466
    %v579 = vpack.c.b16 %v471, %v467
    %v580 = vpack.c.b16 %v476, %v472
    %v581 = vpack.c.b16 %v477, %v473
    %v582 = vpack.c.b16 %v478, %v474
    %v583 = vpack.c.b16 %v479, %v475
    %v584 = vpack.c.b16 %v484, %v480
    %v585 = vpack.c.b16 %v485, %v481
    %v586 = vpack.c.b16 %v486, %v482
    %v587 = vpack.c.b16 %v487, %v483
    %v588 = vpack.c.b16 %v492, %v488
    %v589 = vpack.c.b16 %v493, %v489
    %v590 = vpack.c.b16 %v494, %v490
    %v591 = vpack.c.b16 %v495, %v491
    %v592 = vpack.c.b16 %v500, %v496
    %v593 = vpack.c.b16 %v501, %v497
    %v594 = vpack.c.b16 %v502, %v498
    %v595 = vpack.c.b16 %v503, %v499
    %v596 = vpack.c.b16 %v508, %v504
    %v597 = vpack.c.b16 %v509, %v505
    %v598 = vpack.c.b16 %v510, %v506
    %v599 = vpack.c.b16 %v511, %v507
    %v600 = vpack.c.b16 %v516, %v512
    %v601 = vpack.c.b16 %v517, %v513
    %v602 = vpack.c.b16 %v518, %v514
    %v603 = vpack.c.b16 %v519, %v515
    %v604 = vpack.c.b16 %v524, %v520
    %v605 = vpack.c.b16 %v525, %v521
    %v606 = vpack.c.b16 %v526, %v522
    %v607 = vpack.c.b16 %v527, %v523
    %v608 = vpack.c.b16 %v532, %v528
    %v609 = vpack.c.b16 %v533, %v529
    %v610 = vpack.c.b16 %v534, %v530
    %v611 = vpack.c.b16 %v535, %v531
    %v612 = vpack.c.b16 %v540, %v536
    %v613 = vpack.c.b16 %v541, %v537
    %v614 = vpack.c.b16 %v542, %v538
    %v615 = vpack.c.b16 %v543, %v539
    %v616 = vpack.c.b16 %v548, %v544
    %v617 = vpack.c.b16 %v549, %v545
    %v618 = vpack.c.b16 %v550, %v546
    %v619 = vpack.c.b16 %v551, %v547
    %v620 = vpack.c.b16 %v556, %v552
    %v621 = vpack.c.b16 %v557, %v553
    %v622 = vpack.c.b16 %v558, %v554
    %v623 = vpack.c.b16 %v559, %v555
    %688 = vmatprep.subr.bf16.mxu0 %v561
    %689 = vmatpush1.bf16.msra.mxu0 %v560
    %690 = vmatprep.subr.bf16.mxu0 %v565
    %691 = vmatpush1.bf16.msra.mxu0 %v564
    %692 = vmatprep.subr.bf16.mxu0 %v569
    %693 = vmatpush1.bf16.msra.mxu0 %v568
    %694 = vmatprep.subr.bf16.mxu0 %v573
    %695 = vmatpush1.bf16.msra.mxu0 %v572
    %696 = vmatprep.subr.bf16.mxu0 %v577
    %697 = vmatpush1.bf16.msra.mxu0 %v576
    %698 = vmatprep.subr.bf16.mxu0 %v581
    %699 = vmatpush1.bf16.msra.mxu0 %v580
    %700 = vmatprep.subr.bf16.mxu0 %v585
    %701 = vmatpush1.bf16.msra.mxu0 %v584
    %702 = vmatprep.subr.bf16.mxu0 %v589
    %703 = vmatpush1.bf16.msra.mxu0 %v588
    %704 = vmatprep.subr.bf16.mxu0 %v593
    %705 = vmatpush1.bf16.msra.mxu0 %v592
    %706 = vmatprep.subr.bf16.mxu0 %v597
    %707 = vmatpush1.bf16.msra.mxu0 %v596
    %708 = vmatprep.subr.bf16.mxu0 %v601
    %709 = vmatpush1.bf16.msra.mxu0 %v600
    %710 = vmatprep.subr.bf16.mxu0 %v605
    %711 = vmatpush1.bf16.msra.mxu0 %v604
    %712 = vmatprep.subr.bf16.mxu0 %v609
    %713 = vmatpush1.bf16.msra.mxu0 %v608
    %714 = vmatprep.subr.bf16.mxu0 %v613
    %715 = vmatpush1.bf16.msra.mxu0 %v612
    %716 = vmatprep.subr.bf16.mxu0 %v617
    %717 = vmatpush1.bf16.msra.mxu0 %v616
    %718 = vmatprep.subr.bf16.mxu0 %v621
    %719 = vmatpush1.bf16.msra.mxu0 %v620
    %720 = vmatprep.mubr.bf16.mxu0 %v279
    %721 = vmatmul.mubr.bf16.gmra.mrb[0].mxu0 %v278
    %v722 = vpop.f32.mrb[0].mxu0
    %v723 = vadd.f32 %v351, %v722
    %v724 = vpop.f32.mrb[0].mxu0
    %v725 = vadd.f32 %v355, %v724
    %v726 = vpop.f32.mrb[0].mxu0
    %v727 = vadd.f32 %v351, %v726
    %v728 = vpop.f32.mrb[0].mxu0
    %v729 = vadd.f32 %v355, %v728
    %730 = vmatprep.mubr.bf16.mxu0 %v281
    %731 = vmatmul.mubr.bf16.gmra.mrb[0].mxu0 %v280
    %v732 = vpop.f32.mrb[0].mxu0
    %v733 = vadd.f32 %v351, %v732
    %v734 = vpop.f32.mrb[0].mxu0
    %v735 = vadd.f32 %v355, %v734
    %v736 = vpop.f32.mrb[0].mxu0
    %v737 = vadd.f32 %v351, %v736
    %v738 = vpop.f32.mrb[0].mxu0
    %v739 = vadd.f32 %v355, %v738
    %740 = vdwg.mxu0
    %741 = vmatprep.subr.bf16.mxu0 %v563
    %742 = vmatpush1.bf16.msra.mxu0 %v562
    %743 = vmatprep.subr.bf16.mxu0 %v567
    %744 = vmatpush1.bf16.msra.mxu0 %v566
    %745 = vmatprep.subr.bf16.mxu0 %v571
    %746 = vmatpush1.bf16.msra.mxu0 %v570
    %747 = vmatprep.subr.bf16.mxu0 %v575
    %748 = vmatpush1.bf16.msra.mxu0 %v574
    %749 = vmatprep.subr.bf16.mxu0 %v579
    %750 = vmatpush1.bf16.msra.mxu0 %v578
    %751 = vmatprep.subr.bf16.mxu0 %v583
    %752 = vmatpush1.bf16.msra.mxu0 %v582
    %753 = vmatprep.subr.bf16.mxu0 %v587
    %754 = vmatpush1.bf16.msra.mxu0 %v586
    %755 = vmatprep.subr.bf16.mxu0 %v591
    %756 = vmatpush1.bf16.msra.mxu0 %v590
    %757 = vmatprep.subr.bf16.mxu0 %v595
    %758 = vmatpush1.bf16.msra.mxu0 %v594
    %759 = vmatprep.subr.bf16.mxu0 %v599
    %760 = vmatpush1.bf16.msra.mxu0 %v598
    %761 = vmatprep.subr.bf16.mxu0 %v603
    %762 = vmatpush1.bf16.msra.mxu0 %v602
    %763 = vmatprep.subr.bf16.mxu0 %v607
    %764 = vmatpush1.bf16.msra.mxu0 %v606
    %765 = vmatprep.subr.bf16.mxu0 %v611
    %766 = vmatpush1.bf16.msra.mxu0 %v610
    %767 = vmatprep.subr.bf16.mxu0 %v615
    %768 = vmatpush1.bf16.msra.mxu0 %v614
    %769 = vmatprep.subr.bf16.mxu0 %v619
    %770 = vmatpush1.bf16.msra.mxu0 %v618
    %771 = vmatprep.subr.bf16.mxu0 %v623
    %772 = vmatpush1.bf16.msra.mxu0 %v622
    %773 = vmatprep.mubr.bf16.mxu0 %v279
    %774 = vmatmul.mubr.bf16.gmra.mrb[0].mxu0 %v278
    %v775 = vpop.f32.mrb[0].mxu0
    %v776 = vadd.f32 %v359, %v775
    %v777 = vpop.f32.mrb[0].mxu0
    %v778 = vadd.f32 %v363, %v777
    %v779 = vpop.f32.mrb[0].mxu0
    %v780 = vadd.f32 %v359, %v779
    %v781 = vpop.f32.mrb[0].mxu0
    %v782 = vadd.f32 %v363, %v781
    %783 = vmatprep.mubr.bf16.mxu0 %v281
    %784 = vmatmul.mubr.bf16.gmra.mrb[0].mxu0 %v280
    %v785 = vpop.f32.mrb[0].mxu0
    %v786 = vadd.f32 %v359, %v785
    %v787 = vpop.f32.mrb[0].mxu0
    %v788 = vadd.f32 %v363, %v787
    %v789 = vpop.f32.mrb[0].mxu0
    %v790 = vadd.f32 %v359, %v789
    %v791 = vpop.f32.mrb[0].mxu0
    %v792 = vadd.f32 %v363, %v791
    %793 = vdwg.mxu0
    %v794 = vpack.c.bf16 %v161, %v161
    %v795 = vpack.c.bf16 %v162, %v162
    %v796 = vld [vmem:[%s9] sm:$0xff]
    %v797 = vld [vmem:[%s9 + $0x8] sm:$0xff]
    %v798 = vld [vmem:[%s9 + $0x10] sm:$0xff]
    %v799 = vld [vmem:[%s9 + $0x18] sm:$0xff]
    %v800 = vld [vmem:[%s9 + $0x20] sm:$0xff]
    %v801 = vld [vmem:[%s9 + $0x28] sm:$0xff]
    %v802 = vld [vmem:[%s9 + $0x30] sm:$0xff]
    %v803 = vld [vmem:[%s9 + $0x38] sm:$0xff]
    %v804 = vld [vmem:[%s9 + $0x40] sm:$0xff]
    %v805 = vld [vmem:[%s9 + $0x48] sm:$0xff]
    %v806 = vld [vmem:[%s9 + $0x50] sm:$0xff]
    %v807 = vld [vmem:[%s9 + $0x58] sm:$0xff]
    %v808 = vld [vmem:[%s9 + $0x60] sm:$0xff]
    %v809 = vld [vmem:[%s9 + $0x68] sm:$0xff]
    %v810 = vld [vmem:[%s9 + $0x70] sm:$0xff]
    %v811 = vld [vmem:[%s9 + $0x78] sm:$0xff]
    %v812 = vld [vmem:[%s9 + $0x80] sm:$0xff]
    %v813 = vld [vmem:[%s9 + $0x88] sm:$0xff]
    %v814 = vld [vmem:[%s9 + $0x90] sm:$0xff]
    %v815 = vld [vmem:[%s9 + $0x98] sm:$0xff]
    %v816 = vld [vmem:[%s9 + $0xa0] sm:$0xff]
    %v817 = vld [vmem:[%s9 + $0xa8] sm:$0xff]
    %v818 = vld [vmem:[%s9 + $0xb0] sm:$0xff]
    %v819 = vld [vmem:[%s9 + $0xb8] sm:$0xff]
    %v820 = vld [vmem:[%s9 + $0xc0] sm:$0xff]
    %v821 = vld [vmem:[%s9 + $0xc8] sm:$0xff]
    %v822 = vld [vmem:[%s9 + $0xd0] sm:$0xff]
    %v823 = vld [vmem:[%s9 + $0xd8] sm:$0xff]
    %v824 = vld [vmem:[%s9 + $0xe0] sm:$0xff]
    %v825 = vld [vmem:[%s9 + $0xe8] sm:$0xff]
    %v826 = vld [vmem:[%s9 + $0xf0] sm:$0xff]
    %v827 = vld [vmem:[%s9 + $0xf8] sm:$0xff]
    %v828 = vld [vmem:[#allocation11] sm:$0x3]
    %v830 = vlaneseq
    %v831 = vshrl.u32 %v830, 7
    %v832 = vsub.s32 0, %v831
    %v833 = vrot.slane %v828, %v832
    %v834 = vlaneseq
    %v835 = vshrl.u32 %v834, 7
    %v836 = vsub.s32 1, %v835
    %v837 = vrot.slane %v828, %v836
    %v872 = vunpack.c.l.b16 %v796
    %v873 = vunpack.c.h.b16 %v796
    %v874 = vunpack.c.l.b16 %v797
    %v875 = vunpack.c.h.b16 %v797
    %v876 = vunpack.c.l.b16 %v798
    %v877 = vunpack.c.h.b16 %v798
    %v878 = vunpack.c.l.b16 %v799
    %v879 = vunpack.c.h.b16 %v799
    %v880 = vunpack.c.l.b16 %v800
    %v881 = vunpack.c.h.b16 %v800
    %v882 = vunpack.c.l.b16 %v801
    %v883 = vunpack.c.h.b16 %v801
    %v884 = vunpack.c.l.b16 %v802
    %v885 = vunpack.c.h.b16 %v802
    %v886 = vunpack.c.l.b16 %v803
    %v887 = vunpack.c.h.b16 %v803
    %v888 = vunpack.c.l.b16 %v804
    %v889 = vunpack.c.h.b16 %v804
    %v890 = vunpack.c.l.b16 %v805
    %v891 = vunpack.c.h.b16 %v805
    %v892 = vunpack.c.l.b16 %v806
    %v893 = vunpack.c.h.b16 %v806
    %v894 = vunpack.c.l.b16 %v807
    %v895 = vunpack.c.h.b16 %v807
    %v896 = vunpack.c.l.b16 %v808
    %v897 = vunpack.c.h.b16 %v808
    %v898 = vunpack.c.l.b16 %v809
    %v899 = vunpack.c.h.b16 %v809
    %v900 = vunpack.c.l.b16 %v810
    %v901 = vunpack.c.h.b16 %v810
    %v902 = vunpack.c.l.b16 %v811
    %v903 = vunpack.c.h.b16 %v811
    %v904 = vunpack.c.l.b16 %v812
    %v905 = vunpack.c.h.b16 %v812
    %v906 = vunpack.c.l.b16 %v813
    %v907 = vunpack.c.h.b16 %v813
    %v908 = vunpack.c.l.b16 %v814
    %v909 = vunpack.c.h.b16 %v814
    %v910 = vunpack.c.l.b16 %v815
    %v911 = vunpack.c.h.b16 %v815
    %v912 = vunpack.c.l.b16 %v816
    %v913 = vunpack.c.h.b16 %v816
    %v914 = vunpack.c.l.b16 %v817
    %v915 = vunpack.c.h.b16 %v817
    %v916 = vunpack.c.l.b16 %v818
    %v917 = vunpack.c.h.b16 %v818
    %v918 = vunpack.c.l.b16 %v819
    %v919 = vunpack.c.h.b16 %v819
    %v920 = vunpack.c.l.b16 %v820
    %v921 = vunpack.c.h.b16 %v820
    %v922 = vunpack.c.l.b16 %v821
    %v923 = vunpack.c.h.b16 %v821
    %v924 = vunpack.c.l.b16 %v822
    %v925 = vunpack.c.h.b16 %v822
    %v926 = vunpack.c.l.b16 %v823
    %v927 = vunpack.c.h.b16 %v823
    %v928 = vunpack.c.l.b16 %v824
    %v929 = vunpack.c.h.b16 %v824
    %v930 = vunpack.c.l.b16 %v825
    %v931 = vunpack.c.h.b16 %v825
    %v932 = vunpack.c.l.b16 %v826
    %v933 = vunpack.c.h.b16 %v826
    %v934 = vunpack.c.l.b16 %v827
    %v935 = vunpack.c.h.b16 %v827
    %v936 = vpack.c.b16 %v874, %v872
    %v937 = vpack.c.b16 %v875, %v873
    %v938 = vpack.c.b16 %v878, %v876
    %v939 = vpack.c.b16 %v879, %v877
    %v940 = vpack.c.b16 %v882, %v880
    %v941 = vpack.c.b16 %v883, %v881
    %v942 = vpack.c.b16 %v886, %v884
    %v943 = vpack.c.b16 %v887, %v885
    %v944 = vpack.c.b16 %v890, %v888
    %v945 = vpack.c.b16 %v891, %v889
    %v946 = vpack.c.b16 %v894, %v892
    %v947 = vpack.c.b16 %v895, %v893
    %v948 = vpack.c.b16 %v898, %v896
    %v949 = vpack.c.b16 %v899, %v897
    %v950 = vpack.c.b16 %v902, %v900
    %v951 = vpack.c.b16 %v903, %v901
    %v952 = vpack.c.b16 %v906, %v904
    %v953 = vpack.c.b16 %v907, %v905
    %v954 = vpack.c.b16 %v910, %v908
    %v955 = vpack.c.b16 %v911, %v909
    %v956 = vpack.c.b16 %v914, %v912
    %v957 = vpack.c.b16 %v915, %v913
    %v958 = vpack.c.b16 %v918, %v916
    %v959 = vpack.c.b16 %v919, %v917
    %v960 = vpack.c.b16 %v922, %v920
    %v961 = vpack.c.b16 %v923, %v921
    %v962 = vpack.c.b16 %v926, %v924
    %v963 = vpack.c.b16 %v927, %v925
    %v964 = vpack.c.b16 %v930, %v928
    %v965 = vpack.c.b16 %v931, %v929
    %v966 = vpack.c.b16 %v934, %v932
    %v967 = vpack.c.b16 %v935, %v933
    %1000 = vmatprep.subr.bf16.mxu0 %v937
    %1001 = vmatpush1.bf16.msra.mxu0 %v936
    %1002 = vmatprep.subr.bf16.mxu0 %v939
    %1003 = vmatpush1.bf16.msra.mxu0 %v938
    %1004 = vmatprep.subr.bf16.mxu0 %v941
    %1005 = vmatpush1.bf16.msra.mxu0 %v940
    %1006 = vmatprep.subr.bf16.mxu0 %v943
    %1007 = vmatpush1.bf16.msra.mxu0 %v942
    %1008 = vmatprep.subr.bf16.mxu0 %v945
    %1009 = vmatpush1.bf16.msra.mxu0 %v944
    %1010 = vmatprep.subr.bf16.mxu0 %v947
    %1011 = vmatpush1.bf16.msra.mxu0 %v946
    %1012 = vmatprep.subr.bf16.mxu0 %v949
    %1013 = vmatpush1.bf16.msra.mxu0 %v948
    %1014 = vmatprep.subr.bf16.mxu0 %v951
    %1015 = vmatpush1.bf16.msra.mxu0 %v950
    %1016 = vmatprep.subr.bf16.mxu0 %v953
    %1017 = vmatpush1.bf16.msra.mxu0 %v952
    %1018 = vmatprep.subr.bf16.mxu0 %v955
    %1019 = vmatpush1.bf16.msra.mxu0 %v954
    %1020 = vmatprep.subr.bf16.mxu0 %v957
    %1021 = vmatpush1.bf16.msra.mxu0 %v956
    %1022 = vmatprep.subr.bf16.mxu0 %v959
    %1023 = vmatpush1.bf16.msra.mxu0 %v958
    %1024 = vmatprep.subr.bf16.mxu0 %v961
    %1025 = vmatpush1.bf16.msra.mxu0 %v960
    %1026 = vmatprep.subr.bf16.mxu0 %v963
    %1027 = vmatpush1.bf16.msra.mxu0 %v962
    %1028 = vmatprep.subr.bf16.mxu0 %v965
    %1029 = vmatpush1.bf16.msra.mxu0 %v964
    %1030 = vmatprep.subr.bf16.mxu0 %v967
    %1031 = vmatpush1.bf16.msra.mxu0 %v966
    %1032 = vmatprep.mubr.bf16.mxu0 %v795
    %1033 = vmatmul.mubr.bf16.gmra.mrb[0].mxu0 %v794
    %v1034 = vpop.f32.mrb[0].mxu0
    %v1035 = vadd.f32 %v833, %v1034
    %v1036 = vpop.f32.mrb[0].mxu0
    %v1037 = vadd.f32 %v837, %v1036
    %v1038 = vpop.f32.mrb[0].mxu0
    %v1039 = vpop.f32.mrb[0].mxu0
    %1040 = vdwg.mxu0
    %v1041 = vmul.f32 %v1035, 0.125
    %v1042 = vmul.f32 %v1037, 0.125
    %v1043 = vmul.f32 %v1041, %v723
    %v1044 = vmul.f32 %v1042, %v725
    %v1045 = vmul.f32 %v1041, %v727
    %v1046 = vmul.f32 %v1042, %v729
    %v1047 = vmul.f32 %v1041, %v733
    %v1048 = vmul.f32 %v1042, %v735
    %v1049 = vmul.f32 %v1041, %v737
    %v1050 = vmul.f32 %v1042, %v739
    %v1051 = vld [vmem:[%s3] sm:$0xff]
    %v1052 = vld [vmem:[%s3 + $0x8] sm:$0xff]
    %v1053 = vld [vmem:[%s3 + $0x10] sm:$0xff]
    %v1054 = vld [vmem:[%s3 + $0x18] sm:$0xff]
    %v1055 = vld [vmem:[%s3 + $0x20] sm:$0xff]
    %v1056 = vld [vmem:[%s3 + $0x28] sm:$0xff]
    %v1057 = vld [vmem:[%s3 + $0x30] sm:$0xff]
    %v1058 = vld [vmem:[%s3 + $0x38] sm:$0xff]
    %v1059 = vld [vmem:[%s3 + $0x40] sm:$0xff]
    %v1060 = vld [vmem:[%s3 + $0x48] sm:$0xff]
    %v1061 = vld [vmem:[%s3 + $0x50] sm:$0xff]
    %v1062 = vld [vmem:[%s3 + $0x58] sm:$0xff]
    %v1063 = vld [vmem:[%s3 + $0x60] sm:$0xff]
    %v1064 = vld [vmem:[%s3 + $0x68] sm:$0xff]
    %v1065 = vld [vmem:[%s3 + $0x70] sm:$0xff]
    %v1066 = vld [vmem:[%s3 + $0x78] sm:$0xff]
    %v1067 = vld [vmem:[%s3 + $0x80] sm:$0xff]
    %v1068 = vld [vmem:[%s3 + $0x88] sm:$0xff]
    %v1069 = vld [vmem:[%s3 + $0x90] sm:$0xff]
    %v1070 = vld [vmem:[%s3 + $0x98] sm:$0xff]
    %v1071 = vld [vmem:[%s3 + $0xa0] sm:$0xff]
    %v1072 = vld [vmem:[%s3 + $0xa8] sm:$0xff]
    %v1073 = vld [vmem:[%s3 + $0xb0] sm:$0xff]
    %v1074 = vld [vmem:[%s3 + $0xb8] sm:$0xff]
    %v1075 = vld [vmem:[%s3 + $0xc0] sm:$0xff]
    %v1076 = vld [vmem:[%s3 + $0xc8] sm:$0xff]
    %v1077 = vld [vmem:[%s3 + $0xd0] sm:$0xff]
    %v1078 = vld [vmem:[%s3 + $0xd8] sm:$0xff]
    %v1079 = vld [vmem:[%s3 + $0xe0] sm:$0xff]
    %v1080 = vld [vmem:[%s3 + $0xe8] sm:$0xff]
    %v1081 = vld [vmem:[%s3 + $0xf0] sm:$0xff]
    %v1082 = vld [vmem:[%s3 + $0xf8] sm:$0xff]
    %1083 = vmatprep.subr.mxu0 0.0
    %1084 = vmatpush1.msra.mxu0 %v1051
    %1085 = vmatprep.subr.mxu0 0.0
    %1086 = vmatpush1.msra.mxu0 %v1052
    %1087 = vmatprep.subr.mxu0 0.0
    %1088 = vmatpush1.msra.mxu0 %v1053
    %1089 = vmatprep.subr.mxu0 0.0
    %1090 = vmatpush1.msra.mxu0 %v1054
    %1091 = vmatprep.subr.mxu0 0.0
    %1092 = vmatpush1.msra.mxu0 %v1055
    %1093 = vmatprep.subr.mxu0 0.0
    %1094 = vmatpush1.msra.mxu0 %v1056
    %1095 = vmatprep.subr.mxu0 0.0
    %1096 = vmatpush1.msra.mxu0 %v1057
    %1097 = vmatprep.subr.mxu0 0.0
    %1098 = vmatpush1.msra.mxu0 %v1058
    %1099 = vmatprep.subr.mxu0 0.0
    %1100 = vmatpush1.msra.mxu0 %v1059
    %1101 = vmatprep.subr.mxu0 0.0
    %1102 = vmatpush1.msra.mxu0 %v1060
    %1103 = vmatprep.subr.mxu0 0.0
    %1104 = vmatpush1.msra.mxu0 %v1061
    %1105 = vmatprep.subr.mxu0 0.0
    %1106 = vmatpush1.msra.mxu0 %v1062
    %1107 = vmatprep.subr.mxu0 0.0
    %1108 = vmatpush1.msra.mxu0 %v1063
    %1109 = vmatprep.subr.mxu0 0.0
    %1110 = vmatpush1.msra.mxu0 %v1064
    %1111 = vmatprep.subr.mxu0 0.0
    %1112 = vmatpush1.msra.mxu0 %v1065
    %1113 = vmatprep.subr.mxu0 0.0
    %1114 = vmatpush1.msra.mxu0 %v1066
    %1115 = vmatprep.subr.mxu0 0.0
    %1116 = vmatpush1.msra.mxu0 %v1067
    %1117 = vmatprep.subr.mxu0 0.0
    %1118 = vmatpush1.msra.mxu0 %v1068
    %1119 = vmatprep.subr.mxu0 0.0
    %1120 = vmatpush1.msra.mxu0 %v1069
    %1121 = vmatprep.subr.mxu0 0.0
    %1122 = vmatpush1.msra.mxu0 %v1070
    %1123 = vmatprep.subr.mxu0 0.0
    %1124 = vmatpush1.msra.mxu0 %v1071
    %1125 = vmatprep.subr.mxu0 0.0
    %1126 = vmatpush1.msra.mxu0 %v1072
    %1127 = vmatprep.subr.mxu0 0.0
    %1128 = vmatpush1.msra.mxu0 %v1073
    %1129 = vmatprep.subr.mxu0 0.0
    %1130 = vmatpush1.msra.mxu0 %v1074
    %1131 = vmatprep.subr.mxu0 0.0
    %1132 = vmatpush1.msra.mxu0 %v1075
    %1133 = vmatprep.subr.mxu0 0.0
    %1134 = vmatpush1.msra.mxu0 %v1076
    %1135 = vmatprep.subr.mxu0 0.0
    %1136 = vmatpush1.msra.mxu0 %v1077
    %1137 = vmatprep.subr.mxu0 0.0
    %1138 = vmatpush1.msra.mxu0 %v1078
    %1139 = vmatprep.subr.mxu0 0.0
    %1140 = vmatpush1.msra.mxu0 %v1079
    %1141 = vmatprep.subr.mxu0 0.0
    %1142 = vmatpush1.msra.mxu0 %v1080
    %1143 = vmatprep.subr.mxu0 0.0
    %1144 = vmatpush1.msra.mxu0 %v1081
    %1145 = vmatprep.subr.mxu0 0.0
    %1146 = vmatpush1.msra.mxu0 %v1082
    %1147 = vmatprep.mubr.f32.mxu0 %v1044
    %1148 = vmatmul.mubr.f32.gmra.mrb[0].mxu0 %v1043
    %v1149 = vpop.f32.mrb[0].mxu0
    %v1150 = vadd.f32 0.0, %v1149
    %v1151 = vpop.f32.mrb[0].mxu0
    %1152 = vmatprep.mubr.f32.mxu0 %v1046
    %1153 = vmatmul.mubr.f32.gmra.mrb[0].mxu0 %v1045
    %v1154 = vpop.f32.mrb[0].mxu0
    %v1155 = vadd.f32 0.0, %v1154
    %v1156 = vpop.f32.mrb[0].mxu0
    %1157 = vmatprep.mubr.f32.mxu0 %v1048
    %1158 = vmatmul.mubr.f32.gmra.mrb[0].mxu0 %v1047
    %v1159 = vpop.f32.mrb[0].mxu0
    %v1160 = vadd.f32 0.0, %v1159
    %v1161 = vpop.f32.mrb[0].mxu0
    %1162 = vmatprep.mubr.f32.mxu0 %v1050
    %1163 = vmatmul.mubr.f32.gmra.mrb[0].mxu0 %v1049
    %v1164 = vpop.f32.mrb[0].mxu0
    %v1165 = vadd.f32 0.0, %v1164
    %v1166 = vpop.f32.mrb[0].mxu0
    %1167 = vdwg.mxu0
    %vm1168 = vcmask 31744
    %v1169 = vsel %vm1168, %v1150, -inf
    %v1170 = vsel %vm1168, %v1155, -inf
    %v1171 = vsel %vm1168, %v1160, -inf
    %v1172 = vsel %vm1168, %v1165, -inf
    %v1173 = vmax.f32 %v1169, %v1170
    %v1174 = vmax.f32 %v1171, %v1172
    %v1175 = vmax.f32 %v1173, %v1174
    %v1176 = vsub.f32 %v1150, %v1175
    %v1177 = vsub.f32 %v1155, %v1175
    %v1178 = vsub.f32 %v1160, %v1175
    %v1179 = vsub.f32 %v1165, %v1175
    %v1180 = vmul.f32 %v1176, 1.442695
    %v1181 = vpow.pop %v1180
    %v1182 = vmul.f32 %v1177, 1.442695
    %v1183 = vpow.pop %v1182
    %v1184 = vmul.f32 %v1178, 1.442695
    %v1185 = vpow.pop %v1184
    %v1186 = vmul.f32 %v1179, 1.442695
    %v1187 = vpow.pop %v1186
    %v1188 = vsel %vm1168, %v1181, 0.0
    %v1189 = vsel %vm1168, %v1183, 0.0
    %v1190 = vadd.f32 %v1188, %v1189
    %v1191 = vsel %vm1168, %v1185, 0.0
    %v1192 = vadd.f32 %v1190, %v1191
    %v1193 = vsel %vm1168, %v1187, 0.0
    %v1194 = vadd.f32 %v1192, %v1193
    %v1195 = vrcp.pop %v1194
    %v1196 = vmul.f32 %v1181, %v1195
    %v1197 = vmul.f32 %v1183, %v1195
    %v1198 = vmul.f32 %v1185, %v1195
    %v1199 = vmul.f32 %v1187, %v1195
    %v1200 = vld [vmem:[%s4] sm:$0xff]
    %v1202 = vcombine.high %v1200, %v1200
    %v1204 = vsel %vm1168, %v1196, 0
    %v1207 = vsel %vm1168, %v1197, 0
    %v1210 = vsel %vm1168, %v1198, 0
    %v1213 = vsel %vm1168, %v1199, 0
    %vm1215 = vcmask 1043456
    %v1216 = vsel %vm1215, %v1200, 0
    %v1218 = vsel %vm1215, %v1202, 0
    %1220 = vmatprep.subr.mxu0 %v1218
    %1221 = vmatpush1.msra.mxu0 %v1216
    %1222 = vmatprep.subr.mxu0 0.0
    %1223 = vmatpush1.msra.mxu0 0.0
    %1224 = vmatprep.subr.mxu0 0.0
    %1225 = vmatpush1.msra.mxu0 0.0
    %1226 = vmatprep.subr.mxu0 0.0
    %1227 = vmatpush1.msra.mxu0 0.0
    %1228 = vmatprep.subr.mxu0 0.0
    %1229 = vmatpush1.msra.mxu0 0.0
    %1230 = vmatprep.subr.mxu0 0.0
    %1231 = vmatpush1.msra.mxu0 0.0
    %1232 = vmatprep.subr.mxu0 0.0
    %1233 = vmatpush1.msra.mxu0 0.0
    %1234 = vmatprep.subr.mxu0 0.0
    %1235 = vmatpush1.msra.mxu0 0.0
    %1236 = vmatprep.subr.mxu0 0.0
    %1237 = vmatpush1.msra.mxu0 0.0
    %1238 = vmatprep.subr.mxu0 0.0
    %1239 = vmatpush1.msra.mxu0 0.0
    %1240 = vmatprep.subr.mxu0 0.0
    %1241 = vmatpush1.msra.mxu0 0.0
    %1242 = vmatprep.subr.mxu0 0.0
    %1243 = vmatpush1.msra.mxu0 0.0
    %1244 = vmatprep.subr.mxu0 0.0
    %1245 = vmatpush1.msra.mxu0 0.0
    %1246 = vmatprep.subr.mxu0 0.0
    %1247 = vmatpush1.msra.mxu0 0.0
    %1248 = vmatprep.subr.mxu0 0.0
    %1249 = vmatpush1.msra.mxu0 0.0
    %1250 = vmatprep.subr.mxu0 0.0
    %1251 = vmatpush1.msra.mxu0 0.0
    %1252 = vmatprep.subr.mxu0 0.0
    %1253 = vmatpush1.msra.mxu0 0.0
    %1254 = vmatprep.subr.mxu0 0.0
    %1255 = vmatpush1.msra.mxu0 0.0
    %1256 = vmatprep.subr.mxu0 0.0
    %1257 = vmatpush1.msra.mxu0 0.0
    %1258 = vmatprep.subr.mxu0 0.0
    %1259 = vmatpush1.msra.mxu0 0.0
    %1260 = vmatprep.subr.mxu0 0.0
    %1261 = vmatpush1.msra.mxu0 0.0
    %1262 = vmatprep.subr.mxu0 0.0
    %1263 = vmatpush1.msra.mxu0 0.0
    %1264 = vmatprep.subr.mxu0 0.0
    %1265 = vmatpush1.msra.mxu0 0.0
    %1266 = vmatprep.subr.mxu0 0.0
    %1267 = vmatpush1.msra.mxu0 0.0
    %1268 = vmatprep.subr.mxu0 0.0
    %1269 = vmatpush1.msra.mxu0 0.0
    %1270 = vmatprep.subr.mxu0 0.0
    %1271 = vmatpush1.msra.mxu0 0.0
    %1272 = vmatprep.subr.mxu0 0.0
    %1273 = vmatpush1.msra.mxu0 0.0
    %1274 = vmatprep.subr.mxu0 0.0
    %1275 = vmatpush1.msra.mxu0 0.0
    %1276 = vmatprep.subr.mxu0 0.0
    %1277 = vmatpush1.msra.mxu0 0.0
    %1278 = vmatprep.subr.mxu0 0.0
    %1279 = vmatpush1.msra.mxu0 0.0
    %1280 = vmatprep.subr.mxu0 0.0
    %1281 = vmatpush1.msra.mxu0 0.0
    %1282 = vmatprep.subr.mxu0 0.0
    %1283 = vmatpush1.msra.mxu0 0.0
    %1284 = vmatprep.mubr.f32.mxu0 0.0
    %1285 = vmatmul.mubr.f32.gmra.mrb[0].mxu0 %v1204
    %v1286 = vpop.f32.mrb[0].mxu0
    %v1287 = vadd.f32 0.0, %v1286
    %v1288 = vpop.f32.mrb[0].mxu0
    %v1289 = vadd.f32 0.0, %v1288
    %1290 = vmatprep.mubr.f32.mxu0 0.0
    %1291 = vmatmul.mubr.f32.gmra.mrb[0].mxu0 %v1207
    %v1292 = vpop.f32.mrb[0].mxu0
    %v1293 = vadd.f32 0.0, %v1292
    %v1294 = vpop.f32.mrb[0].mxu0
    %v1295 = vadd.f32 0.0, %v1294
    %1296 = vmatprep.mubr.f32.mxu0 0.0
    %1297 = vmatmul.mubr.f32.gmra.mrb[0].mxu0 %v1210
    %v1298 = vpop.f32.mrb[0].mxu0
    %v1299 = vadd.f32 0.0, %v1298
    %v1300 = vpop.f32.mrb[0].mxu0
    %v1301 = vadd.f32 0.0, %v1300
    %1302 = vmatprep.mubr.f32.mxu0 0.0
    %1303 = vmatmul.mubr.f32.gmra.mrb[0].mxu0 %v1213
    %v1304 = vpop.f32.mrb[0].mxu0
    %v1305 = vadd.f32 0.0, %v1304
    %v1306 = vpop.f32.mrb[0].mxu0
    %v1307 = vadd.f32 0.0, %v1306
    %1308 = vdwg.mxu0
    %v1309 = vmul.f32 %v1287, %v776
    %v1310 = vmul.f32 %v1289, %v778
    %v1311 = vmul.f32 %v1293, %v780
    %v1312 = vmul.f32 %v1295, %v782
    %v1313 = vmul.f32 %v1299, %v786
    %v1314 = vmul.f32 %v1301, %v788
    %v1315 = vmul.f32 %v1305, %v790
    %v1316 = vmul.f32 %v1307, %v792
    %v1317 = vadd.f32 %v1309, %v1311
    %v1318 = vadd.f32 %v1317, %v1313
    %v1319 = vadd.f32 %v1318, %v1315
    %v1320 = vadd.f32 %v1310, %v1312
    %v1321 = vadd.f32 %v1320, %v1314
    %v1322 = vadd.f32 %v1321, %v1316
    %v1323 = vpack.c.bf16 %v1319, %v1319
    %v1324 = vpack.c.bf16 %v1322, %v1322
    %v1325 = vld [vmem:[#allocation13] sm:$0xff]
    %v1326 = vld [vmem:[#allocation13 + $0x8] sm:$0xff]
    %v1327 = vld [vmem:[#allocation13 + $0x10] sm:$0xff]
    %v1328 = vld [vmem:[#allocation13 + $0x18] sm:$0xff]
    %v1329 = vld [vmem:[#allocation13 + $0x20] sm:$0xff]
    %v1330 = vld [vmem:[#allocation13 + $0x28] sm:$0xff]
    %v1331 = vld [vmem:[#allocation13 + $0x30] sm:$0xff]
    %v1332 = vld [vmem:[#allocation13 + $0x38] sm:$0xff]
    %v1333 = vld [vmem:[#allocation13 + $0x40] sm:$0xff]
    %v1334 = vld [vmem:[#allocation13 + $0x48] sm:$0xff]
    %v1335 = vld [vmem:[#allocation13 + $0x50] sm:$0xff]
    %v1336 = vld [vmem:[#allocation13 + $0x58] sm:$0xff]
    %v1337 = vld [vmem:[#allocation13 + $0x60] sm:$0xff]
    %v1338 = vld [vmem:[#allocation13 + $0x68] sm:$0xff]
    %v1339 = vld [vmem:[#allocation13 + $0x70] sm:$0xff]
    %v1340 = vld [vmem:[#allocation13 + $0x78] sm:$0xff]
    %v1341 = vld [vmem:[#allocation13 + $0x80] sm:$0xff]
    %v1342 = vld [vmem:[#allocation13 + $0x88] sm:$0xff]
    %v1343 = vld [vmem:[#allocation13 + $0x90] sm:$0xff]
    %v1344 = vld [vmem:[#allocation13 + $0x98] sm:$0xff]
    %v1345 = vld [vmem:[#allocation13 + $0xa0] sm:$0xff]
    %v1346 = vld [vmem:[#allocation13 + $0xa8] sm:$0xff]
    %v1347 = vld [vmem:[#allocation13 + $0xb0] sm:$0xff]
    %v1348 = vld [vmem:[#allocation13 + $0xb8] sm:$0xff]
    %v1349 = vld [vmem:[#allocation13 + $0xc0] sm:$0xff]
    %v1350 = vld [vmem:[#allocation13 + $0xc8] sm:$0xff]
    %v1351 = vld [vmem:[#allocation13 + $0xd0] sm:$0xff]
    %v1352 = vld [vmem:[#allocation13 + $0xd8] sm:$0xff]
    %v1353 = vld [vmem:[#allocation13 + $0xe0] sm:$0xff]
    %v1354 = vld [vmem:[#allocation13 + $0xe8] sm:$0xff]
    %v1355 = vld [vmem:[#allocation13 + $0xf0] sm:$0xff]
    %v1356 = vld [vmem:[#allocation13 + $0xf8] sm:$0xff]
    %v1357 = vld [vmem:[%s12] sm:$0x3]
    %v1359 = vlaneseq
    %v1360 = vshrl.u32 %v1359, 7
    %v1361 = vsub.s32 0, %v1360
    %v1362 = vrot.slane %v1357, %v1361
    %v1363 = vlaneseq
    %v1364 = vshrl.u32 %v1363, 7
    %v1365 = vsub.s32 1, %v1364
    %v1366 = vrot.slane %v1357, %v1365
    %v1401 = vunpack.c.l.b16 %v1325
    %v1402 = vunpack.c.h.b16 %v1325
    %v1403 = vunpack.c.l.b16 %v1326
    %v1404 = vunpack.c.h.b16 %v1326
    %v1405 = vunpack.c.l.b16 %v1327
    %v1406 = vunpack.c.h.b16 %v1327
    %v1407 = vunpack.c.l.b16 %v1328
    %v1408 = vunpack.c.h.b16 %v1328
    %v1409 = vunpack.c.l.b16 %v1329
    %v1410 = vunpack.c.h.b16 %v1329
    %v1411 = vunpack.c.l.b16 %v1330
    %v1412 = vunpack.c.h.b16 %v1330
    %v1413 = vunpack.c.l.b16 %v1331
    %v1414 = vunpack.c.h.b16 %v1331
    %v1415 = vunpack.c.l.b16 %v1332
    %v1416 = vunpack.c.h.b16 %v1332
    %v1417 = vunpack.c.l.b16 %v1333
    %v1418 = vunpack.c.h.b16 %v1333
    %v1419 = vunpack.c.l.b16 %v1334
    %v1420 = vunpack.c.h.b16 %v1334
    %v1421 = vunpack.c.l.b16 %v1335
    %v1422 = vunpack.c.h.b16 %v1335
    %v1423 = vunpack.c.l.b16 %v1336
    %v1424 = vunpack.c.h.b16 %v1336
    %v1425 = vunpack.c.l.b16 %v1337
    %v1426 = vunpack.c.h.b16 %v1337
    %v1427 = vunpack.c.l.b16 %v1338
    %v1428 = vunpack.c.h.b16 %v1338
    %v1429 = vunpack.c.l.b16 %v1339
    %v1430 = vunpack.c.h.b16 %v1339
    %v1431 = vunpack.c.l.b16 %v1340
    %v1432 = vunpack.c.h.b16 %v1340
    %v1433 = vunpack.c.l.b16 %v1341
    %v1434 = vunpack.c.h.b16 %v1341
    %v1435 = vunpack.c.l.b16 %v1342
    %v1436 = vunpack.c.h.b16 %v1342
    %v1437 = vunpack.c.l.b16 %v1343
    %v1438 = vunpack.c.h.b16 %v1343
    %v1439 = vunpack.c.l.b16 %v1344
    %v1440 = vunpack.c.h.b16 %v1344
    %v1441 = vunpack.c.l.b16 %v1345
    %v1442 = vunpack.c.h.b16 %v1345
    %v1443 = vunpack.c.l.b16 %v1346
    %v1444 = vunpack.c.h.b16 %v1346
    %v1445 = vunpack.c.l.b16 %v1347
    %v1446 = vunpack.c.h.b16 %v1347
    %v1447 = vunpack.c.l.b16 %v1348
    %v1448 = vunpack.c.h.b16 %v1348
    %v1449 = vunpack.c.l.b16 %v1349
    %v1450 = vunpack.c.h.b16 %v1349
    %v1451 = vunpack.c.l.b16 %v1350
    %v1452 = vunpack.c.h.b16 %v1350
    %v1453 = vunpack.c.l.b16 %v1351
    %v1454 = vunpack.c.h.b16 %v1351
    %v1455 = vunpack.c.l.b16 %v1352
    %v1456 = vunpack.c.h.b16 %v1352
    %v1457 = vunpack.c.l.b16 %v1353
    %v1458 = vunpack.c.h.b16 %v1353
    %v1459 = vunpack.c.l.b16 %v1354
    %v1460 = vunpack.c.h.b16 %v1354
    %v1461 = vunpack.c.l.b16 %v1355
    %v1462 = vunpack.c.h.b16 %v1355
    %v1463 = vunpack.c.l.b16 %v1356
    %v1464 = vunpack.c.h.b16 %v1356
    %v1465 = vpack.c.b16 %v1403, %v1401
    %v1466 = vpack.c.b16 %v1404, %v1402
    %v1467 = vpack.c.b16 %v1407, %v1405
    %v1468 = vpack.c.b16 %v1408, %v1406
    %v1469 = vpack.c.b16 %v1411, %v1409
    %v1470 = vpack.c.b16 %v1412, %v1410
    %v1471 = vpack.c.b16 %v1415, %v1413
    %v1472 = vpack.c.b16 %v1416, %v1414
    %v1473 = vpack.c.b16 %v1419, %v1417
    %v1474 = vpack.c.b16 %v1420, %v1418
    %v1475 = vpack.c.b16 %v1423, %v1421
    %v1476 = vpack.c.b16 %v1424, %v1422
    %v1477 = vpack.c.b16 %v1427, %v1425
    %v1478 = vpack.c.b16 %v1428, %v1426
    %v1479 = vpack.c.b16 %v1431, %v1429
    %v1480 = vpack.c.b16 %v1432, %v1430
    %v1481 = vpack.c.b16 %v1435, %v1433
    %v1482 = vpack.c.b16 %v1436, %v1434
    %v1483 = vpack.c.b16 %v1439, %v1437
    %v1484 = vpack.c.b16 %v1440, %v1438
    %v1485 = vpack.c.b16 %v1443, %v1441
    %v1486 = vpack.c.b16 %v1444, %v1442
    %v1487 = vpack.c.b16 %v1447, %v1445
    %v1488 = vpack.c.b16 %v1448, %v1446
    %v1489 = vpack.c.b16 %v1451, %v1449
    %v1490 = vpack.c.b16 %v1452, %v1450
    %v1491 = vpack.c.b16 %v1455, %v1453
    %v1492 = vpack.c.b16 %v1456, %v1454
    %v1493 = vpack.c.b16 %v1459, %v1457
    %v1494 = vpack.c.b16 %v1460, %v1458
    %v1495 = vpack.c.b16 %v1463, %v1461
    %v1496 = vpack.c.b16 %v1464, %v1462
    %1529 = vmatprep.subr.bf16.mxu0 %v1466
    %1530 = vmatpush1.bf16.msra.mxu0 %v1465
    %1531 = vmatprep.subr.bf16.mxu0 %v1468
    %1532 = vmatpush1.bf16.msra.mxu0 %v1467
    %1533 = vmatprep.subr.bf16.mxu0 %v1470
    %1534 = vmatpush1.bf16.msra.mxu0 %v1469
    %1535 = vmatprep.subr.bf16.mxu0 %v1472
    %1536 = vmatpush1.bf16.msra.mxu0 %v1471
    %1537 = vmatprep.subr.bf16.mxu0 %v1474
    %1538 = vmatpush1.bf16.msra.mxu0 %v1473
    %1539 = vmatprep.subr.bf16.mxu0 %v1476
    %1540 = vmatpush1.bf16.msra.mxu0 %v1475
    %1541 = vmatprep.subr.bf16.mxu0 %v1478
    %1542 = vmatpush1.bf16.msra.mxu0 %v1477
    %1543 = vmatprep.subr.bf16.mxu0 %v1480
    %1544 = vmatpush1.bf16.msra.mxu0 %v1479
    %1545 = vmatprep.subr.bf16.mxu0 %v1482
    %1546 = vmatpush1.bf16.msra.mxu0 %v1481
    %1547 = vmatprep.subr.bf16.mxu0 %v1484
    %1548 = vmatpush1.bf16.msra.mxu0 %v1483
    %1549 = vmatprep.subr.bf16.mxu0 %v1486
    %1550 = vmatpush1.bf16.msra.mxu0 %v1485
    %1551 = vmatprep.subr.bf16.mxu0 %v1488
    %1552 = vmatpush1.bf16.msra.mxu0 %v1487
    %1553 = vmatprep.subr.bf16.mxu0 %v1490
    %1554 = vmatpush1.bf16.msra.mxu0 %v1489
    %1555 = vmatprep.subr.bf16.mxu0 %v1492
    %1556 = vmatpush1.bf16.msra.mxu0 %v1491
    %1557 = vmatprep.subr.bf16.mxu0 %v1494
    %1558 = vmatpush1.bf16.msra.mxu0 %v1493
    %1559 = vmatprep.subr.bf16.mxu0 %v1496
    %1560 = vmatpush1.bf16.msra.mxu0 %v1495
    %1561 = vmatprep.mubr.bf16.mxu0 %v1324
    %1562 = vmatmul.mubr.bf16.gmra.mrb[0].mxu0 %v1323
    %v1563 = vpop.f32.mrb[0].mxu0
    %v1564 = vadd.f32 %v1362, %v1563
    %v1565 = vpop.f32.mrb[0].mxu0
    %v1566 = vadd.f32 %v1366, %v1565
    %v1567 = vpop.f32.mrb[0].mxu0
    %v1568 = vpop.f32.mrb[0].mxu0
    %1569 = vdwg.mxu0
    %v1570 = vadd.f32 %v1564, %v161
    %v1571 = vadd.f32 %v1566, %v162
    %v1572 = vadd.f32 %v1570, %v1571
    %1573 = vadd.xlane.f32.xlu0 %v1572
    %v1574 = vpop.xlane.xlu0 %1573
    %v1575 = vmul.f32 %v1574, %v185
    %v1576 = vsub.f32 %v1570, %v1575
    %v1577 = vsub.f32 %v1571, %v1575
    %v1578 = vmul.f32 %v1576, %v1576
    %v1579 = vmul.f32 %v1577, %v1577
    %v1580 = vadd.f32 %v1578, %v1579
    %1581 = vadd.xlane.f32.xlu0 %v1580
    %v1582 = vpop.xlane.xlu0 %1581
    %v1583 = vmul.f32 %v1582, %v185
    %v1584 = vadd.f32 %v1583, 1e-05
    %v1585 = vrsqrt.pop %v1584
    %v1586 = vmul.f32 %v1576, %v1585
    %v1587 = vmul.f32 %v1577, %v1585
    %v1588 = vld [vmem:[%s13] sm:$0x3]
    %v1590 = vlaneseq
    %v1591 = vshrl.u32 %v1590, 7
    %v1592 = vsub.s32 0, %v1591
    %v1593 = vrot.slane %v1588, %v1592
    %v1594 = vlaneseq
    %v1595 = vshrl.u32 %v1594, 7
    %v1596 = vsub.s32 1, %v1595
    %v1597 = vrot.slane %v1588, %v1596
    %v1600 = vmul.f32 %v1586, %v1593
    %v1601 = vmul.f32 %v1587, %v1597
    %v1602 = vld [vmem:[%s14] sm:$0x3]
    %v1604 = vlaneseq
    %v1605 = vshrl.u32 %v1604, 7
    %v1606 = vsub.s32 0, %v1605
    %v1607 = vrot.slane %v1602, %v1606
    %v1608 = vlaneseq
    %v1609 = vshrl.u32 %v1608, 7
    %v1610 = vsub.s32 1, %v1609
    %v1611 = vrot.slane %v1602, %v1610
    %v1614 = vadd.f32 %v1600, %v1607
    %v1615 = vadd.f32 %v1601, %v1611
    %v1616 = vpack.c.bf16 %v1614, %v1614
    %v1617 = vpack.c.bf16 %v1615, %v1615
    %v1618 = vld [vmem:[#allocation14] sm:$0xff]
    %v1619 = vld [vmem:[#allocation14 + $0x8] sm:$0xff]
    %v1620 = vld [vmem:[#allocation14 + $0x10] sm:$0xff]
    %v1621 = vld [vmem:[#allocation14 + $0x18] sm:$0xff]
    %v1622 = vld [vmem:[#allocation14 + $0x20] sm:$0xff]
    %v1623 = vld [vmem:[#allocation14 + $0x28] sm:$0xff]
    %v1624 = vld [vmem:[#allocation14 + $0x30] sm:$0xff]
    %v1625 = vld [vmem:[#allocation14 + $0x38] sm:$0xff]
    %v1626 = vld [vmem:[#allocation14 + $0x40] sm:$0xff]
    %v1627 = vld [vmem:[#allocation14 + $0x48] sm:$0xff]
    %v1628 = vld [vmem:[#allocation14 + $0x50] sm:$0xff]
    %v1629 = vld [vmem:[#allocation14 + $0x58] sm:$0xff]
    %v1630 = vld [vmem:[#allocation14 + $0x60] sm:$0xff]
    %v1631 = vld [vmem:[#allocation14 + $0x68] sm:$0xff]
    %v1632 = vld [vmem:[#allocation14 + $0x70] sm:$0xff]
    %v1633 = vld [vmem:[#allocation14 + $0x78] sm:$0xff]
    %v1634 = vld [vmem:[#allocation14 + $0x80] sm:$0xff]
    %v1635 = vld [vmem:[#allocation14 + $0x88] sm:$0xff]
    %v1636 = vld [vmem:[#allocation14 + $0x90] sm:$0xff]
    %v1637 = vld [vmem:[#allocation14 + $0x98] sm:$0xff]
    %v1638 = vld [vmem:[#allocation14 + $0xa0] sm:$0xff]
    %v1639 = vld [vmem:[#allocation14 + $0xa8] sm:$0xff]
    %v1640 = vld [vmem:[#allocation14 + $0xb0] sm:$0xff]
    %v1641 = vld [vmem:[#allocation14 + $0xb8] sm:$0xff]
    %v1642 = vld [vmem:[#allocation14 + $0xc0] sm:$0xff]
    %v1643 = vld [vmem:[#allocation14 + $0xc8] sm:$0xff]
    %v1644 = vld [vmem:[#allocation14 + $0xd0] sm:$0xff]
    %v1645 = vld [vmem:[#allocation14 + $0xd8] sm:$0xff]
    %v1646 = vld [vmem:[#allocation14 + $0xe0] sm:$0xff]
    %v1647 = vld [vmem:[#allocation14 + $0xe8] sm:$0xff]
    %v1648 = vld [vmem:[#allocation14 + $0xf0] sm:$0xff]
    %v1649 = vld [vmem:[#allocation14 + $0xf8] sm:$0xff]
    %v1650 = vld [vmem:[#allocation14 + $0x100] sm:$0xff]
    %v1651 = vld [vmem:[#allocation14 + $0x108] sm:$0xff]
    %v1652 = vld [vmem:[#allocation14 + $0x110] sm:$0xff]
    %v1653 = vld [vmem:[#allocation14 + $0x118] sm:$0xff]
    %v1654 = vld [vmem:[#allocation14 + $0x120] sm:$0xff]
    %v1655 = vld [vmem:[#allocation14 + $0x128] sm:$0xff]
    %v1656 = vld [vmem:[#allocation14 + $0x130] sm:$0xff]
    %v1657 = vld [vmem:[#allocation14 + $0x138] sm:$0xff]
    %v1658 = vld [vmem:[#allocation14 + $0x140] sm:$0xff]
    %v1659 = vld [vmem:[#allocation14 + $0x148] sm:$0xff]
    %v1660 = vld [vmem:[#allocation14 + $0x150] sm:$0xff]
    %v1661 = vld [vmem:[#allocation14 + $0x158] sm:$0xff]
    %v1662 = vld [vmem:[#allocation14 + $0x160] sm:$0xff]
    %v1663 = vld [vmem:[#allocation14 + $0x168] sm:$0xff]
    %v1664 = vld [vmem:[#allocation14 + $0x170] sm:$0xff]
    %v1665 = vld [vmem:[#allocation14 + $0x178] sm:$0xff]
    %v1666 = vld [vmem:[#allocation14 + $0x180] sm:$0xff]
    %v1667 = vld [vmem:[#allocation14 + $0x188] sm:$0xff]
    %v1668 = vld [vmem:[#allocation14 + $0x190] sm:$0xff]
    %v1669 = vld [vmem:[#allocation14 + $0x198] sm:$0xff]
    %v1670 = vld [vmem:[#allocation14 + $0x1a0] sm:$0xff]
    %v1671 = vld [vmem:[#allocation14 + $0x1a8] sm:$0xff]
    %v1672 = vld [vmem:[#allocation14 + $0x1b0] sm:$0xff]
    %v1673 = vld [vmem:[#allocation14 + $0x1b8] sm:$0xff]
    %v1674 = vld [vmem:[#allocation14 + $0x1c0] sm:$0xff]
    %v1675 = vld [vmem:[#allocation14 + $0x1c8] sm:$0xff]
    %v1676 = vld [vmem:[#allocation14 + $0x1d0] sm:$0xff]
    %v1677 = vld [vmem:[#allocation14 + $0x1d8] sm:$0xff]
    %v1678 = vld [vmem:[#allocation14 + $0x1e0] sm:$0xff]
    %v1679 = vld [vmem:[#allocation14 + $0x1e8] sm:$0xff]
    %v1680 = vld [vmem:[#allocation14 + $0x1f0] sm:$0xff]
    %v1681 = vld [vmem:[#allocation14 + $0x1f8] sm:$0xff]
    %v1682 = vld [vmem:[#allocation14 + $0x200] sm:$0xff]
    %v1683 = vld [vmem:[#allocation14 + $0x208] sm:$0xff]
    %v1684 = vld [vmem:[#allocation14 + $0x210] sm:$0xff]
    %v1685 = vld [vmem:[#allocation14 + $0x218] sm:$0xff]
    %v1686 = vld [vmem:[#allocation14 + $0x220] sm:$0xff]
    %v1687 = vld [vmem:[#allocation14 + $0x228] sm:$0xff]
    %v1688 = vld [vmem:[#allocation14 + $0x230] sm:$0xff]
    %v1689 = vld [vmem:[#allocation14 + $0x238] sm:$0xff]
    %v1690 = vld [vmem:[#allocation14 + $0x240] sm:$0xff]
    %v1691 = vld [vmem:[#allocation14 + $0x248] sm:$0xff]
    %v1692 = vld [vmem:[#allocation14 + $0x250] sm:$0xff]
    %v1693 = vld [vmem:[#allocation14 + $0x258] sm:$0xff]
    %v1694 = vld [vmem:[#allocation14 + $0x260] sm:$0xff]
    %v1695 = vld [vmem:[#allocation14 + $0x268] sm:$0xff]
    %v1696 = vld [vmem:[#allocation14 + $0x270] sm:$0xff]
    %v1697 = vld [vmem:[#allocation14 + $0x278] sm:$0xff]
    %v1698 = vld [vmem:[#allocation14 + $0x280] sm:$0xff]
    %v1699 = vld [vmem:[#allocation14 + $0x288] sm:$0xff]
    %v1700 = vld [vmem:[#allocation14 + $0x290] sm:$0xff]
    %v1701 = vld [vmem:[#allocation14 + $0x298] sm:$0xff]
    %v1702 = vld [vmem:[#allocation14 + $0x2a0] sm:$0xff]
    %v1703 = vld [vmem:[#allocation14 + $0x2a8] sm:$0xff]
    %v1704 = vld [vmem:[#allocation14 + $0x2b0] sm:$0xff]
    %v1705 = vld [vmem:[#allocation14 + $0x2b8] sm:$0xff]
    %v1706 = vld [vmem:[#allocation14 + $0x2c0] sm:$0xff]
    %v1707 = vld [vmem:[#allocation14 + $0x2c8] sm:$0xff]
    %v1708 = vld [vmem:[#allocation14 + $0x2d0] sm:$0xff]
    %v1709 = vld [vmem:[#allocation14 + $0x2d8] sm:$0xff]
    %v1710 = vld [vmem:[#allocation14 + $0x2e0] sm:$0xff]
    %v1711 = vld [vmem:[#allocation14 + $0x2e8] sm:$0xff]
    %v1712 = vld [vmem:[#allocation14 + $0x2f0] sm:$0xff]
    %v1713 = vld [vmem:[#allocation14 + $0x2f8] sm:$0xff]
    %v1714 = vld [vmem:[#allocation14 + $0x300] sm:$0xff]
    %v1715 = vld [vmem:[#allocation14 + $0x308] sm:$0xff]
    %v1716 = vld [vmem:[#allocation14 + $0x310] sm:$0xff]
    %v1717 = vld [vmem:[#allocation14 + $0x318] sm:$0xff]
    %v1718 = vld [vmem:[#allocation14 + $0x320] sm:$0xff]
    %v1719 = vld [vmem:[#allocation14 + $0x328] sm:$0xff]
    %v1720 = vld [vmem:[#allocation14 + $0x330] sm:$0xff]
    %v1721 = vld [vmem:[#allocation14 + $0x338] sm:$0xff]
    %v1722 = vld [vmem:[#allocation14 + $0x340] sm:$0xff]
    %v1723 = vld [vmem:[#allocation14 + $0x348] sm:$0xff]
    %v1724 = vld [vmem:[#allocation14 + $0x350] sm:$0xff]
    %v1725 = vld [vmem:[#allocation14 + $0x358] sm:$0xff]
    %v1726 = vld [vmem:[#allocation14 + $0x360] sm:$0xff]
    %v1727 = vld [vmem:[#allocation14 + $0x368] sm:$0xff]
    %v1728 = vld [vmem:[#allocation14 + $0x370] sm:$0xff]
    %v1729 = vld [vmem:[#allocation14 + $0x378] sm:$0xff]
    %v1730 = vld [vmem:[#allocation14 + $0x380] sm:$0xff]
    %v1731 = vld [vmem:[#allocation14 + $0x388] sm:$0xff]
    %v1732 = vld [vmem:[#allocation14 + $0x390] sm:$0xff]
    %v1733 = vld [vmem:[#allocation14 + $0x398] sm:$0xff]
    %v1734 = vld [vmem:[#allocation14 + $0x3a0] sm:$0xff]
    %v1735 = vld [vmem:[#allocation14 + $0x3a8] sm:$0xff]
    %v1736 = vld [vmem:[#allocation14 + $0x3b0] sm:$0xff]
    %v1737 = vld [vmem:[#allocation14 + $0x3b8] sm:$0xff]
    %v1738 = vld [vmem:[#allocation14 + $0x3c0] sm:$0xff]
    %v1739 = vld [vmem:[#allocation14 + $0x3c8] sm:$0xff]
    %v1740 = vld [vmem:[#allocation14 + $0x3d0] sm:$0xff]
    %v1741 = vld [vmem:[#allocation14 + $0x3d8] sm:$0xff]
    %v1742 = vld [vmem:[#allocation14 + $0x3e0] sm:$0xff]
    %v1743 = vld [vmem:[#allocation14 + $0x3e8] sm:$0xff]
    %v1744 = vld [vmem:[#allocation14 + $0x3f0] sm:$0xff]
    %v1745 = vld [vmem:[#allocation14 + $0x3f8] sm:$0xff]
    %v1746 = vld [vmem:[%s16] sm:$0xff]
    %v1748 = vlaneseq
    %v1749 = vshrl.u32 %v1748, 7
    %v1750 = vsub.s32 0, %v1749
    %v1751 = vrot.slane %v1746, %v1750
    %v1752 = vlaneseq
    %v1753 = vshrl.u32 %v1752, 7
    %v1754 = vsub.s32 1, %v1753
    %v1755 = vrot.slane %v1746, %v1754
    %v1756 = vlaneseq
    %v1757 = vshrl.u32 %v1756, 7
    %v1758 = vsub.s32 2, %v1757
    %v1759 = vrot.slane %v1746, %v1758
    %v1760 = vlaneseq
    %v1761 = vshrl.u32 %v1760, 7
    %v1762 = vsub.s32 3, %v1761
    %v1763 = vrot.slane %v1746, %v1762
    %v1764 = vlaneseq
    %v1765 = vshrl.u32 %v1764, 7
    %v1766 = vsub.s32 4, %v1765
    %v1767 = vrot.slane %v1746, %v1766
    %v1768 = vlaneseq
    %v1769 = vshrl.u32 %v1768, 7
    %v1770 = vsub.s32 5, %v1769
    %v1771 = vrot.slane %v1746, %v1770
    %v1772 = vlaneseq
    %v1773 = vshrl.u32 %v1772, 7
    %v1774 = vsub.s32 6, %v1773
    %v1775 = vrot.slane %v1746, %v1774
    %v1776 = vlaneseq
    %v1777 = vshrl.u32 %v1776, 7
    %v1778 = vsub.s32 7, %v1777
    %v1779 = vrot.slane %v1746, %v1778
    %v1916 = vunpack.c.l.b16 %v1618
    %v1917 = vunpack.c.h.b16 %v1618
    %v1918 = vunpack.c.l.b16 %v1619
    %v1919 = vunpack.c.h.b16 %v1619
    %v1920 = vunpack.c.l.b16 %v1620
    %v1921 = vunpack.c.h.b16 %v1620
    %v1922 = vunpack.c.l.b16 %v1621
    %v1923 = vunpack.c.h.b16 %v1621
    %v1924 = vunpack.c.l.b16 %v1622
    %v1925 = vunpack.c.h.b16 %v1622
    %v1926 = vunpack.c.l.b16 %v1623
    %v1927 = vunpack.c.h.b16 %v1623
    %v1928 = vunpack.c.l.b16 %v1624
    %v1929 = vunpack.c.h.b16 %v1624
    %v1930 = vunpack.c.l.b16 %v1625
    %v1931 = vunpack.c.h.b16 %v1625
    %v1932 = vunpack.c.l.b16 %v1626
    %v1933 = vunpack.c.h.b16 %v1626
    %v1934 = vunpack.c.l.b16 %v1627
    %v1935 = vunpack.c.h.b16 %v1627
    %v1936 = vunpack.c.l.b16 %v1628
    %v1937 = vunpack.c.h.b16 %v1628
    %v1938 = vunpack.c.l.b16 %v1629
    %v1939 = vunpack.c.h.b16 %v1629
    %v1940 = vunpack.c.l.b16 %v1630
    %v1941 = vunpack.c.h.b16 %v1630
    %v1942 = vunpack.c.l.b16 %v1631
    %v1943 = vunpack.c.h.b16 %v1631
    %v1944 = vunpack.c.l.b16 %v1632
    %v1945 = vunpack.c.h.b16 %v1632
    %v1946 = vunpack.c.l.b16 %v1633
    %v1947 = vunpack.c.h.b16 %v1633
    %v1948 = vunpack.c.l.b16 %v1634
    %v1949 = vunpack.c.h.b16 %v1634
    %v1950 = vunpack.c.l.b16 %v1635
    %v1951 = vunpack.c.h.b16 %v1635
    %v1952 = vunpack.c.l.b16 %v1636
    %v1953 = vunpack.c.h.b16 %v1636
    %v1954 = vunpack.c.l.b16 %v1637
    %v1955 = vunpack.c.h.b16 %v1637
    %v1956 = vunpack.c.l.b16 %v1638
    %v1957 = vunpack.c.h.b16 %v1638
    %v1958 = vunpack.c.l.b16 %v1639
    %v1959 = vunpack.c.h.b16 %v1639
    %v1960 = vunpack.c.l.b16 %v1640
    %v1961 = vunpack.c.h.b16 %v1640
    %v1962 = vunpack.c.l.b16 %v1641
    %v1963 = vunpack.c.h.b16 %v1641
    %v1964 = vunpack.c.l.b16 %v1642
    %v1965 = vunpack.c.h.b16 %v1642
    %v1966 = vunpack.c.l.b16 %v1643
    %v1967 = vunpack.c.h.b16 %v1643
    %v1968 = vunpack.c.l.b16 %v1644
    %v1969 = vunpack.c.h.b16 %v1644
    %v1970 = vunpack.c.l.b16 %v1645
    %v1971 = vunpack.c.h.b16 %v1645
    %v1972 = vunpack.c.l.b16 %v1646
    %v1973 = vunpack.c.h.b16 %v1646
    %v1974 = vunpack.c.l.b16 %v1647
    %v1975 = vunpack.c.h.b16 %v1647
    %v1976 = vunpack.c.l.b16 %v1648
    %v1977 = vunpack.c.h.b16 %v1648
    %v1978 = vunpack.c.l.b16 %v1649
    %v1979 = vunpack.c.h.b16 %v1649
    %v1980 = vunpack.c.l.b16 %v1650
    %v1981 = vunpack.c.h.b16 %v1650
    %v1982 = vunpack.c.l.b16 %v1651
    %v1983 = vunpack.c.h.b16 %v1651
    %v1984 = vunpack.c.l.b16 %v1652
    %v1985 = vunpack.c.h.b16 %v1652
    %v1986 = vunpack.c.l.b16 %v1653
    %v1987 = vunpack.c.h.b16 %v1653
    %v1988 = vunpack.c.l.b16 %v1654
    %v1989 = vunpack.c.h.b16 %v1654
    %v1990 = vunpack.c.l.b16 %v1655
    %v1991 = vunpack.c.h.b16 %v1655
    %v1992 = vunpack.c.l.b16 %v1656
    %v1993 = vunpack.c.h.b16 %v1656
    %v1994 = vunpack.c.l.b16 %v1657
    %v1995 = vunpack.c.h.b16 %v1657
    %v1996 = vunpack.c.l.b16 %v1658
    %v1997 = vunpack.c.h.b16 %v1658
    %v1998 = vunpack.c.l.b16 %v1659
    %v1999 = vunpack.c.h.b16 %v1659
    %v2000 = vunpack.c.l.b16 %v1660
    %v2001 = vunpack.c.h.b16 %v1660
    %v2002 = vunpack.c.l.b16 %v1661
    %v2003 = vunpack.c.h.b16 %v1661
    %v2004 = vunpack.c.l.b16 %v1662
    %v2005 = vunpack.c.h.b16 %v1662
    %v2006 = vunpack.c.l.b16 %v1663
    %v2007 = vunpack.c.h.b16 %v1663
    %v2008 = vunpack.c.l.b16 %v1664
    %v2009 = vunpack.c.h.b16 %v1664
    %v2010 = vunpack.c.l.b16 %v1665
    %v2011 = vunpack.c.h.b16 %v1665
    %v2012 = vunpack.c.l.b16 %v1666
    %v2013 = vunpack.c.h.b16 %v1666
    %v2014 = vunpack.c.l.b16 %v1667
    %v2015 = vunpack.c.h.b16 %v1667
    %v2016 = vunpack.c.l.b16 %v1668
    %v2017 = vunpack.c.h.b16 %v1668
    %v2018 = vunpack.c.l.b16 %v1669
    %v2019 = vunpack.c.h.b16 %v1669
    %v2020 = vunpack.c.l.b16 %v1670
    %v2021 = vunpack.c.h.b16 %v1670
    %v2022 = vunpack.c.l.b16 %v1671
    %v2023 = vunpack.c.h.b16 %v1671
    %v2024 = vunpack.c.l.b16 %v1672
    %v2025 = vunpack.c.h.b16 %v1672
    %v2026 = vunpack.c.l.b16 %v1673
    %v2027 = vunpack.c.h.b16 %v1673
    %v2028 = vunpack.c.l.b16 %v1674
    %v2029 = vunpack.c.h.b16 %v1674
    %v2030 = vunpack.c.l.b16 %v1675
    %v2031 = vunpack.c.h.b16 %v1675
    %v2032 = vunpack.c.l.b16 %v1676
    %v2033 = vunpack.c.h.b16 %v1676
    %v2034 = vunpack.c.l.b16 %v1677
    %v2035 = vunpack.c.h.b16 %v1677
    %v2036 = vunpack.c.l.b16 %v1678
    %v2037 = vunpack.c.h.b16 %v1678
    %v2038 = vunpack.c.l.b16 %v1679
    %v2039 = vunpack.c.h.b16 %v1679
    %v2040 = vunpack.c.l.b16 %v1680
    %v2041 = vunpack.c.h.b16 %v1680
    %v2042 = vunpack.c.l.b16 %v1681
    %v2043 = vunpack.c.h.b16 %v1681
    %v2044 = vunpack.c.l.b16 %v1682
    %v2045 = vunpack.c.h.b16 %v1682
    %v2046 = vunpack.c.l.b16 %v1683
    %v2047 = vunpack.c.h.b16 %v1683
    %v2048 = vunpack.c.l.b16 %v1684
    %v2049 = vunpack.c.h.b16 %v1684
    %v2050 = vunpack.c.l.b16 %v1685
    %v2051 = vunpack.c.h.b16 %v1685
    %v2052 = vunpack.c.l.b16 %v1686
    %v2053 = vunpack.c.h.b16 %v1686
    %v2054 = vunpack.c.l.b16 %v1687
    %v2055 = vunpack.c.h.b16 %v1687
    %v2056 = vunpack.c.l.b16 %v1688
    %v2057 = vunpack.c.h.b16 %v1688
    %v2058 = vunpack.c.l.b16 %v1689
    %v2059 = vunpack.c.h.b16 %v1689
    %v2060 = vunpack.c.l.b16 %v1690
    %v2061 = vunpack.c.h.b16 %v1690
    %v2062 = vunpack.c.l.b16 %v1691
    %v2063 = vunpack.c.h.b16 %v1691
    %v2064 = vunpack.c.l.b16 %v1692
    %v2065 = vunpack.c.h.b16 %v1692
    %v2066 = vunpack.c.l.b16 %v1693
    %v2067 = vunpack.c.h.b16 %v1693
    %v2068 = vunpack.c.l.b16 %v1694
    %v2069 = vunpack.c.h.b16 %v1694
    %v2070 = vunpack.c.l.b16 %v1695
    %v2071 = vunpack.c.h.b16 %v1695
    %v2072 = vunpack.c.l.b16 %v1696
    %v2073 = vunpack.c.h.b16 %v1696
    %v2074 = vunpack.c.l.b16 %v1697
    %v2075 = vunpack.c.h.b16 %v1697
    %v2076 = vunpack.c.l.b16 %v1698
    %v2077 = vunpack.c.h.b16 %v1698
    %v2078 = vunpack.c.l.b16 %v1699
    %v2079 = vunpack.c.h.b16 %v1699
    %v2080 = vunpack.c.l.b16 %v1700
    %v2081 = vunpack.c.h.b16 %v1700
    %v2082 = vunpack.c.l.b16 %v1701
    %v2083 = vunpack.c.h.b16 %v1701
    %v2084 = vunpack.c.l.b16 %v1702
    %v2085 = vunpack.c.h.b16 %v1702
    %v2086 = vunpack.c.l.b16 %v1703
    %v2087 = vunpack.c.h.b16 %v1703
    %v2088 = vunpack.c.l.b16 %v1704
    %v2089 = vunpack.c.h.b16 %v1704
    %v2090 = vunpack.c.l.b16 %v1705
    %v2091 = vunpack.c.h.b16 %v1705
    %v2092 = vunpack.c.l.b16 %v1706
    %v2093 = vunpack.c.h.b16 %v1706
    %v2094 = vunpack.c.l.b16 %v1707
    %v2095 = vunpack.c.h.b16 %v1707
    %v2096 = vunpack.c.l.b16 %v1708
    %v2097 = vunpack.c.h.b16 %v1708
    %v2098 = vunpack.c.l.b16 %v1709
    %v2099 = vunpack.c.h.b16 %v1709
    %v2100 = vunpack.c.l.b16 %v1710
    %v2101 = vunpack.c.h.b16 %v1710
    %v2102 = vunpack.c.l.b16 %v1711
    %v2103 = vunpack.c.h.b16 %v1711
    %v2104 = vunpack.c.l.b16 %v1712
    %v2105 = vunpack.c.h.b16 %v1712
    %v2106 = vunpack.c.l.b16 %v1713
    %v2107 = vunpack.c.h.b16 %v1713
    %v2108 = vunpack.c.l.b16 %v1714
    %v2109 = vunpack.c.h.b16 %v1714
    %v2110 = vunpack.c.l.b16 %v1715
    %v2111 = vunpack.c.h.b16 %v1715
    %v2112 = vunpack.c.l.b16 %v1716
    %v2113 = vunpack.c.h.b16 %v1716
    %v2114 = vunpack.c.l.b16 %v1717
    %v2115 = vunpack.c.h.b16 %v1717
    %v2116 = vunpack.c.l.b16 %v1718
    %v2117 = vunpack.c.h.b16 %v1718
    %v2118 = vunpack.c.l.b16 %v1719
    %v2119 = vunpack.c.h.b16 %v1719
    %v2120 = vunpack.c.l.b16 %v1720
    %v2121 = vunpack.c.h.b16 %v1720
    %v2122 = vunpack.c.l.b16 %v1721
    %v2123 = vunpack.c.h.b16 %v1721
    %v2124 = vunpack.c.l.b16 %v1722
    %v2125 = vunpack.c.h.b16 %v1722
    %v2126 = vunpack.c.l.b16 %v1723
    %v2127 = vunpack.c.h.b16 %v1723
    %v2128 = vunpack.c.l.b16 %v1724
    %v2129 = vunpack.c.h.b16 %v1724
    %v2130 = vunpack.c.l.b16 %v1725
    %v2131 = vunpack.c.h.b16 %v1725
    %v2132 = vunpack.c.l.b16 %v1726
    %v2133 = vunpack.c.h.b16 %v1726
    %v2134 = vunpack.c.l.b16 %v1727
    %v2135 = vunpack.c.h.b16 %v1727
    %v2136 = vunpack.c.l.b16 %v1728
    %v2137 = vunpack.c.h.b16 %v1728
    %v2138 = vunpack.c.l.b16 %v1729
    %v2139 = vunpack.c.h.b16 %v1729
    %v2140 = vunpack.c.l.b16 %v1730
    %v2141 = vunpack.c.h.b16 %v1730
    %v2142 = vunpack.c.l.b16 %v1731
    %v2143 = vunpack.c.h.b16 %v1731
    %v2144 = vunpack.c.l.b16 %v1732
    %v2145 = vunpack.c.h.b16 %v1732
    %v2146 = vunpack.c.l.b16 %v1733
    %v2147 = vunpack.c.h.b16 %v1733
    %v2148 = vunpack.c.l.b16 %v1734
    %v2149 = vunpack.c.h.b16 %v1734
    %v2150 = vunpack.c.l.b16 %v1735
    %v2151 = vunpack.c.h.b16 %v1735
    %v2152 = vunpack.c.l.b16 %v1736
    %v2153 = vunpack.c.h.b16 %v1736
    %v2154 = vunpack.c.l.b16 %v1737
    %v2155 = vunpack.c.h.b16 %v1737
    %v2156 = vunpack.c.l.b16 %v1738
    %v2157 = vunpack.c.h.b16 %v1738
    %v2158 = vunpack.c.l.b16 %v1739
    %v2159 = vunpack.c.h.b16 %v1739
    %v2160 = vunpack.c.l.b16 %v1740
    %v2161 = vunpack.c.h.b16 %v1740
    %v2162 = vunpack.c.l.b16 %v1741
    %v2163 = vunpack.c.h.b16 %v1741
    %v2164 = vunpack.c.l.b16 %v1742
    %v2165 = vunpack.c.h.b16 %v1742
    %v2166 = vunpack.c.l.b16 %v1743
    %v2167 = vunpack.c.h.b16 %v1743
    %v2168 = vunpack.c.l.b16 %v1744
    %v2169 = vunpack.c.h.b16 %v1744
    %v2170 = vunpack.c.l.b16 %v1745
    %v2171 = vunpack.c.h.b16 %v1745
    %v2172 = vpack.c.b16 %v1924, %v1916
    %v2173 = vpack.c.b16 %v1925, %v1917
    %v2174 = vpack.c.b16 %v1926, %v1918
    %v2175 = vpack.c.b16 %v1927, %v1919
    %v2176 = vpack.c.b16 %v1928, %v1920
    %v2177 = vpack.c.b16 %v1929, %v1921
    %v2178 = vpack.c.b16 %v1930, %v1922
    %v2179 = vpack.c.b16 %v1931, %v1923
    %v2180 = vpack.c.b16 %v1940, %v1932
    %v2181 = vpack.c.b16 %v1941, %v1933
    %v2182 = vpack.c.b16 %v1942, %v1934
    %v2183 = vpack.c.b16 %v1943, %v1935
    %v2184 = vpack.c.b16 %v1944, %v1936
    %v2185 = vpack.c.b16 %v1945, %v1937
    %v2186 = vpack.c.b16 %v1946, %v1938
    %v2187 = vpack.c.b16 %v1947, %v1939
    %v2188 = vpack.c.b16 %v1956, %v1948
    %v2189 = vpack.c.b16 %v1957, %v1949
    %v2190 = vpack.c.b16 %v1958, %v1950
    %v2191 = vpack.c.b16 %v1959, %v1951
    %v2192 = vpack.c.b16 %v1960, %v1952
    %v2193 = vpack.c.b16 %v1961, %v1953
    %v2194 = vpack.c.b16 %v1962, %v1954
    %v2195 = vpack.c.b16 %v1963, %v1955
    %v2196 = vpack.c.b16 %v1972, %v1964
    %v2197 = vpack.c.b16 %v1973, %v1965
    %v2198 = vpack.c.b16 %v1974, %v1966
    %v2199 = vpack.c.b16 %v1975, %v1967
    %v2200 = vpack.c.b16 %v1976, %v1968
    %v2201 = vpack.c.b16 %v1977, %v1969
    %v2202 = vpack.c.b16 %v1978, %v1970
    %v2203 = vpack.c.b16 %v1979, %v1971
    %v2204 = vpack.c.b16 %v1988, %v1980
    %v2205 = vpack.c.b16 %v1989, %v1981
    %v2206 = vpack.c.b16 %v1990, %v1982
    %v2207 = vpack.c.b16 %v1991, %v1983
    %v2208 = vpack.c.b16 %v1992, %v1984
    %v2209 = vpack.c.b16 %v1993, %v1985
    %v2210 = vpack.c.b16 %v1994, %v1986
    %v2211 = vpack.c.b16 %v1995, %v1987
    %v2212 = vpack.c.b16 %v2004, %v1996
    %v2213 = vpack.c.b16 %v2005, %v1997
    %v2214 = vpack.c.b16 %v2006, %v1998
    %v2215 = vpack.c.b16 %v2007, %v1999
    %v2216 = vpack.c.b16 %v2008, %v2000
    %v2217 = vpack.c.b16 %v2009, %v2001
    %v2218 = vpack.c.b16 %v2010, %v2002
    %v2219 = vpack.c.b16 %v2011, %v2003
    %v2220 = vpack.c.b16 %v2020, %v2012
    %v2221 = vpack.c.b16 %v2021, %v2013
    %v2222 = vpack.c.b16 %v2022, %v2014
    %v2223 = vpack.c.b16 %v2023, %v2015
    %v2224 = vpack.c.b16 %v2024, %v2016
    %v2225 = vpack.c.b16 %v2025, %v2017
    %v2226 = vpack.c.b16 %v2026, %v2018
    %v2227 = vpack.c.b16 %v2027, %v2019
    %v2228 = vpack.c.b16 %v2036, %v2028
    %v2229 = vpack.c.b16 %v2037, %v2029
    %v2230 = vpack.c.b16 %v2038, %v2030
    %v2231 = vpack.c.b16 %v2039, %v2031
    %v2232 = vpack.c.b16 %v2040, %v2032
    %v2233 = vpack.c.b16 %v2041, %v2033
    %v2234 = vpack.c.b16 %v2042, %v2034
    %v2235 = vpack.c.b16 %v2043, %v2035
    %v2236 = vpack.c.b16 %v2052, %v2044
    %v2237 = vpack.c.b16 %v2053, %v2045
    %v2238 = vpack.c.b16 %v2054, %v2046
    %v2239 = vpack.c.b16 %v2055, %v2047
    %v2240 = vpack.c.b16 %v2056, %v2048
    %v2241 = vpack.c.b16 %v2057, %v2049
    %v2242 = vpack.c.b16 %v2058, %v2050
    %v2243 = vpack.c.b16 %v2059, %v2051
    %v2244 = vpack.c.b16 %v2068, %v2060
    %v2245 = vpack.c.b16 %v2069, %v2061
    %v2246 = vpack.c.b16 %v2070, %v2062
    %v2247 = vpack.c.b16 %v2071, %v2063
    %v2248 = vpack.c.b16 %v2072, %v2064
    %v2249 = vpack.c.b16 %v2073, %v2065
    %v2250 = vpack.c.b16 %v2074, %v2066
    %v2251 = vpack.c.b16 %v2075, %v2067
    %v2252 = vpack.c.b16 %v2084, %v2076
    %v2253 = vpack.c.b16 %v2085, %v2077
    %v2254 = vpack.c.b16 %v2086, %v2078
    %v2255 = vpack.c.b16 %v2087, %v2079
    %v2256 = vpack.c.b16 %v2088, %v2080
    %v2257 = vpack.c.b16 %v2089, %v2081
    %v2258 = vpack.c.b16 %v2090, %v2082
    %v2259 = vpack.c.b16 %v2091, %v2083
    %v2260 = vpack.c.b16 %v2100, %v2092
    %v2261 = vpack.c.b16 %v2101, %v2093
    %v2262 = vpack.c.b16 %v2102, %v2094
    %v2263 = vpack.c.b16 %v2103, %v2095
    %v2264 = vpack.c.b16 %v2104, %v2096
    %v2265 = vpack.c.b16 %v2105, %v2097
    %v2266 = vpack.c.b16 %v2106, %v2098
    %v2267 = vpack.c.b16 %v2107, %v2099
    %v2268 = vpack.c.b16 %v2116, %v2108
    %v2269 = vpack.c.b16 %v2117, %v2109
    %v2270 = vpack.c.b16 %v2118, %v2110
    %v2271 = vpack.c.b16 %v2119, %v2111
    %v2272 = vpack.c.b16 %v2120, %v2112
    %v2273 = vpack.c.b16 %v2121, %v2113
    %v2274 = vpack.c.b16 %v2122, %v2114
    %v2275 = vpack.c.b16 %v2123, %v2115
    %v2276 = vpack.c.b16 %v2132, %v2124
    %v2277 = vpack.c.b16 %v2133, %v2125
    %v2278 = vpack.c.b16 %v2134, %v2126
    %v2279 = vpack.c.b16 %v2135, %v2127
    %v2280 = vpack.c.b16 %v2136, %v2128
    %v2281 = vpack.c.b16 %v2137, %v2129
    %v2282 = vpack.c.b16 %v2138, %v2130
    %v2283 = vpack.c.b16 %v2139, %v2131
    %v2284 = vpack.c.b16 %v2148, %v2140
    %v2285 = vpack.c.b16 %v2149, %v2141
    %v2286 = vpack.c.b16 %v2150, %v2142
    %v2287 = vpack.c.b16 %v2151, %v2143
    %v2288 = vpack.c.b16 %v2152, %v2144
    %v2289 = vpack.c.b16 %v2153, %v2145
    %v2290 = vpack.c.b16 %v2154, %v2146
    %v2291 = vpack.c.b16 %v2155, %v2147
    %v2292 = vpack.c.b16 %v2164, %v2156
    %v2293 = vpack.c.b16 %v2165, %v2157
    %v2294 = vpack.c.b16 %v2166, %v2158
    %v2295 = vpack.c.b16 %v2167, %v2159
    %v2296 = vpack.c.b16 %v2168, %v2160
    %v2297 = vpack.c.b16 %v2169, %v2161
    %v2298 = vpack.c.b16 %v2170, %v2162
    %v2299 = vpack.c.b16 %v2171, %v2163
    %2428 = vmatprep.subr.bf16.mxu0 %v2173
    %2429 = vmatpush1.bf16.msra.mxu0 %v2172
    %2430 = vmatprep.subr.bf16.mxu0 %v2181
    %2431 = vmatpush1.bf16.msra.mxu0 %v2180
    %2432 = vmatprep.subr.bf16.mxu0 %v2189
    %2433 = vmatpush1.bf16.msra.mxu0 %v2188
    %2434 = vmatprep.subr.bf16.mxu0 %v2197
    %2435 = vmatpush1.bf16.msra.mxu0 %v2196
    %2436 = vmatprep.subr.bf16.mxu0 %v2205
    %2437 = vmatpush1.bf16.msra.mxu0 %v2204
    %2438 = vmatprep.subr.bf16.mxu0 %v2213
    %2439 = vmatpush1.bf16.msra.mxu0 %v2212
    %2440 = vmatprep.subr.bf16.mxu0 %v2221
    %2441 = vmatpush1.bf16.msra.mxu0 %v2220
    %2442 = vmatprep.subr.bf16.mxu0 %v2229
    %2443 = vmatpush1.bf16.msra.mxu0 %v2228
    %2444 = vmatprep.subr.bf16.mxu0 %v2237
    %2445 = vmatpush1.bf16.msra.mxu0 %v2236
    %2446 = vmatprep.subr.bf16.mxu0 %v2245
    %2447 = vmatpush1.bf16.msra.mxu0 %v2244
    %2448 = vmatprep.subr.bf16.mxu0 %v2253
    %2449 = vmatpush1.bf16.msra.mxu0 %v2252
    %2450 = vmatprep.subr.bf16.mxu0 %v2261
    %2451 = vmatpush1.bf16.msra.mxu0 %v2260
    %2452 = vmatprep.subr.bf16.mxu0 %v2269
    %2453 = vmatpush1.bf16.msra.mxu0 %v2268
    %2454 = vmatprep.subr.bf16.mxu0 %v2277
    %2455 = vmatpush1.bf16.msra.mxu0 %v2276
    %2456 = vmatprep.subr.bf16.mxu0 %v2285
    %2457 = vmatpush1.bf16.msra.mxu0 %v2284
    %2458 = vmatprep.subr.bf16.mxu0 %v2293
    %2459 = vmatpush1.bf16.msra.mxu0 %v2292
    %2460 = vmatprep.mubr.bf16.mxu0 %v1617
    %2461 = vmatmul.mubr.bf16.gmra.mrb[0].mxu0 %v1616
    %v2462 = vpop.f32.mrb[0].mxu0
    %v2463 = vadd.f32 %v1751, %v2462
    %v2464 = vpop.f32.mrb[0].mxu0
    %v2465 = vadd.f32 %v1755, %v2464
    %v2466 = vpop.f32.mrb[0].mxu0
    %v2467 = vpop.f32.mrb[0].mxu0
    %2468 = vdwg.mxu0
    %2469 = vmatprep.subr.bf16.mxu0 %v2175
    %2470 = vmatpush1.bf16.msra.mxu0 %v2174
    %2471 = vmatprep.subr.bf16.mxu0 %v2183
    %2472 = vmatpush1.bf16.msra.mxu0 %v2182
    %2473 = vmatprep.subr.bf16.mxu0 %v2191
    %2474 = vmatpush1.bf16.msra.mxu0 %v2190
    %2475 = vmatprep.subr.bf16.mxu0 %v2199
    %2476 = vmatpush1.bf16.msra.mxu0 %v2198
    %2477 = vmatprep.subr.bf16.mxu0 %v2207
    %2478 = vmatpush1.bf16.msra.mxu0 %v2206
    %2479 = vmatprep.subr.bf16.mxu0 %v2215
    %2480 = vmatpush1.bf16.msra.mxu0 %v2214
    %2481 = vmatprep.subr.bf16.mxu0 %v2223
    %2482 = vmatpush1.bf16.msra.mxu0 %v2222
    %2483 = vmatprep.subr.bf16.mxu0 %v2231
    %2484 = vmatpush1.bf16.msra.mxu0 %v2230
    %2485 = vmatprep.subr.bf16.mxu0 %v2239
    %2486 = vmatpush1.bf16.msra.mxu0 %v2238
    %2487 = vmatprep.subr.bf16.mxu0 %v2247
    %2488 = vmatpush1.bf16.msra.mxu0 %v2246
    %2489 = vmatprep.subr.bf16.mxu0 %v2255
    %2490 = vmatpush1.bf16.msra.mxu0 %v2254
    %2491 = vmatprep.subr.bf16.mxu0 %v2263
    %2492 = vmatpush1.bf16.msra.mxu0 %v2262
    %2493 = vmatprep.subr.bf16.mxu0 %v2271
    %2494 = vmatpush1.bf16.msra.mxu0 %v2270
    %2495 = vmatprep.subr.bf16.mxu0 %v2279
    %2496 = vmatpush1.bf16.msra.mxu0 %v2278
    %2497 = vmatprep.subr.bf16.mxu0 %v2287
    %2498 = vmatpush1.bf16.msra.mxu0 %v2286
    %2499 = vmatprep.subr.bf16.mxu0 %v2295
    %2500 = vmatpush1.bf16.msra.mxu0 %v2294
    %2501 = vmatprep.mubr.bf16.mxu0 %v1617
    %2502 = vmatmul.mubr.bf16.gmra.mrb[0].mxu0 %v1616
    %v2503 = vpop.f32.mrb[0].mxu0
    %v2504 = vadd.f32 %v1759, %v2503
    %v2505 = vpop.f32.mrb[0].mxu0
    %v2506 = vadd.f32 %v1763, %v2505
    %v2507 = vpop.f32.mrb[0].mxu0
    %v2508 = vpop.f32.mrb[0].mxu0
    %2509 = vdwg.mxu0
    %2510 = vmatprep.subr.bf16.mxu0 %v2177
    %2511 = vmatpush1.bf16.msra.mxu0 %v2176
    %2512 = vmatprep.subr.bf16.mxu0 %v2185
    %2513 = vmatpush1.bf16.msra.mxu0 %v2184
    %2514 = vmatprep.subr.bf16.mxu0 %v2193
    %2515 = vmatpush1.bf16.msra.mxu0 %v2192
    %2516 = vmatprep.subr.bf16.mxu0 %v2201
    %2517 = vmatpush1.bf16.msra.mxu0 %v2200
    %2518 = vmatprep.subr.bf16.mxu0 %v2209
    %2519 = vmatpush1.bf16.msra.mxu0 %v2208
    %2520 = vmatprep.subr.bf16.mxu0 %v2217
    %2521 = vmatpush1.bf16.msra.mxu0 %v2216
    %2522 = vmatprep.subr.bf16.mxu0 %v2225
    %2523 = vmatpush1.bf16.msra.mxu0 %v2224
    %2524 = vmatprep.subr.bf16.mxu0 %v2233
    %2525 = vmatpush1.bf16.msra.mxu0 %v2232
    %2526 = vmatprep.subr.bf16.mxu0 %v2241
    %2527 = vmatpush1.bf16.msra.mxu0 %v2240
    %2528 = vmatprep.subr.bf16.mxu0 %v2249
    %2529 = vmatpush1.bf16.msra.mxu0 %v2248
    %2530 = vmatprep.subr.bf16.mxu0 %v2257
    %2531 = vmatpush1.bf16.msra.mxu0 %v2256
    %2532 = vmatprep.subr.bf16.mxu0 %v2265
    %2533 = vmatpush1.bf16.msra.mxu0 %v2264
    %2534 = vmatprep.subr.bf16.mxu0 %v2273
    %2535 = vmatpush1.bf16.msra.mxu0 %v2272
    %2536 = vmatprep.subr.bf16.mxu0 %v2281
    %2537 = vmatpush1.bf16.msra.mxu0 %v2280
    %2538 = vmatprep.subr.bf16.mxu0 %v2289
    %2539 = vmatpush1.bf16.msra.mxu0 %v2288
    %2540 = vmatprep.subr.bf16.mxu0 %v2297
    %2541 = vmatpush1.bf16.msra.mxu0 %v2296
    %2542 = vmatprep.mubr.bf16.mxu0 %v1617
    %2543 = vmatmul.mubr.bf16.gmra.mrb[0].mxu0 %v1616
    %v2544 = vpop.f32.mrb[0].mxu0
    %v2545 = vadd.f32 %v1767, %v2544
    %v2546 = vpop.f32.mrb[0].mxu0
    %v2547 = vadd.f32 %v1771, %v2546
    %v2548 = vpop.f32.mrb[0].mxu0
    %v2549 = vpop.f32.mrb[0].mxu0
    %2550 = vdwg.mxu0
    %2551 = vmatprep.subr.bf16.mxu0 %v2179
    %2552 = vmatpush1.bf16.msra.mxu0 %v2178
    %2553 = vmatprep.subr.bf16.mxu0 %v2187
    %2554 = vmatpush1.bf16.msra.mxu0 %v2186
    %2555 = vmatprep.subr.bf16.mxu0 %v2195
    %2556 = vmatpush1.bf16.msra.mxu0 %v2194
    %2557 = vmatprep.subr.bf16.mxu0 %v2203
    %2558 = vmatpush1.bf16.msra.mxu0 %v2202
    %2559 = vmatprep.subr.bf16.mxu0 %v2211
    %2560 = vmatpush1.bf16.msra.mxu0 %v2210
    %2561 = vmatprep.subr.bf16.mxu0 %v2219
    %2562 = vmatpush1.bf16.msra.mxu0 %v2218
    %2563 = vmatprep.subr.bf16.mxu0 %v2227
    %2564 = vmatpush1.bf16.msra.mxu0 %v2226
    %2565 = vmatprep.subr.bf16.mxu0 %v2235
    %2566 = vmatpush1.bf16.msra.mxu0 %v2234
    %2567 = vmatprep.subr.bf16.mxu0 %v2243
    %2568 = vmatpush1.bf16.msra.mxu0 %v2242
    %2569 = vmatprep.subr.bf16.mxu0 %v2251
    %2570 = vmatpush1.bf16.msra.mxu0 %v2250
    %2571 = vmatprep.subr.bf16.mxu0 %v2259
    %2572 = vmatpush1.bf16.msra.mxu0 %v2258
    %2573 = vmatprep.subr.bf16.mxu0 %v2267
    %2574 = vmatpush1.bf16.msra.mxu0 %v2266
    %2575 = vmatprep.subr.bf16.mxu0 %v2275
    %2576 = vmatpush1.bf16.msra.mxu0 %v2274
    %2577 = vmatprep.subr.bf16.mxu0 %v2283
    %2578 = vmatpush1.bf16.msra.mxu0 %v2282
    %2579 = vmatprep.subr.bf16.mxu0 %v2291
    %2580 = vmatpush1.bf16.msra.mxu0 %v2290
    %2581 = vmatprep.subr.bf16.mxu0 %v2299
    %2582 = vmatpush1.bf16.msra.mxu0 %v2298
    %2583 = vmatprep.mubr.bf16.mxu0 %v1617
    %2584 = vmatmul.mubr.bf16.gmra.mrb[0].mxu0 %v1616
    %v2585 = vpop.f32.mrb[0].mxu0
    %v2586 = vadd.f32 %v1775, %v2585
    %v2587 = vpop.f32.mrb[0].mxu0
    %v2588 = vadd.f32 %v1779, %v2587
    %v2589 = vpop.f32.mrb[0].mxu0
    %v2590 = vpop.f32.mrb[0].mxu0
    %2591 = vdwg.mxu0
    %v2592 = vxor.u32 %v2463, 2147483648
    %v2593 = vxor.u32 %v2465, 2147483648
    %v2594 = vmul.f32 %v2592, 1.442695
    %v2595 = vpow.pop %v2594
    %v2596 = vmul.f32 %v2593, 1.442695
    %v2597 = vpow.pop %v2596
    %v2598 = vadd.f32 %v2595, 1.0
    %v2599 = vadd.f32 %v2597, 1.0
    %v2600 = vrcp.pop %v2598
    %v2601 = vmul.f32 1.0, %v2600
    %v2602 = vrcp.pop %v2599
    %v2603 = vmul.f32 1.0, %v2602
    %v2604 = vxor.u32 %v2504, 2147483648
    %v2605 = vxor.u32 %v2506, 2147483648
    %v2606 = vmul.f32 %v2604, 1.442695
    %v2607 = vpow.pop %v2606
    %v2608 = vmul.f32 %v2605, 1.442695
    %v2609 = vpow.pop %v2608
    %v2610 = vadd.f32 %v2607, 1.0
    %v2611 = vadd.f32 %v2609, 1.0
    %v2612 = vrcp.pop %v2610
    %v2613 = vmul.f32 1.0, %v2612
    %v2614 = vrcp.pop %v2611
    %v2615 = vmul.f32 1.0, %v2614
    %v2616 = vxor.u32 %v2545, 2147483648
    %v2617 = vxor.u32 %v2547, 2147483648
    %v2618 = vmul.f32 %v2616, 1.442695
    %v2619 = vpow.pop %v2618
    %v2620 = vmul.f32 %v2617, 1.442695
    %v2621 = vpow.pop %v2620
    %v2622 = vadd.f32 %v2619, 1.0
    %v2623 = vadd.f32 %v2621, 1.0
    %v2624 = vrcp.pop %v2622
    %v2625 = vmul.f32 1.0, %v2624
    %v2626 = vrcp.pop %v2623
    %v2627 = vmul.f32 1.0, %v2626
    %v2628 = vxor.u32 %v2586, 2147483648
    %v2629 = vxor.u32 %v2588, 2147483648
    %v2630 = vmul.f32 %v2628, 1.442695
    %v2631 = vpow.pop %v2630
    %v2632 = vmul.f32 %v2629, 1.442695
    %v2633 = vpow.pop %v2632
    %v2634 = vadd.f32 %v2631, 1.0
    %v2635 = vadd.f32 %v2633, 1.0
    %v2636 = vrcp.pop %v2634
    %v2637 = vmul.f32 1.0, %v2636
    %v2638 = vrcp.pop %v2635
    %v2639 = vmul.f32 1.0, %v2638
    %v2640 = vmul.f32 %v2613, %v171
    %v2641 = vmul.f32 %v2615, %v172
    %v2642 = vmul.f32 %v2601, %v2625
    %v2643 = vmul.f32 %v2603, %v2627
    %v2644 = vadd.f32 %v2640, %v2642
    %v2645 = vadd.f32 %v2641, %v2643
    %v2646 = vtanh.pop %v2644
    %v2647 = vtanh.pop %v2645
    %v2648 = vmul.f32 %v2637, %v2646
    %v2649 = vmul.f32 %v2639, %v2647
    %2650 = vst [vmem:[#allocation16] sm:$0xff] %v2648
    %2651 = vst [vmem:[#allocation16 + $0x8] sm:$0xff] %v2649
    %2652 = vst [vmem:[#allocation17] sm:$0xff] %v2644
    %2653 = vst [vmem:[#allocation17 + $0x8] sm:$0xff] %v2645
    // Predicated region
    $region102: #{tpu_custom_call.1} parent=1 // pred_check
      _
    $region103: #{tpu_custom_call.1} parent=1 // pred_check_branch
      %2655 = sbr.rel (0) target = $region105
    $region104: #{tpu_custom_call.1} parent=1 // pred_region
      %s2657 = ssub.s32 256, 256
      %2658 = vsyncadd [#allocation4], %s2657
      %s2660 = sshll.u32 [#allocation16], 4
      %s2661 = int_to_ptr.vmem [resolvable:$true] %s2660
      %2663 = dma.vmem_to_hbm [thread:$0]  %s2661, 256, %s17, [#allocation4]
    $region105: #{tpu_custom_call.1} parent=1 // pred_fallthru
      _
    // Predicated region
    $region106: #{tpu_custom_call.1} parent=1 // pred_check
      _
    $region107: #{tpu_custom_call.1} parent=1 // pred_check_branch
      %2665 = sbr.rel (0) target = $region109
    $region108: #{tpu_custom_call.1} parent=1 // pred_region
      %s2667 = ssub.s32 256, 256
      %2668 = vsyncadd [#allocation18], %s2667
      %s2670 = sshll.u32 [#allocation17], 4
      %s2671 = int_to_ptr.vmem [resolvable:$true] %s2670
      %2673 = dma.vmem_to_hbm [thread:$0]  %s2671, 256, %s18, [#allocation18]
    $region109: #{tpu_custom_call.1} parent=1 // pred_fallthru
      _
    // Predicated region
    $region110: #{tpu_custom_call.1} parent=1 // pred_check
      _
    $region111: #{tpu_custom_call.1} parent=1 // pred_check_branch
      %2675 = sbr.rel (0) target = $region113
    $region112: #{tpu_custom_call.1} parent=1 // pred_region
      %2676 = dma.done [#allocation4], 256
    $region113: #{tpu_custom_call.1} parent=1 // pred_fallthru
      _
    // Predicated region
    $region114: #{tpu_custom_call.1} parent=1 // pred_check
      _
    $region115: #{tpu_custom_call.1} parent=1 // pred_check_branch
      %2678 = sbr.rel (0) target = $region117
    $region116: #{tpu_custom_call.1} parent=1 // pred_region
      %2679 = dma.done [#allocation18], 256
    $region117: #{tpu_custom_call.1} parent=1 // pred_fallthru
      _
    %2680 = vsyncpa [#allocation3], 1
    %2681 = vsyncpa [#allocation6], 1
    %2682 = vsyncpa [#allocation9], 1
    %2683 = vsyncpa [#allocation12], 1
    %2684 = vsyncpa [#allocation15], 1
    %2685 = vsyncpa [#allocation4], 1
    %2686 = vsyncpa [#allocation18], 1

</llo_original>
